<compile_context>
chip_gen: v7x
topology: tpu7x:2x2x1
jax: 0.10.0
libtpu: 0.0.40
codegen_flags: <defaults>
</compile_context>

<pallas_src>
import jax
import jax.numpy as jnp
from jax import lax
from jax.experimental import pallas as pl
from jax.experimental.pallas import tpu as pltpu

HID = 128       # hidden_dim in the torch module
N_GCONV = 8     # number of GraphConv layers


# ------------------------------ Pallas kernel --------------------------------

def _deform_kernel(
    feats_ref, verts_ref, adj_ref,
    wb_ref, bb_ref,
    w01h0_ref, w01v0_ref, b010_ref,
    w01s_ref, b01s_ref,
    wh1_ref, bh1_ref, wh2_ref, bh2_ref, wh3_ref, bh3_ref,
    out_ref,
):
    f32 = jnp.float32
    bf16 = jnp.bfloat16
    dot = lambda a, b: jnp.dot(a, b, preferred_element_type=f32)

    # bottleneck Linear + ReLU  (bf16 MXU inputs, f32 accumulate)
    h = jnp.maximum(dot(feats_ref[...], wb_ref[...]) + bb_ref[...], 0.0)     # [N, HID] f32

    # GraphConv 0: input concat([h, verts]); w0|w1 fused along output lanes.
    # verts contraction (K=8, zero-padded from 3) kept in f32 -- tiny.
    y = (dot(h.astype(bf16), w01h0_ref[...])
         + dot(verts_ref[...], w01v0_ref[...])
         + b010_ref[...])                                                    # [N, 2*HID] f32
    w0x = y[:, :HID]
    w1x = y[:, HID:]
    agg = dot(adj_ref[...], w1x.astype(bf16))                                # neighbor sum (dense 0/1 adj, bf16 exact)
    x = jnp.maximum(w0x + agg, 0.0).astype(bf16)                             # [N, HID] bf16

    # GraphConv 1..7 (stacked fused weights, dynamic leading-axis indexing)
    def layer(i, x):
        y = dot(x, w01s_ref[i]) + b01s_ref[i]                                # [N, 2*HID] f32
        w0x = y[:, :HID]
        w1x = y[:, HID:]
        agg = dot(adj_ref[...], w1x.astype(bf16))
        return jnp.maximum(w0x + agg, 0.0).astype(bf16)

    x = lax.fori_loop(0, N_GCONV - 1, layer, x, unroll=True)

    # Fused lane-dense heads:
    #   head1 lanes 0:3  = vert_offset Linear (no ReLU)   -> delta_v
    #   head1 lanes 3:35 = asym Linear(128,32) pre-ReLU
    head1 = dot(x, wh1_ref[...]) + bh1_ref[...]                              # [N, 128] f32
    a1 = jnp.maximum(head1, 0.0).astype(bf16)                                # padded lanes stay 0; wh2 rows 0:3 are 0
    a2 = jnp.maximum(dot(a1, wh2_ref[...]) + bh2_ref[...], 0.0).astype(bf16) # lanes 0:16 = asym hidden2
    a3 = dot(a2, wh3_ref[...]) + bh3_ref[...]                                # [N, 128] f32; lane 3 = asym logit
    sig = jax.nn.sigmoid(a3)                                                 # f32 sigmoid (strict (0,1))

    # Lane-dense packed output: lanes 0:3 = delta_v, lane 3 = asym confidence.
    col = lax.broadcasted_iota(jnp.int32, out_ref.shape, 1)
    out_ref[...] = jnp.where(col < 3, head1, jnp.where(col == 3, sig, 0.0))


# --------------------------- wrapper / param packing -------------------------

def _pack_params(params):
    bf16 = jnp.bfloat16
    pk = {}
    pk['wb'] = params['wb'].astype(bf16)
    pk['bb'] = params['bb']

    # GraphConv 0: fuse w0|w1 along output lanes; split over [h | verts].
    pk['w01h0'] = jnp.concatenate([params['w0h0'], params['w1h0']], axis=-1).astype(bf16)  # [HID, 2HID]
    w01v0 = jnp.concatenate([params['w0v0'], params['w1v0']], axis=-1)                     # [3, 2HID]
    pk['w01v0'] = jnp.pad(w01v0, ((0, 5), (0, 0)))                                         # [8, 2HID] f32
    pk['b010'] = jnp.concatenate([params['b00'], params['b10']], axis=-1)                  # [1, 2HID]

    # GraphConv 1..7 fused stacks
    pk['w01s'] = jnp.concatenate([params['w0s'], params['w1s']], axis=-1).astype(bf16)     # [7, HID, 2HID]
    pk['b01s'] = jnp.concatenate([params['b0s'], params['b1s']], axis=-1)                  # [7, 1, 2HID]

    # Heads, zero-padded to lane-dense 128-wide weights.
    wh1 = jnp.zeros((HID, 128), jnp.float32)
    wh1 = wh1.at[:, 0:3].set(params['wvo']).at[:, 3:35].set(params['wa1'])
    bh1 = jnp.zeros((1, 128), jnp.float32)
    bh1 = bh1.at[:, 0:3].set(params['bvo']).at[:, 3:35].set(params['ba1'])
    wh2 = jnp.zeros((128, 128), jnp.float32).at[3:35, 0:16].set(params['wa2'])
    bh2 = jnp.zeros((1, 128), jnp.float32).at[:, 0:16].set(params['ba2'])
    wh3 = jnp.zeros((128, 128), jnp.float32).at[0:16, 3:4].set(params['wa3'])
    bh3 = jnp.zeros((1, 128), jnp.float32).at[:, 3:4].set(params['ba3'])
    pk['wh1'] = wh1.astype(bf16); pk['bh1'] = bh1
    pk['wh2'] = wh2.astype(bf16); pk['bh2'] = bh2
    pk['wh3'] = wh3.astype(bf16); pk['bh3'] = bh3
    return pk


def deformation_net_pallas(vert_feats, verts_packed, adj, params):
    n, f_img = vert_feats.shape
    pk = _pack_params(params)
    verts_pad = jnp.pad(verts_packed.astype(jnp.float32),
                        ((0, 0), (0, 8 - verts_packed.shape[1])))            # [N, 8]

    inputs = (
        vert_feats.astype(jnp.bfloat16),
        verts_pad,
        adj.astype(jnp.bfloat16),          # 0/1 -> exact in bf16
        pk['wb'], pk['bb'],
        pk['w01h0'], pk['w01v0'], pk['b010'],
        pk['w01s'], pk['b01s'],
        pk['wh1'], pk['bh1'], pk['wh2'], pk['bh2'], pk['wh3'], pk['bh3'],
    )
    vmem = pl.BlockSpec(memory_space=pltpu.MemorySpace.VMEM)

    flops = int(
        2 * n * f_img * HID                                  # bottleneck
        + N_GCONV * (2 * n * HID * 2 * HID + 2 * n * n * HID)  # fused gconv + adj agg
        + 2 * n * 8 * 2 * HID                                # verts contraction
        + 3 * 2 * n * 128 * 128                              # fused heads
    )
    bytes_accessed = int(sum(int(a.size) * a.dtype.itemsize for a in inputs)
                         + n * 128 * 4)

    out = pl.pallas_call(
        _deform_kernel,
        out_shape=jax.ShapeDtypeStruct((n, 128), jnp.float32),
        in_specs=[vmem] * len(inputs),
        out_specs=vmem,
        cost_estimate=pl.CostEstimate(
            flops=flops, transcendentals=int(n * 128),
            bytes_accessed=bytes_accessed),
    )(*inputs)

    delta_v = out[:, :3]        # vert_offset head (computed as in torch forward)
    asym_conf = out[:, 3:4]     # sigmoid(asym_conf MLP)
    return delta_v, asym_conf


# ------------------------------ JAX glue -------------------------------------

def synthetic_backbone(img, conv_params):
    # TODO(synk): external build_backbone('resnet18', num_conv=2) has no in-repo
    # definition; replaced by a deterministic 2-stage strided-conv stub
    # producing feat_dims = (64, 64).
    x = img
    feats = []
    for (w, b) in conv_params:
        x = lax.conv_general_dilated(
            x, w, window_strides=(2, 2), padding='SAME',
            dimension_numbers=('NCHW', 'OIHW', 'NCHW'))
        x = jax.nn.relu(x + b[None, :, None, None])
        feats.append(x)
    return feats


def align_and_normalize_verts(verts_padded, R, T):
    # TODO(synk): general_utils.align_and_normalize_verts_original is external;
    # approximated as rigid transform followed by per-axis normalization to [-1, 1].
    v = jnp.einsum('bnk,bkj->bnj', verts_padded, R) + T[:, None, :]
    vmin = v.min(axis=1, keepdims=True)
    vmax = v.max(axis=1, keepdims=True)
    return 2.0 * (v - vmin) / (vmax - vmin + 1e-8) - 1.0


def vert_align(feat_maps, verts_ndc):
    # pytorch3d.ops.vert_align(..., return_packed=True): bilinear sample each
    # NCHW feature map at (x, y) = verts_ndc[..., :2] in [-1, 1]
    # (align_corners=True) and concat over channels.  Dynamic gather -> JAX glue.
    x = verts_ndc[..., 0]
    y = verts_ndc[..., 1]
    outs = []
    for f in feat_maps:
        _, _, H, W = f.shape
        ix = (x + 1.0) * 0.5 * (W - 1)
        iy = (y + 1.0) * 0.5 * (H - 1)
        x0 = jnp.floor(ix)
        y0 = jnp.floor(iy)
        wx = (ix - x0)[..., None]
        wy = (iy - y0)[..., None]
        x0i = jnp.clip(x0, 0, W - 1).astype(jnp.int32)
        x1i = jnp.clip(x0 + 1, 0, W - 1).astype(jnp.int32)
        y0i = jnp.clip(y0, 0, H - 1).astype(jnp.int32)
        y1i = jnp.clip(y0 + 1, 0, H - 1).astype(jnp.int32)

        def g(yi, xi):
            # f: [B, C, H, W]; yi/xi: [B, N] -> [B, N, C]
            return jax.vmap(lambda fm, yy, xx: fm[:, yy, xx].T)(f, yi, xi)

        v00, v01 = g(y0i, x0i), g(y0i, x1i)
        v10, v11 = g(y1i, x0i), g(y1i, x1i)
        s = (v00 * (1 - wx) * (1 - wy) + v01 * wx * (1 - wy)
             + v10 * (1 - wx) * wy + v11 * wx * wy)
        outs.append(s)
    packed = jnp.concatenate(outs, axis=-1)
    return packed.reshape(-1, packed.shape[-1])     # return_packed=True


def init_params(key, img_feat_dim):
    ks = iter(jax.random.split(key, 64))

    def lin(in_d, out_d, std=0.05):
        w = std * jax.random.normal(next(ks), (in_d, out_d), jnp.float32)
        b = jnp.zeros((1, out_d), jnp.float32)
        return w, b

    p = {}
    p['wb'], p['bb'] = lin(img_feat_dim, HID)
    # GraphConv 0: input_dim = HID + 3; weights split over [h | verts]
    w0, p['b00'] = lin(HID + 3, HID, std=0.01)
    p['w0h0'], p['w0v0'] = w0[:HID], w0[HID:]
    w1, p['b10'] = lin(HID + 3, HID, std=0.01)
    p['w1h0'], p['w1v0'] = w1[:HID], w1[HID:]
    # GraphConv 1..7, stacked along a leading layer axis
    w0s, b0s, w1s, b1s = [], [], [], []
    for _ in range(N_GCONV - 1):
        w, b = lin(HID, HID, std=0.01); w0s.append(w); b0s.append(b)
        w, b = lin(HID, HID, std=0.01); w1s.append(w); b1s.append(b)
    p['w0s'] = jnp.stack(w0s); p['b0s'] = jnp.stack(b0s)
    p['w1s'] = jnp.stack(w1s); p['b1s'] = jnp.stack(b1s)
    p['wvo'], p['bvo'] = lin(HID, 3)
    p['wa1'], p['ba1'] = lin(HID, 32)
    p['wa2'], p['ba2'] = lin(32, 16)
    p['wa3'], p['ba3'] = lin(16, 1)
    return p


if __name__ == "__main__":
    key = jax.random.PRNGKey(0)
    k_img, k_verts, k_R, k_c1, k_c2, k_par = jax.random.split(key, 6)

    N = 128                                             # number of mesh vertices
    img = jax.random.normal(k_img, (1, 3, 32, 32), jnp.float32)
    verts_padded = jax.random.normal(k_verts, (1, N, 3), jnp.float32)
    R, _ = jnp.linalg.qr(jax.random.normal(k_R, (3, 3), jnp.float32))
    R = R[None].astype(jnp.float32)                     # [1, 3, 3]
    T = jnp.array([[0.0, 0.0, 2.0]], jnp.float32)       # [1, 3]

    # mesh.edges_packed(): ring graph -> dense undirected adjacency for the kernel
    e0 = jnp.arange(N, dtype=jnp.int32)
    e1 = (e0 + 1) % N
    adj = jnp.zeros((N, N), jnp.float32).at[e0, e1].set(1.0).at[e1, e0].set(1.0)

    # synthetic backbone params: two 3x3 stride-2 convs (3->64, 64->64)
    conv_params = [
        (0.05 * jax.random.normal(k_c1, (64, 3, 3, 3), jnp.float32),
         jnp.zeros((64,), jnp.float32)),
        (0.05 * jax.random.normal(k_c2, (64, 64, 3, 3), jnp.float32),
         jnp.zeros((64,), jnp.float32)),
    ]
    feat_maps = synthetic_backbone(img, conv_params)
    img_feat_dim = sum(f.shape[1] for f in feat_maps)   # 128

    params = init_params(k_par, img_feat_dim)

    aligned = align_and_normalize_verts(verts_padded, R, T)
    vert_feats = vert_align(feat_maps, aligned)          # [N, img_feat_dim]
    verts_packed = verts_padded.reshape(-1, 3)           # batch 1: packed == padded

    delta_v, asym_conf = deformation_net_pallas(vert_feats, verts_packed, adj, params)
    jax.block_until_ready(asym_conf)

    assert asym_conf.shape == (N, 1) and delta_v.shape == (N, 3)
    assert bool(jnp.all(jnp.isfinite(delta_v)))
    assert bool(jnp.all(jnp.isfinite(asym_conf)))
    assert bool(jnp.all((asym_conf > 0.0) & (asym_conf < 1.0)))
    print("KERNEL_OK")
</pallas_src>

<mosaic_0001>
module attributes {stable_mosaic.version = 11 : i64} {
  func.func @_deform_kernel(%arg0: memref<128x128xbf16, #tpu.memory_space<vmem>>, %arg1: memref<128x8xf32, #tpu.memory_space<vmem>>, %arg2: memref<128x128xbf16, #tpu.memory_space<vmem>>, %arg3: memref<128x128xbf16, #tpu.memory_space<vmem>>, %arg4: memref<1x128xf32, #tpu.memory_space<vmem>>, %arg5: memref<128x256xbf16, #tpu.memory_space<vmem>>, %arg6: memref<8x256xf32, #tpu.memory_space<vmem>>, %arg7: memref<1x256xf32, #tpu.memory_space<vmem>>, %arg8: memref<7x128x256xbf16, #tpu.memory_space<vmem>>, %arg9: memref<7x1x256xf32, #tpu.memory_space<vmem>>, %arg10: memref<128x128xbf16, #tpu.memory_space<vmem>>, %arg11: memref<1x128xf32, #tpu.memory_space<vmem>>, %arg12: memref<128x128xbf16, #tpu.memory_space<vmem>>, %arg13: memref<1x128xf32, #tpu.memory_space<vmem>>, %arg14: memref<128x128xbf16, #tpu.memory_space<vmem>>, %arg15: memref<1x128xf32, #tpu.memory_space<vmem>>, %arg16: memref<128x128xf32, #tpu.memory_space<vmem>>) attributes {dimension_semantics = [], scalar_prefetch = 0 : i64, scratch_operands = 0 : i64, tpu.core_type = #tpu.core_type<tc>} {
    %c0 = arith.constant 0 : index
    %c0_0 = arith.constant 0 : index
    %0 = vector.load %arg0[%c0, %c0_0] : memref<128x128xbf16, #tpu.memory_space<vmem>>, vector<128x128xbf16>
    %c0_1 = arith.constant 0 : index
    %c0_2 = arith.constant 0 : index
    %1 = vector.load %arg3[%c0_1, %c0_2] : memref<128x128xbf16, #tpu.memory_space<vmem>>, vector<128x128xbf16>
    %cst = arith.constant dense<0.000000e+00> : vector<128x128xf32>
    %2 = tpu.matmul %0, %1, %cst {dimension_numbers = #tpu.dot_dimension_numbers<[1], [0], [0], [1], [0, 0, 1, 1], [], []>} : vector<128x128xbf16>, vector<128x128xbf16>, vector<128x128xf32> -> vector<128x128xf32>
    %c0_3 = arith.constant 0 : index
    %c0_4 = arith.constant 0 : index
    %3 = vector.load %arg4[%c0_3, %c0_4] : memref<1x128xf32, #tpu.memory_space<vmem>>, vector<1x128xf32>
    %4 = vector.broadcast %3 : vector<1x128xf32> to vector<128x128xf32>
    %5 = arith.addf %2, %4 : vector<128x128xf32>
    %cst_5 = arith.constant 0.000000e+00 : f32
    %6 = vector.broadcast %cst_5 : f32 to vector<128x128xf32>
    %7 = arith.maximumf %5, %6 : vector<128x128xf32>
    %8 = arith.truncf %7 : vector<128x128xf32> to vector<128x128xbf16>
    %c0_6 = arith.constant 0 : index
    %c0_7 = arith.constant 0 : index
    %9 = vector.load %arg5[%c0_6, %c0_7] : memref<128x256xbf16, #tpu.memory_space<vmem>>, vector<128x256xbf16>
    %cst_8 = arith.constant dense<0.000000e+00> : vector<128x256xf32>
    %10 = tpu.matmul %8, %9, %cst_8 {dimension_numbers = #tpu.dot_dimension_numbers<[1], [0], [0], [1], [0, 0, 1, 1], [], []>} : vector<128x128xbf16>, vector<128x256xbf16>, vector<128x256xf32> -> vector<128x256xf32>
    %c0_9 = arith.constant 0 : index
    %c0_10 = arith.constant 0 : index
    %11 = vector.load %arg1[%c0_9, %c0_10] : memref<128x8xf32, #tpu.memory_space<vmem>>, vector<128x8xf32>
    %c0_11 = arith.constant 0 : index
    %c0_12 = arith.constant 0 : index
    %12 = vector.load %arg6[%c0_11, %c0_12] : memref<8x256xf32, #tpu.memory_space<vmem>>, vector<8x256xf32>
    %cst_13 = arith.constant dense<0.000000e+00> : vector<128x256xf32>
    %13 = tpu.matmul %11, %12, %cst_13 {dimension_numbers = #tpu.dot_dimension_numbers<[1], [0], [0], [1], [0, 0, 1, 1], [], []>} : vector<128x8xf32>, vector<8x256xf32>, vector<128x256xf32> -> vector<128x256xf32>
    %14 = arith.addf %10, %13 : vector<128x256xf32>
    %c0_14 = arith.constant 0 : index
    %c0_15 = arith.constant 0 : index
    %15 = vector.load %arg7[%c0_14, %c0_15] : memref<1x256xf32, #tpu.memory_space<vmem>>, vector<1x256xf32>
    %16 = vector.broadcast %15 : vector<1x256xf32> to vector<128x256xf32>
    %17 = arith.addf %14, %16 : vector<128x256xf32>
    %18 = vector.extract_strided_slice %17 {offsets = [0, 0], sizes = [128, 128], strides = [1, 1]} : vector<128x256xf32> to vector<128x128xf32>
    %19 = vector.extract_strided_slice %17 {offsets = [0, 128], sizes = [128, 128], strides = [1, 1]} : vector<128x256xf32> to vector<128x128xf32>
    %c0_16 = arith.constant 0 : index
    %c0_17 = arith.constant 0 : index
    %20 = vector.load %arg2[%c0_16, %c0_17] : memref<128x128xbf16, #tpu.memory_space<vmem>>, vector<128x128xbf16>
    %21 = arith.truncf %19 : vector<128x128xf32> to vector<128x128xbf16>
    %cst_18 = arith.constant dense<0.000000e+00> : vector<128x128xf32>
    %22 = tpu.matmul %20, %21, %cst_18 {dimension_numbers = #tpu.dot_dimension_numbers<[1], [0], [0], [1], [0, 0, 1, 1], [], []>} : vector<128x128xbf16>, vector<128x128xbf16>, vector<128x128xf32> -> vector<128x128xf32>
    %23 = arith.addf %18, %22 : vector<128x128xf32>
    %cst_19 = arith.constant 0.000000e+00 : f32
    %24 = vector.broadcast %cst_19 : f32 to vector<128x128xf32>
    %25 = arith.maximumf %23, %24 : vector<128x128xf32>
    %26 = arith.truncf %25 : vector<128x128xf32> to vector<128x128xbf16>
    %c0_i32 = arith.constant 0 : i32
    %27 = arith.index_cast %c0_i32 : i32 to index
    %c0_20 = arith.constant 0 : index
    %c0_21 = arith.constant 0 : index
    %28 = vector.load %arg8[%27, %c0_20, %c0_21] : memref<7x128x256xbf16, #tpu.memory_space<vmem>>, vector<1x128x256xbf16>
    %29 = vector.shape_cast %28 : vector<1x128x256xbf16> to vector<128x256xbf16>
    %cst_22 = arith.constant dense<0.000000e+00> : vector<128x256xf32>
    %30 = tpu.matmul %26, %29, %cst_22 {dimension_numbers = #tpu.dot_dimension_numbers<[1], [0], [0], [1], [0, 0, 1, 1], [], []>} : vector<128x128xbf16>, vector<128x256xbf16>, vector<128x256xf32> -> vector<128x256xf32>
    %31 = arith.index_cast %c0_i32 : i32 to index
    %c0_23 = arith.constant 0 : index
    %c0_24 = arith.constant 0 : index
    %32 = vector.load %arg9[%31, %c0_23, %c0_24] : memref<7x1x256xf32, #tpu.memory_space<vmem>>, vector<1x1x256xf32>
    %33 = vector.shape_cast %32 : vector<1x1x256xf32> to vector<1x256xf32>
    %34 = vector.broadcast %33 : vector<1x256xf32> to vector<128x256xf32>
    %35 = arith.addf %30, %34 : vector<128x256xf32>
    %36 = vector.extract_strided_slice %35 {offsets = [0, 0], sizes = [128, 128], strides = [1, 1]} : vector<128x256xf32> to vector<128x128xf32>
    %37 = vector.extract_strided_slice %35 {offsets = [0, 128], sizes = [128, 128], strides = [1, 1]} : vector<128x256xf32> to vector<128x128xf32>
    %c0_25 = arith.constant 0 : index
    %c0_26 = arith.constant 0 : index
    %38 = vector.load %arg2[%c0_25, %c0_26] : memref<128x128xbf16, #tpu.memory_space<vmem>>, vector<128x128xbf16>
    %39 = arith.truncf %37 : vector<128x128xf32> to vector<128x128xbf16>
    %cst_27 = arith.constant dense<0.000000e+00> : vector<128x128xf32>
    %40 = tpu.matmul %38, %39, %cst_27 {dimension_numbers = #tpu.dot_dimension_numbers<[1], [0], [0], [1], [0, 0, 1, 1], [], []>} : vector<128x128xbf16>, vector<128x128xbf16>, vector<128x128xf32> -> vector<128x128xf32>
    %41 = arith.addf %36, %40 : vector<128x128xf32>
    %cst_28 = arith.constant 0.000000e+00 : f32
    %42 = vector.broadcast %cst_28 : f32 to vector<128x128xf32>
    %43 = arith.maximumf %41, %42 : vector<128x128xf32>
    %44 = arith.truncf %43 : vector<128x128xf32> to vector<128x128xbf16>
    %c1_i32 = arith.constant 1 : i32
    %45 = arith.index_cast %c1_i32 : i32 to index
    %c0_29 = arith.constant 0 : index
    %c0_30 = arith.constant 0 : index
    %46 = vector.load %arg8[%45, %c0_29, %c0_30] : memref<7x128x256xbf16, #tpu.memory_space<vmem>>, vector<1x128x256xbf16>
    %47 = vector.shape_cast %46 : vector<1x128x256xbf16> to vector<128x256xbf16>
    %cst_31 = arith.constant dense<0.000000e+00> : vector<128x256xf32>
    %48 = tpu.matmul %44, %47, %cst_31 {dimension_numbers = #tpu.dot_dimension_numbers<[1], [0], [0], [1], [0, 0, 1, 1], [], []>} : vector<128x128xbf16>, vector<128x256xbf16>, vector<128x256xf32> -> vector<128x256xf32>
    %49 = arith.index_cast %c1_i32 : i32 to index
    %c0_32 = arith.constant 0 : index
    %c0_33 = arith.constant 0 : index
    %50 = vector.load %arg9[%49, %c0_32, %c0_33] : memref<7x1x256xf32, #tpu.memory_space<vmem>>, vector<1x1x256xf32>
    %51 = vector.shape_cast %50 : vector<1x1x256xf32> to vector<1x256xf32>
    %52 = vector.broadcast %51 : vector<1x256xf32> to vector<128x256xf32>
    %53 = arith.addf %48, %52 : vector<128x256xf32>
    %54 = vector.extract_strided_slice %53 {offsets = [0, 0], sizes = [128, 128], strides = [1, 1]} : vector<128x256xf32> to vector<128x128xf32>
    %55 = vector.extract_strided_slice %53 {offsets = [0, 128], sizes = [128, 128], strides = [1, 1]} : vector<128x256xf32> to vector<128x128xf32>
    %c0_34 = arith.constant 0 : index
    %c0_35 = arith.constant 0 : index
    %56 = vector.load %arg2[%c0_34, %c0_35] : memref<128x128xbf16, #tpu.memory_space<vmem>>, vector<128x128xbf16>
    %57 = arith.truncf %55 : vector<128x128xf32> to vector<128x128xbf16>
    %cst_36 = arith.constant dense<0.000000e+00> : vector<128x128xf32>
    %58 = tpu.matmul %56, %57, %cst_36 {dimension_numbers = #tpu.dot_dimension_numbers<[1], [0], [0], [1], [0, 0, 1, 1], [], []>} : vector<128x128xbf16>, vector<128x128xbf16>, vector<128x128xf32> -> vector<128x128xf32>
    %59 = arith.addf %54, %58 : vector<128x128xf32>
    %cst_37 = arith.constant 0.000000e+00 : f32
    %60 = vector.broadcast %cst_37 : f32 to vector<128x128xf32>
    %61 = arith.maximumf %59, %60 : vector<128x128xf32>
    %62 = arith.truncf %61 : vector<128x128xf32> to vector<128x128xbf16>
    %c2_i32 = arith.constant 2 : i32
    %63 = arith.index_cast %c2_i32 : i32 to index
    %c0_38 = arith.constant 0 : index
    %c0_39 = arith.constant 0 : index
    %64 = vector.load %arg8[%63, %c0_38, %c0_39] : memref<7x128x256xbf16, #tpu.memory_space<vmem>>, vector<1x128x256xbf16>
    %65 = vector.shape_cast %64 : vector<1x128x256xbf16> to vector<128x256xbf16>
    %cst_40 = arith.constant dense<0.000000e+00> : vector<128x256xf32>
    %66 = tpu.matmul %62, %65, %cst_40 {dimension_numbers = #tpu.dot_dimension_numbers<[1], [0], [0], [1], [0, 0, 1, 1], [], []>} : vector<128x128xbf16>, vector<128x256xbf16>, vector<128x256xf32> -> vector<128x256xf32>
    %67 = arith.index_cast %c2_i32 : i32 to index
    %c0_41 = arith.constant 0 : index
    %c0_42 = arith.constant 0 : index
    %68 = vector.load %arg9[%67, %c0_41, %c0_42] : memref<7x1x256xf32, #tpu.memory_space<vmem>>, vector<1x1x256xf32>
    %69 = vector.shape_cast %68 : vector<1x1x256xf32> to vector<1x256xf32>
    %70 = vector.broadcast %69 : vector<1x256xf32> to vector<128x256xf32>
    %71 = arith.addf %66, %70 : vector<128x256xf32>
    %72 = vector.extract_strided_slice %71 {offsets = [0, 0], sizes = [128, 128], strides = [1, 1]} : vector<128x256xf32> to vector<128x128xf32>
    %73 = vector.extract_strided_slice %71 {offsets = [0, 128], sizes = [128, 128], strides = [1, 1]} : vector<128x256xf32> to vector<128x128xf32>
    %c0_43 = arith.constant 0 : index
    %c0_44 = arith.constant 0 : index
    %74 = vector.load %arg2[%c0_43, %c0_44] : memref<128x128xbf16, #tpu.memory_space<vmem>>, vector<128x128xbf16>
    %75 = arith.truncf %73 : vector<128x128xf32> to vector<128x128xbf16>
    %cst_45 = arith.constant dense<0.000000e+00> : vector<128x128xf32>
    %76 = tpu.matmul %74, %75, %cst_45 {dimension_numbers = #tpu.dot_dimension_numbers<[1], [0], [0], [1], [0, 0, 1, 1], [], []>} : vector<128x128xbf16>, vector<128x128xbf16>, vector<128x128xf32> -> vector<128x128xf32>
    %77 = arith.addf %72, %76 : vector<128x128xf32>
    %cst_46 = arith.constant 0.000000e+00 : f32
    %78 = vector.broadcast %cst_46 : f32 to vector<128x128xf32>
    %79 = arith.maximumf %77, %78 : vector<128x128xf32>
    %80 = arith.truncf %79 : vector<128x128xf32> to vector<128x128xbf16>
    %c3_i32 = arith.constant 3 : i32
    %81 = arith.index_cast %c3_i32 : i32 to index
    %c0_47 = arith.constant 0 : index
    %c0_48 = arith.constant 0 : index
    %82 = vector.load %arg8[%81, %c0_47, %c0_48] : memref<7x128x256xbf16, #tpu.memory_space<vmem>>, vector<1x128x256xbf16>
    %83 = vector.shape_cast %82 : vector<1x128x256xbf16> to vector<128x256xbf16>
    %cst_49 = arith.constant dense<0.000000e+00> : vector<128x256xf32>
    %84 = tpu.matmul %80, %83, %cst_49 {dimension_numbers = #tpu.dot_dimension_numbers<[1], [0], [0], [1], [0, 0, 1, 1], [], []>} : vector<128x128xbf16>, vector<128x256xbf16>, vector<128x256xf32> -> vector<128x256xf32>
    %85 = arith.index_cast %c3_i32 : i32 to index
    %c0_50 = arith.constant 0 : index
    %c0_51 = arith.constant 0 : index
    %86 = vector.load %arg9[%85, %c0_50, %c0_51] : memref<7x1x256xf32, #tpu.memory_space<vmem>>, vector<1x1x256xf32>
    %87 = vector.shape_cast %86 : vector<1x1x256xf32> to vector<1x256xf32>
    %88 = vector.broadcast %87 : vector<1x256xf32> to vector<128x256xf32>
    %89 = arith.addf %84, %88 : vector<128x256xf32>
    %90 = vector.extract_strided_slice %89 {offsets = [0, 0], sizes = [128, 128], strides = [1, 1]} : vector<128x256xf32> to vector<128x128xf32>
    %91 = vector.extract_strided_slice %89 {offsets = [0, 128], sizes = [128, 128], strides = [1, 1]} : vector<128x256xf32> to vector<128x128xf32>
    %c0_52 = arith.constant 0 : index
    %c0_53 = arith.constant 0 : index
    %92 = vector.load %arg2[%c0_52, %c0_53] : memref<128x128xbf16, #tpu.memory_space<vmem>>, vector<128x128xbf16>
    %93 = arith.truncf %91 : vector<128x128xf32> to vector<128x128xbf16>
    %cst_54 = arith.constant dense<0.000000e+00> : vector<128x128xf32>
    %94 = tpu.matmul %92, %93, %cst_54 {dimension_numbers = #tpu.dot_dimension_numbers<[1], [0], [0], [1], [0, 0, 1, 1], [], []>} : vector<128x128xbf16>, vector<128x128xbf16>, vector<128x128xf32> -> vector<128x128xf32>
    %95 = arith.addf %90, %94 : vector<128x128xf32>
    %cst_55 = arith.constant 0.000000e+00 : f32
    %96 = vector.broadcast %cst_55 : f32 to vector<128x128xf32>
    %97 = arith.maximumf %95, %96 : vector<128x128xf32>
    %98 = arith.truncf %97 : vector<128x128xf32> to vector<128x128xbf16>
    %c4_i32 = arith.constant 4 : i32
    %99 = arith.index_cast %c4_i32 : i32 to index
    %c0_56 = arith.constant 0 : index
    %c0_57 = arith.constant 0 : index
    %100 = vector.load %arg8[%99, %c0_56, %c0_57] : memref<7x128x256xbf16, #tpu.memory_space<vmem>>, vector<1x128x256xbf16>
    %101 = vector.shape_cast %100 : vector<1x128x256xbf16> to vector<128x256xbf16>
    %cst_58 = arith.constant dense<0.000000e+00> : vector<128x256xf32>
    %102 = tpu.matmul %98, %101, %cst_58 {dimension_numbers = #tpu.dot_dimension_numbers<[1], [0], [0], [1], [0, 0, 1, 1], [], []>} : vector<128x128xbf16>, vector<128x256xbf16>, vector<128x256xf32> -> vector<128x256xf32>
    %103 = arith.index_cast %c4_i32 : i32 to index
    %c0_59 = arith.constant 0 : index
    %c0_60 = arith.constant 0 : index
    %104 = vector.load %arg9[%103, %c0_59, %c0_60] : memref<7x1x256xf32, #tpu.memory_space<vmem>>, vector<1x1x256xf32>
    %105 = vector.shape_cast %104 : vector<1x1x256xf32> to vector<1x256xf32>
    %106 = vector.broadcast %105 : vector<1x256xf32> to vector<128x256xf32>
    %107 = arith.addf %102, %106 : vector<128x256xf32>
    %108 = vector.extract_strided_slice %107 {offsets = [0, 0], sizes = [128, 128], strides = [1, 1]} : vector<128x256xf32> to vector<128x128xf32>
    %109 = vector.extract_strided_slice %107 {offsets = [0, 128], sizes = [128, 128], strides = [1, 1]} : vector<128x256xf32> to vector<128x128xf32>
    %c0_61 = arith.constant 0 : index
    %c0_62 = arith.constant 0 : index
    %110 = vector.load %arg2[%c0_61, %c0_62] : memref<128x128xbf16, #tpu.memory_space<vmem>>, vector<128x128xbf16>
    %111 = arith.truncf %109 : vector<128x128xf32> to vector<128x128xbf16>
    %cst_63 = arith.constant dense<0.000000e+00> : vector<128x128xf32>
    %112 = tpu.matmul %110, %111, %cst_63 {dimension_numbers = #tpu.dot_dimension_numbers<[1], [0], [0], [1], [0, 0, 1, 1], [], []>} : vector<128x128xbf16>, vector<128x128xbf16>, vector<128x128xf32> -> vector<128x128xf32>
    %113 = arith.addf %108, %112 : vector<128x128xf32>
    %cst_64 = arith.constant 0.000000e+00 : f32
    %114 = vector.broadcast %cst_64 : f32 to vector<128x128xf32>
    %115 = arith.maximumf %113, %114 : vector<128x128xf32>
    %116 = arith.truncf %115 : vector<128x128xf32> to vector<128x128xbf16>
    %c5_i32 = arith.constant 5 : i32
    %117 = arith.index_cast %c5_i32 : i32 to index
    %c0_65 = arith.constant 0 : index
    %c0_66 = arith.constant 0 : index
    %118 = vector.load %arg8[%117, %c0_65, %c0_66] : memref<7x128x256xbf16, #tpu.memory_space<vmem>>, vector<1x128x256xbf16>
    %119 = vector.shape_cast %118 : vector<1x128x256xbf16> to vector<128x256xbf16>
    %cst_67 = arith.constant dense<0.000000e+00> : vector<128x256xf32>
    %120 = tpu.matmul %116, %119, %cst_67 {dimension_numbers = #tpu.dot_dimension_numbers<[1], [0], [0], [1], [0, 0, 1, 1], [], []>} : vector<128x128xbf16>, vector<128x256xbf16>, vector<128x256xf32> -> vector<128x256xf32>
    %121 = arith.index_cast %c5_i32 : i32 to index
    %c0_68 = arith.constant 0 : index
    %c0_69 = arith.constant 0 : index
    %122 = vector.load %arg9[%121, %c0_68, %c0_69] : memref<7x1x256xf32, #tpu.memory_space<vmem>>, vector<1x1x256xf32>
    %123 = vector.shape_cast %122 : vector<1x1x256xf32> to vector<1x256xf32>
    %124 = vector.broadcast %123 : vector<1x256xf32> to vector<128x256xf32>
    %125 = arith.addf %120, %124 : vector<128x256xf32>
    %126 = vector.extract_strided_slice %125 {offsets = [0, 0], sizes = [128, 128], strides = [1, 1]} : vector<128x256xf32> to vector<128x128xf32>
    %127 = vector.extract_strided_slice %125 {offsets = [0, 128], sizes = [128, 128], strides = [1, 1]} : vector<128x256xf32> to vector<128x128xf32>
    %c0_70 = arith.constant 0 : index
    %c0_71 = arith.constant 0 : index
    %128 = vector.load %arg2[%c0_70, %c0_71] : memref<128x128xbf16, #tpu.memory_space<vmem>>, vector<128x128xbf16>
    %129 = arith.truncf %127 : vector<128x128xf32> to vector<128x128xbf16>
    %cst_72 = arith.constant dense<0.000000e+00> : vector<128x128xf32>
    %130 = tpu.matmul %128, %129, %cst_72 {dimension_numbers = #tpu.dot_dimension_numbers<[1], [0], [0], [1], [0, 0, 1, 1], [], []>} : vector<128x128xbf16>, vector<128x128xbf16>, vector<128x128xf32> -> vector<128x128xf32>
    %131 = arith.addf %126, %130 : vector<128x128xf32>
    %cst_73 = arith.constant 0.000000e+00 : f32
    %132 = vector.broadcast %cst_73 : f32 to vector<128x128xf32>
    %133 = arith.maximumf %131, %132 : vector<128x128xf32>
    %134 = arith.truncf %133 : vector<128x128xf32> to vector<128x128xbf16>
    %c6_i32 = arith.constant 6 : i32
    %135 = arith.index_cast %c6_i32 : i32 to index
    %c0_74 = arith.constant 0 : index
    %c0_75 = arith.constant 0 : index
    %136 = vector.load %arg8[%135, %c0_74, %c0_75] : memref<7x128x256xbf16, #tpu.memory_space<vmem>>, vector<1x128x256xbf16>
    %137 = vector.shape_cast %136 : vector<1x128x256xbf16> to vector<128x256xbf16>
    %cst_76 = arith.constant dense<0.000000e+00> : vector<128x256xf32>
    %138 = tpu.matmul %134, %137, %cst_76 {dimension_numbers = #tpu.dot_dimension_numbers<[1], [0], [0], [1], [0, 0, 1, 1], [], []>} : vector<128x128xbf16>, vector<128x256xbf16>, vector<128x256xf32> -> vector<128x256xf32>
    %139 = arith.index_cast %c6_i32 : i32 to index
    %c0_77 = arith.constant 0 : index
    %c0_78 = arith.constant 0 : index
    %140 = vector.load %arg9[%139, %c0_77, %c0_78] : memref<7x1x256xf32, #tpu.memory_space<vmem>>, vector<1x1x256xf32>
    %141 = vector.shape_cast %140 : vector<1x1x256xf32> to vector<1x256xf32>
    %142 = vector.broadcast %141 : vector<1x256xf32> to vector<128x256xf32>
    %143 = arith.addf %138, %142 : vector<128x256xf32>
    %144 = vector.extract_strided_slice %143 {offsets = [0, 0], sizes = [128, 128], strides = [1, 1]} : vector<128x256xf32> to vector<128x128xf32>
    %145 = vector.extract_strided_slice %143 {offsets = [0, 128], sizes = [128, 128], strides = [1, 1]} : vector<128x256xf32> to vector<128x128xf32>
    %c0_79 = arith.constant 0 : index
    %c0_80 = arith.constant 0 : index
    %146 = vector.load %arg2[%c0_79, %c0_80] : memref<128x128xbf16, #tpu.memory_space<vmem>>, vector<128x128xbf16>
    %147 = arith.truncf %145 : vector<128x128xf32> to vector<128x128xbf16>
    %cst_81 = arith.constant dense<0.000000e+00> : vector<128x128xf32>
    %148 = tpu.matmul %146, %147, %cst_81 {dimension_numbers = #tpu.dot_dimension_numbers<[1], [0], [0], [1], [0, 0, 1, 1], [], []>} : vector<128x128xbf16>, vector<128x128xbf16>, vector<128x128xf32> -> vector<128x128xf32>
    %149 = arith.addf %144, %148 : vector<128x128xf32>
    %cst_82 = arith.constant 0.000000e+00 : f32
    %150 = vector.broadcast %cst_82 : f32 to vector<128x128xf32>
    %151 = arith.maximumf %149, %150 : vector<128x128xf32>
    %152 = arith.truncf %151 : vector<128x128xf32> to vector<128x128xbf16>
    %c7_i32 = arith.constant 7 : i32
    %c0_83 = arith.constant 0 : index
    %c0_84 = arith.constant 0 : index
    %153 = vector.load %arg10[%c0_83, %c0_84] : memref<128x128xbf16, #tpu.memory_space<vmem>>, vector<128x128xbf16>
    %cst_85 = arith.constant dense<0.000000e+00> : vector<128x128xf32>
    %154 = tpu.matmul %152, %153, %cst_85 {dimension_numbers = #tpu.dot_dimension_numbers<[1], [0], [0], [1], [0, 0, 1, 1], [], []>} : vector<128x128xbf16>, vector<128x128xbf16>, vector<128x128xf32> -> vector<128x128xf32>
    %c0_86 = arith.constant 0 : index
    %c0_87 = arith.constant 0 : index
    %155 = vector.load %arg11[%c0_86, %c0_87] : memref<1x128xf32, #tpu.memory_space<vmem>>, vector<1x128xf32>
    %156 = vector.broadcast %155 : vector<1x128xf32> to vector<128x128xf32>
    %157 = arith.addf %154, %156 : vector<128x128xf32>
    %cst_88 = arith.constant 0.000000e+00 : f32
    %158 = vector.broadcast %cst_88 : f32 to vector<128x128xf32>
    %159 = arith.maximumf %157, %158 : vector<128x128xf32>
    %160 = arith.truncf %159 : vector<128x128xf32> to vector<128x128xbf16>
    %c0_89 = arith.constant 0 : index
    %c0_90 = arith.constant 0 : index
    %161 = vector.load %arg12[%c0_89, %c0_90] : memref<128x128xbf16, #tpu.memory_space<vmem>>, vector<128x128xbf16>
    %cst_91 = arith.constant dense<0.000000e+00> : vector<128x128xf32>
    %162 = tpu.matmul %160, %161, %cst_91 {dimension_numbers = #tpu.dot_dimension_numbers<[1], [0], [0], [1], [0, 0, 1, 1], [], []>} : vector<128x128xbf16>, vector<128x128xbf16>, vector<128x128xf32> -> vector<128x128xf32>
    %c0_92 = arith.constant 0 : index
    %c0_93 = arith.constant 0 : index
    %163 = vector.load %arg13[%c0_92, %c0_93] : memref<1x128xf32, #tpu.memory_space<vmem>>, vector<1x128xf32>
    %164 = vector.broadcast %163 : vector<1x128xf32> to vector<128x128xf32>
    %165 = arith.addf %162, %164 : vector<128x128xf32>
    %cst_94 = arith.constant 0.000000e+00 : f32
    %166 = vector.broadcast %cst_94 : f32 to vector<128x128xf32>
    %167 = arith.maximumf %165, %166 : vector<128x128xf32>
    %168 = arith.truncf %167 : vector<128x128xf32> to vector<128x128xbf16>
    %c0_95 = arith.constant 0 : index
    %c0_96 = arith.constant 0 : index
    %169 = vector.load %arg14[%c0_95, %c0_96] : memref<128x128xbf16, #tpu.memory_space<vmem>>, vector<128x128xbf16>
    %cst_97 = arith.constant dense<0.000000e+00> : vector<128x128xf32>
    %170 = tpu.matmul %168, %169, %cst_97 {dimension_numbers = #tpu.dot_dimension_numbers<[1], [0], [0], [1], [0, 0, 1, 1], [], []>} : vector<128x128xbf16>, vector<128x128xbf16>, vector<128x128xf32> -> vector<128x128xf32>
    %c0_98 = arith.constant 0 : index
    %c0_99 = arith.constant 0 : index
    %171 = vector.load %arg15[%c0_98, %c0_99] : memref<1x128xf32, #tpu.memory_space<vmem>>, vector<1x128xf32>
    %172 = vector.broadcast %171 : vector<1x128xf32> to vector<128x128xf32>
    %173 = arith.addf %170, %172 : vector<128x128xf32>
    %174 = arith.negf %173 : vector<128x128xf32>
    %175 = math.exp %174 : vector<128x128xf32>
    %cst_100 = arith.constant 1.000000e+00 : f32
    %176 = vector.broadcast %cst_100 : f32 to vector<128x128xf32>
    %177 = arith.addf %176, %175 : vector<128x128xf32>
    %178 = arith.divf %176, %177 : vector<128x128xf32>
    %179 = tpu.iota {dimensions = array<i32: 1>} : vector<128x128xi32>
    %c3_i32_101 = arith.constant 3 : i32
    %180 = vector.broadcast %c3_i32_101 : i32 to vector<128x128xi32>
    %181 = arith.cmpi slt, %179, %180 : vector<128x128xi32>
    %c3_i32_102 = arith.constant 3 : i32
    %182 = vector.broadcast %c3_i32_102 : i32 to vector<128x128xi32>
    %183 = arith.cmpi eq, %179, %182 : vector<128x128xi32>
    %cst_103 = arith.constant 0.000000e+00 : f32
    %184 = vector.broadcast %cst_103 : f32 to vector<128x128xf32>
    %185 = arith.select %183, %178, %184 : vector<128x128xi1>, vector<128x128xf32>
    %186 = arith.select %181, %157, %185 : vector<128x128xi1>, vector<128x128xf32>
    %c0_104 = arith.constant 0 : index
    %c0_105 = arith.constant 0 : index
    %187 = vector.load %arg16[%c0_104, %c0_105] : memref<128x128xf32, #tpu.memory_space<vmem>>, vector<128x128xf32>
    tpu.vector_store %arg16[%c0_104, %c0_105], %186 {strides = array<i32>} : memref<128x128xf32, #tpu.memory_space<vmem>>, vector<128x128xf32>,
    return
  }
}

</mosaic_0001>

<llo_original>
// kernel: tpu_custom_call.1
$region0: #{tpu_custom_call.1}
  #allocation0 [shape = 'u32[]', space=smem, size = 0x4, offset = 0x4, fixed_abs, tag = 'smem constant byte address 0x4 - core index']
  #allocation1 [shape = 'u32[144,128]{1,0:T(1,128)}', space=vmem, size = 0x12000, scoped, tag = 'internal scratch']
  %s0 = inlined_call_operand.hbm [shape: bf16[128,128], index: 0, kind: input, shape index: {}]
  %s1 = inlined_call_operand.vmem [shape: f32[128,8], index: 1, kind: input, shape index: {}]
  %s2 = inlined_call_operand.hbm [shape: bf16[128,128], index: 2, kind: input, shape index: {}]
  %s3 = inlined_call_operand.hbm [shape: bf16[128,128], index: 3, kind: input, shape index: {}]
  %s4 = inlined_call_operand.hbm [shape: f32[1,128], index: 4, kind: input, shape index: {}]
  %s5 = inlined_call_operand.vmem [shape: bf16[128,256], index: 5, kind: input, shape index: {}]
  %s6 = inlined_call_operand.vmem [shape: f32[8,256], index: 6, kind: input, shape index: {}]
  %s7 = inlined_call_operand.vmem [shape: f32[1,256], index: 7, kind: input, shape index: {}]
  %s8 = inlined_call_operand.hbm [shape: bf16[7,128,256], index: 8, kind: input, shape index: {}]
  %s9 = inlined_call_operand.vmem [shape: f32[7,1,256], index: 9, kind: input, shape index: {}]
  %s10 = inlined_call_operand.hbm [shape: bf16[128,128], index: 10, kind: input, shape index: {}]
  %s11 = inlined_call_operand.vmem [shape: f32[1,128], index: 11, kind: input, shape index: {}]
  %s12 = inlined_call_operand.hbm [shape: bf16[128,128], index: 12, kind: input, shape index: {}]
  %s13 = inlined_call_operand.vmem [shape: f32[1,128], index: 13, kind: input, shape index: {}]
  %s14 = inlined_call_operand.hbm [shape: bf16[128,128], index: 14, kind: input, shape index: {}]
  %s15 = inlined_call_operand.vmem [shape: f32[1,128], index: 15, kind: input, shape index: {}]
  %s16 = inlined_call_operand.hbm [shape: f32[128,128], index: 16, kind: output, shape index: {}]
  %s17 = sld [smem:[#allocation0]]
  $region106: #{tpu_custom_call.1} parent=0
    _
  %s19 = ssub.s32 1, %s17
  %s20 = scalar_select 0, %s19, %s17
  $region1: #{tpu_custom_call.1} parent=0
    #allocation2 [shape = 'u8[32768]{0}', space=vmem, size = 0x8000, scoped, tag = 'input window, operand 0, single buffered']
    #allocation3 [shape = 's32[1]{0}', space=sflag, size = 0x4, scoped, tag = 'scoped memory for tpu_custom_call.1']
    #allocation4 [shape = 's32[1]{0}', space=sflag, size = 0x4, scoped, tag = 'scoped memory for tpu_custom_call.1']
    #allocation5 [shape = 'u8[32768]{0}', space=vmem, size = 0x8000, scoped, tag = 'input window, operand 2, single buffered']
    #allocation6 [shape = 's32[1]{0}', space=sflag, size = 0x4, scoped, tag = 'scoped memory for tpu_custom_call.1']
    #allocation7 [shape = 'u8[32768]{0}', space=vmem, size = 0x8000, scoped, tag = 'input window, operand 3, single buffered']
    #allocation8 [shape = 'u8[512]{0}', space=vmem, size = 0x400, scoped, tag = 'input window, operand 4, single buffered']
    #allocation9 [shape = 's32[1]{0}', space=sflag, size = 0x4, scoped, tag = 'scoped memory for tpu_custom_call.1']
    #allocation10 [shape = 'u8[458752]{0}', space=vmem, size = 0x70000, scoped, tag = 'input window, operand 8, single buffered']
    #allocation11 [shape = 'u8[32768]{0}', space=vmem, size = 0x8000, scoped, tag = 'input window, operand 10, single buffered']
    #allocation12 [shape = 's32[1]{0}', space=sflag, size = 0x4, scoped, tag = 'scoped memory for tpu_custom_call.1']
    #allocation13 [shape = 'u8[32768]{0}', space=vmem, size = 0x8000, scoped, tag = 'input window, operand 12, single buffered']
    #allocation14 [shape = 'u8[32768]{0}', space=vmem, size = 0x8000, scoped, tag = 'input window, operand 14, single buffered']
    #allocation15 [shape = 's32[1]{0}', space=sflag, size = 0x4, scoped, tag = 'scoped memory for tpu_custom_call.1']
    #allocation16 [shape = 'u8[65536]{0}', space=vmem, size = 0x10000, scoped, tag = 'output window, operand 0, single buffered']
    %21 = vsyncpa [#allocation3], 0
    %22 = vsyncpa [#allocation6], 0
    %23 = vsyncpa [#allocation9], 0
    %24 = vsyncpa [#allocation12], 0
    %25 = vsyncpa [#allocation15], 0
    %26 = vsyncpa [#allocation4], 0
    // Predicated region
    $region2: #{tpu_custom_call.1} parent=1 // pred_check
      _
    $region3: #{tpu_custom_call.1} parent=1 // pred_check_branch
      %28 = sbr.rel (0) target = $region5
    $region4: #{tpu_custom_call.1} parent=1 // pred_region
      %s30 = ssub.s32 1024, 1024
      %31 = vsyncadd [#allocation3], %s30
      %s32 = sshll.u32 [#allocation2], 4
      %s33 = int_to_ptr.vmem [resolvable:$true] %s32
      %38 = dma.hbm_to_vmem [thread:$0]  %s0, 1024, %s33, [#allocation3], 64, 64, 4
    $region5: #{tpu_custom_call.1} parent=1 // pred_fallthru
      _
    // Predicated region
    $region6: #{tpu_custom_call.1} parent=1 // pred_check
      _
    $region7: #{tpu_custom_call.1} parent=1 // pred_check_branch
      %40 = sbr.rel (0) target = $region9
    $region8: #{tpu_custom_call.1} parent=1 // pred_region
      _
    $region9: #{tpu_custom_call.1} parent=1 // pred_fallthru
      _
    // Predicated region
    $region10: #{tpu_custom_call.1} parent=1 // pred_check
      _
    $region11: #{tpu_custom_call.1} parent=1 // pred_check_branch
      %42 = sbr.rel (0) target = $region13
    $region12: #{tpu_custom_call.1} parent=1 // pred_region
      %s44 = ssub.s32 1024, 1024
      %45 = vsyncadd [#allocation6], %s44
      %s46 = sshll.u32 [#allocation5], 4
      %s47 = int_to_ptr.vmem [resolvable:$true] %s46
      %52 = dma.hbm_to_vmem [thread:$0]  %s2, 1024, %s47, [#allocation6], 64, 64, 4
    $region13: #{tpu_custom_call.1} parent=1 // pred_fallthru
      _
    // Predicated region
    $region14: #{tpu_custom_call.1} parent=1 // pred_check
      _
    $region15: #{tpu_custom_call.1} parent=1 // pred_check_branch
      %54 = sbr.rel (0) target = $region17
    $region16: #{tpu_custom_call.1} parent=1 // pred_region
      %s56 = ssub.s32 1024, 1024
      %57 = vsyncadd [#allocation6], %s56
      %s58 = sshll.u32 [#allocation7], 4
      %s59 = int_to_ptr.vmem [resolvable:$true] %s58
      %64 = dma.hbm_to_vmem [thread:$0]  %s3, 1024, %s59, [#allocation6], 64, 64, 4
    $region17: #{tpu_custom_call.1} parent=1 // pred_fallthru
      _
    // Predicated region
    $region18: #{tpu_custom_call.1} parent=1 // pred_check
      _
    $region19: #{tpu_custom_call.1} parent=1 // pred_check_branch
      %66 = sbr.rel (0) target = $region21
    $region20: #{tpu_custom_call.1} parent=1 // pred_region
      %s68 = ssub.s32 16, 16
      %69 = vsyncadd [#allocation9], %s68
      %s71 = sshll.u32 [#allocation8], 4
      %s72 = int_to_ptr.vmem [resolvable:$true] %s71
      %74 = dma.hbm_to_vmem [thread:$0]  %s4, 16, %s72, [#allocation9]
    $region21: #{tpu_custom_call.1} parent=1 // pred_fallthru
      _
    // Predicated region
    $region22: #{tpu_custom_call.1} parent=1 // pred_check
      _
    $region23: #{tpu_custom_call.1} parent=1 // pred_check_branch
      %76 = sbr.rel (0) target = $region25
    $region24: #{tpu_custom_call.1} parent=1 // pred_region
      _
    $region25: #{tpu_custom_call.1} parent=1 // pred_fallthru
      _
    // Predicated region
    $region26: #{tpu_custom_call.1} parent=1 // pred_check
      _
    $region27: #{tpu_custom_call.1} parent=1 // pred_check_branch
      %78 = sbr.rel (0) target = $region29
    $region28: #{tpu_custom_call.1} parent=1 // pred_region
      _
    $region29: #{tpu_custom_call.1} parent=1 // pred_fallthru
      _
    // Predicated region
    $region30: #{tpu_custom_call.1} parent=1 // pred_check
      _
    $region31: #{tpu_custom_call.1} parent=1 // pred_check_branch
      %80 = sbr.rel (0) target = $region33
    $region32: #{tpu_custom_call.1} parent=1 // pred_region
      _
    $region33: #{tpu_custom_call.1} parent=1 // pred_fallthru
      _
    // Predicated region
    $region34: #{tpu_custom_call.1} parent=1 // pred_check
      _
    $region35: #{tpu_custom_call.1} parent=1 // pred_check_branch
      %82 = sbr.rel (0) target = $region37
    $region36: #{tpu_custom_call.1} parent=1 // pred_region
      %s84 = ssub.s32 14336, 14336
      %85 = vsyncadd [#allocation9], %s84
      %s86 = sshll.u32 [#allocation10], 4
      %s87 = int_to_ptr.vmem [resolvable:$true] %s86
      %92 = dma.hbm_to_vmem [thread:$0]  %s8, 14336, %s87, [#allocation9], 128, 128, 8
    $region37: #{tpu_custom_call.1} parent=1 // pred_fallthru
      _
    // Predicated region
    $region38: #{tpu_custom_call.1} parent=1 // pred_check
      _
    $region39: #{tpu_custom_call.1} parent=1 // pred_check_branch
      %94 = sbr.rel (0) target = $region41
    $region40: #{tpu_custom_call.1} parent=1 // pred_region
      _
    $region41: #{tpu_custom_call.1} parent=1 // pred_fallthru
      _
    // Predicated region
    $region42: #{tpu_custom_call.1} parent=1 // pred_check
      _
    $region43: #{tpu_custom_call.1} parent=1 // pred_check_branch
      %96 = sbr.rel (0) target = $region45
    $region44: #{tpu_custom_call.1} parent=1 // pred_region
      %s98 = ssub.s32 1024, 1024
      %99 = vsyncadd [#allocation12], %s98
      %s100 = sshll.u32 [#allocation11], 4
      %s101 = int_to_ptr.vmem [resolvable:$true] %s100
      %106 = dma.hbm_to_vmem [thread:$0]  %s10, 1024, %s101, [#allocation12], 64, 64, 4
    $region45: #{tpu_custom_call.1} parent=1 // pred_fallthru
      _
    // Predicated region
    $region46: #{tpu_custom_call.1} parent=1 // pred_check
      _
    $region47: #{tpu_custom_call.1} parent=1 // pred_check_branch
      %108 = sbr.rel (0) target = $region49
    $region48: #{tpu_custom_call.1} parent=1 // pred_region
      _
    $region49: #{tpu_custom_call.1} parent=1 // pred_fallthru
      _
    // Predicated region
    $region50: #{tpu_custom_call.1} parent=1 // pred_check
      _
    $region51: #{tpu_custom_call.1} parent=1 // pred_check_branch
      %110 = sbr.rel (0) target = $region53
    $region52: #{tpu_custom_call.1} parent=1 // pred_region
      %s112 = ssub.s32 1024, 1024
      %113 = vsyncadd [#allocation12], %s112
      %s114 = sshll.u32 [#allocation13], 4
      %s115 = int_to_ptr.vmem [resolvable:$true] %s114
      %120 = dma.hbm_to_vmem [thread:$0]  %s12, 1024, %s115, [#allocation12], 64, 64, 4
    $region53: #{tpu_custom_call.1} parent=1 // pred_fallthru
      _
    // Predicated region
    $region54: #{tpu_custom_call.1} parent=1 // pred_check
      _
    $region55: #{tpu_custom_call.1} parent=1 // pred_check_branch
      %122 = sbr.rel (0) target = $region57
    $region56: #{tpu_custom_call.1} parent=1 // pred_region
      _
    $region57: #{tpu_custom_call.1} parent=1 // pred_fallthru
      _
    // Predicated region
    $region58: #{tpu_custom_call.1} parent=1 // pred_check
      _
    $region59: #{tpu_custom_call.1} parent=1 // pred_check_branch
      %124 = sbr.rel (0) target = $region61
    $region60: #{tpu_custom_call.1} parent=1 // pred_region
      %s126 = ssub.s32 1024, 1024
      %127 = vsyncadd [#allocation15], %s126
      %s128 = sshll.u32 [#allocation14], 4
      %s129 = int_to_ptr.vmem [resolvable:$true] %s128
      %134 = dma.hbm_to_vmem [thread:$0]  %s14, 1024, %s129, [#allocation15], 64, 64, 4
    $region61: #{tpu_custom_call.1} parent=1 // pred_fallthru
      _
    // Predicated region
    $region62: #{tpu_custom_call.1} parent=1 // pred_check
      _
    $region63: #{tpu_custom_call.1} parent=1 // pred_check_branch
      %136 = sbr.rel (0) target = $region65
    $region64: #{tpu_custom_call.1} parent=1 // pred_region
      _
    $region65: #{tpu_custom_call.1} parent=1 // pred_fallthru
      _
    // Predicated region
    $region66: #{tpu_custom_call.1} parent=1 // pred_check
      _
    $region67: #{tpu_custom_call.1} parent=1 // pred_check_branch
      %138 = sbr.rel (0) target = $region69
    $region68: #{tpu_custom_call.1} parent=1 // pred_region
      %139 = dma.done [#allocation3], 1024
    $region69: #{tpu_custom_call.1} parent=1 // pred_fallthru
      _
    // Predicated region
    $region70: #{tpu_custom_call.1} parent=1 // pred_check
      _
    $region71: #{tpu_custom_call.1} parent=1 // pred_check_branch
      %141 = sbr.rel (0) target = $region73
    $region72: #{tpu_custom_call.1} parent=1 // pred_region
      %142 = dma.done [#allocation6], 1024
    $region73: #{tpu_custom_call.1} parent=1 // pred_fallthru
      _
    // Predicated region
    $region74: #{tpu_custom_call.1} parent=1 // pred_check
      _
    $region75: #{tpu_custom_call.1} parent=1 // pred_check_branch
      %144 = sbr.rel (0) target = $region77
    $region76: #{tpu_custom_call.1} parent=1 // pred_region
      %145 = dma.done [#allocation6], 1024
    $region77: #{tpu_custom_call.1} parent=1 // pred_fallthru
      _
    // Predicated region
    $region78: #{tpu_custom_call.1} parent=1 // pred_check
      _
    $region79: #{tpu_custom_call.1} parent=1 // pred_check_branch
      %147 = sbr.rel (0) target = $region81
    $region80: #{tpu_custom_call.1} parent=1 // pred_region
      %148 = dma.done [#allocation9], 16
    $region81: #{tpu_custom_call.1} parent=1 // pred_fallthru
      _
    // Predicated region
    $region82: #{tpu_custom_call.1} parent=1 // pred_check
      _
    $region83: #{tpu_custom_call.1} parent=1 // pred_check_branch
      %150 = sbr.rel (0) target = $region85
    $region84: #{tpu_custom_call.1} parent=1 // pred_region
      %151 = dma.done [#allocation9], 14336
    $region85: #{tpu_custom_call.1} parent=1 // pred_fallthru
      _
    // Predicated region
    $region86: #{tpu_custom_call.1} parent=1 // pred_check
      _
    $region87: #{tpu_custom_call.1} parent=1 // pred_check_branch
      %153 = sbr.rel (0) target = $region89
    $region88: #{tpu_custom_call.1} parent=1 // pred_region
      %154 = dma.done [#allocation12], 1024
    $region89: #{tpu_custom_call.1} parent=1 // pred_fallthru
      _
    // Predicated region
    $region90: #{tpu_custom_call.1} parent=1 // pred_check
      _
    $region91: #{tpu_custom_call.1} parent=1 // pred_check_branch
      %156 = sbr.rel (0) target = $region93
    $region92: #{tpu_custom_call.1} parent=1 // pred_region
      %157 = dma.done [#allocation12], 1024
    $region93: #{tpu_custom_call.1} parent=1 // pred_fallthru
      _
    // Predicated region
    $region94: #{tpu_custom_call.1} parent=1 // pred_check
      _
    $region95: #{tpu_custom_call.1} parent=1 // pred_check_branch
      %159 = sbr.rel (0) target = $region97
    $region96: #{tpu_custom_call.1} parent=1 // pred_region
      %160 = dma.done [#allocation15], 1024
    $region97: #{tpu_custom_call.1} parent=1 // pred_fallthru
      _
    %v162 = vld [vmem:[#allocation2] sm:$0xf]
    %v163 = vld [vmem:[#allocation2 + $0x4] sm:$0xf]
    %v164 = vld [vmem:[#allocation2 + $0x8] sm:$0xf]
    %v165 = vld [vmem:[#allocation2 + $0xc] sm:$0xf]
    %v166 = vld [vmem:[#allocation2 + $0x10] sm:$0xf]
    %v167 = vld [vmem:[#allocation2 + $0x14] sm:$0xf]
    %v168 = vld [vmem:[#allocation2 + $0x18] sm:$0xf]
    %v169 = vld [vmem:[#allocation2 + $0x1c] sm:$0xf]
    %v170 = vld [vmem:[#allocation2 + $0x20] sm:$0xf]
    %v171 = vld [vmem:[#allocation2 + $0x24] sm:$0xf]
    %v172 = vld [vmem:[#allocation2 + $0x28] sm:$0xf]
    %v173 = vld [vmem:[#allocation2 + $0x2c] sm:$0xf]
    %v174 = vld [vmem:[#allocation2 + $0x30] sm:$0xf]
    %v175 = vld [vmem:[#allocation2 + $0x34] sm:$0xf]
    %v176 = vld [vmem:[#allocation2 + $0x38] sm:$0xf]
    %v177 = vld [vmem:[#allocation2 + $0x3c] sm:$0xf]
    %v178 = vld [vmem:[#allocation7] sm:$0xf]
    %v179 = vld [vmem:[#allocation7 + $0x4] sm:$0xf]
    %v180 = vld [vmem:[#allocation7 + $0x8] sm:$0xf]
    %v181 = vld [vmem:[#allocation7 + $0xc] sm:$0xf]
    %v182 = vld [vmem:[#allocation7 + $0x10] sm:$0xf]
    %v183 = vld [vmem:[#allocation7 + $0x14] sm:$0xf]
    %v184 = vld [vmem:[#allocation7 + $0x18] sm:$0xf]
    %v185 = vld [vmem:[#allocation7 + $0x1c] sm:$0xf]
    %v186 = vld [vmem:[#allocation7 + $0x20] sm:$0xf]
    %v187 = vld [vmem:[#allocation7 + $0x24] sm:$0xf]
    %v188 = vld [vmem:[#allocation7 + $0x28] sm:$0xf]
    %v189 = vld [vmem:[#allocation7 + $0x2c] sm:$0xf]
    %v190 = vld [vmem:[#allocation7 + $0x30] sm:$0xf]
    %v191 = vld [vmem:[#allocation7 + $0x34] sm:$0xf]
    %v192 = vld [vmem:[#allocation7 + $0x38] sm:$0xf]
    %v193 = vld [vmem:[#allocation7 + $0x3c] sm:$0xf]
    %v194 = vld [vmem:[#allocation8] sm:$0x1]
    %v196 = vlaneseq
    %v197 = vshrl.u32 %v196, 7
    %v198 = vsub.s32 0, %v197
    %v199 = vrot.slane %v194, %v198
    %v217 = vunpack.c.l.b16 %v162
    %v218 = vunpack.c.l.b16 %v163
    %v219 = vunpack.c.l.b16 %v164
    %v220 = vunpack.c.l.b16 %v165
    %v221 = vunpack.c.l.b16 %v166
    %v222 = vunpack.c.l.b16 %v167
    %v223 = vunpack.c.l.b16 %v168
    %v224 = vunpack.c.l.b16 %v169
    %v225 = vunpack.c.l.b16 %v170
    %v226 = vunpack.c.l.b16 %v171
    %v227 = vunpack.c.l.b16 %v172
    %v228 = vunpack.c.l.b16 %v173
    %v229 = vunpack.c.l.b16 %v174
    %v230 = vunpack.c.l.b16 %v175
    %v231 = vunpack.c.l.b16 %v176
    %v232 = vunpack.c.l.b16 %v177
    %v233 = vpack.c.b16 %v218, %v217
    %v234 = vpack.c.b16 %v220, %v219
    %v235 = vpack.c.b16 %v222, %v221
    %v236 = vpack.c.b16 %v224, %v223
    %v237 = vpack.c.b16 %v226, %v225
    %v238 = vpack.c.b16 %v228, %v227
    %v239 = vpack.c.b16 %v230, %v229
    %v240 = vpack.c.b16 %v232, %v231
    %v265 = vunpack.c.l.b16 %v178
    %v266 = vunpack.c.l.b16 %v179
    %v267 = vunpack.c.l.b16 %v180
    %v268 = vunpack.c.l.b16 %v181
    %v269 = vunpack.c.l.b16 %v182
    %v270 = vunpack.c.l.b16 %v183
    %v271 = vunpack.c.l.b16 %v184
    %v272 = vunpack.c.l.b16 %v185
    %v273 = vunpack.c.l.b16 %v186
    %v274 = vunpack.c.l.b16 %v187
    %v275 = vunpack.c.l.b16 %v188
    %v276 = vunpack.c.l.b16 %v189
    %v277 = vunpack.c.l.b16 %v190
    %v278 = vunpack.c.l.b16 %v191
    %v279 = vunpack.c.l.b16 %v192
    %v280 = vunpack.c.l.b16 %v193
    %v281 = vpack.c.b16 %v266, %v265
    %v282 = vpack.c.b16 %v268, %v267
    %v283 = vpack.c.b16 %v270, %v269
    %v284 = vpack.c.b16 %v272, %v271
    %v285 = vpack.c.b16 %v274, %v273
    %v286 = vpack.c.b16 %v276, %v275
    %v287 = vpack.c.b16 %v278, %v277
    %v288 = vpack.c.b16 %v280, %v279
    %297 = vmatprep.subr.bf16.mxu0 0
    %298 = vmatpush1.bf16.msra.mxu0 %v281
    %299 = vmatprep.subr.bf16.mxu0 0
    %300 = vmatpush1.bf16.msra.mxu0 %v282
    %301 = vmatprep.subr.bf16.mxu0 0
    %302 = vmatpush1.bf16.msra.mxu0 %v283
    %303 = vmatprep.subr.bf16.mxu0 0
    %304 = vmatpush1.bf16.msra.mxu0 %v284
    %305 = vmatprep.subr.bf16.mxu0 0
    %306 = vmatpush1.bf16.msra.mxu0 %v285
    %307 = vmatprep.subr.bf16.mxu0 0
    %308 = vmatpush1.bf16.msra.mxu0 %v286
    %309 = vmatprep.subr.bf16.mxu0 0
    %310 = vmatpush1.bf16.msra.mxu0 %v287
    %311 = vmatprep.subr.bf16.mxu0 0
    %312 = vmatpush1.bf16.msra.mxu0 %v288
    %313 = vmatprep.subr.bf16.mxu0 0
    %314 = vmatpush1.bf16.msra.mxu0 0
    %315 = vmatprep.subr.bf16.mxu0 0
    %316 = vmatpush1.bf16.msra.mxu0 0
    %317 = vmatprep.subr.bf16.mxu0 0
    %318 = vmatpush1.bf16.msra.mxu0 0
    %319 = vmatprep.subr.bf16.mxu0 0
    %320 = vmatpush1.bf16.msra.mxu0 0
    %321 = vmatprep.subr.bf16.mxu0 0
    %322 = vmatpush1.bf16.msra.mxu0 0
    %323 = vmatprep.subr.bf16.mxu0 0
    %324 = vmatpush1.bf16.msra.mxu0 0
    %325 = vmatprep.subr.bf16.mxu0 0
    %326 = vmatpush1.bf16.msra.mxu0 0
    %327 = vmatprep.subr.bf16.mxu0 0
    %328 = vmatpush1.bf16.msra.mxu0 0
    %329 = vmatprep.mubr.bf16.mxu0 0
    %330 = vmatmul.mubr.bf16.gmra.mrb[0].mxu0 %v233
    %v331 = vpop.f32.mrb[0].mxu0
    %v332 = vadd.f32 %v199, %v331
    %v333 = vpop.f32.mrb[0].mxu0
    %v334 = vpop.f32.mrb[0].mxu0
    %v335 = vadd.f32 %v199, %v334
    %v336 = vpop.f32.mrb[0].mxu0
    %337 = vmatprep.mubr.bf16.mxu0 0
    %338 = vmatmul.mubr.bf16.gmra.mrb[0].mxu0 %v234
    %v339 = vpop.f32.mrb[0].mxu0
    %v340 = vadd.f32 %v199, %v339
    %v341 = vpop.f32.mrb[0].mxu0
    %v342 = vpop.f32.mrb[0].mxu0
    %v343 = vadd.f32 %v199, %v342
    %v344 = vpop.f32.mrb[0].mxu0
    %345 = vmatprep.mubr.bf16.mxu0 0
    %346 = vmatmul.mubr.bf16.gmra.mrb[0].mxu0 %v235
    %v347 = vpop.f32.mrb[0].mxu0
    %v348 = vadd.f32 %v199, %v347
    %v349 = vpop.f32.mrb[0].mxu0
    %v350 = vpop.f32.mrb[0].mxu0
    %v351 = vadd.f32 %v199, %v350
    %v352 = vpop.f32.mrb[0].mxu0
    %353 = vmatprep.mubr.bf16.mxu0 0
    %354 = vmatmul.mubr.bf16.gmra.mrb[0].mxu0 %v236
    %v355 = vpop.f32.mrb[0].mxu0
    %v356 = vadd.f32 %v199, %v355
    %v357 = vpop.f32.mrb[0].mxu0
    %v358 = vpop.f32.mrb[0].mxu0
    %v359 = vadd.f32 %v199, %v358
    %v360 = vpop.f32.mrb[0].mxu0
    %361 = vmatprep.mubr.bf16.mxu0 0
    %362 = vmatmul.mubr.bf16.gmra.mrb[0].mxu0 %v237
    %v363 = vpop.f32.mrb[0].mxu0
    %v364 = vadd.f32 %v199, %v363
    %v365 = vpop.f32.mrb[0].mxu0
    %v366 = vpop.f32.mrb[0].mxu0
    %v367 = vadd.f32 %v199, %v366
    %v368 = vpop.f32.mrb[0].mxu0
    %369 = vmatprep.mubr.bf16.mxu0 0
    %370 = vmatmul.mubr.bf16.gmra.mrb[0].mxu0 %v238
    %v371 = vpop.f32.mrb[0].mxu0
    %v372 = vadd.f32 %v199, %v371
    %v373 = vpop.f32.mrb[0].mxu0
    %v374 = vpop.f32.mrb[0].mxu0
    %v375 = vadd.f32 %v199, %v374
    %v376 = vpop.f32.mrb[0].mxu0
    %377 = vmatprep.mubr.bf16.mxu0 0
    %378 = vmatmul.mubr.bf16.gmra.mrb[0].mxu0 %v239
    %v379 = vpop.f32.mrb[0].mxu0
    %v380 = vadd.f32 %v199, %v379
    %v381 = vpop.f32.mrb[0].mxu0
    %v382 = vpop.f32.mrb[0].mxu0
    %v383 = vadd.f32 %v199, %v382
    %v384 = vpop.f32.mrb[0].mxu0
    %385 = vmatprep.mubr.bf16.mxu0 0
    %386 = vmatmul.mubr.bf16.gmra.mrb[0].mxu0 %v240
    %v387 = vpop.f32.mrb[0].mxu0
    %v388 = vadd.f32 %v199, %v387
    %v389 = vpop.f32.mrb[0].mxu0
    %v390 = vpop.f32.mrb[0].mxu0
    %v391 = vadd.f32 %v199, %v390
    %v392 = vpop.f32.mrb[0].mxu0
    %393 = vdwg.mxu0
    %v394 = vmax.f32 %v332, 0.0
    %v395 = vmax.f32 %v335, 0.0
    %v396 = vmax.f32 %v340, 0.0
    %v397 = vmax.f32 %v343, 0.0
    %v398 = vmax.f32 %v348, 0.0
    %v399 = vmax.f32 %v351, 0.0
    %v400 = vmax.f32 %v356, 0.0
    %v401 = vmax.f32 %v359, 0.0
    %v402 = vmax.f32 %v364, 0.0
    %v403 = vmax.f32 %v367, 0.0
    %v404 = vmax.f32 %v372, 0.0
    %v405 = vmax.f32 %v375, 0.0
    %v406 = vmax.f32 %v380, 0.0
    %v407 = vmax.f32 %v383, 0.0
    %v408 = vmax.f32 %v388, 0.0
    %v409 = vmax.f32 %v391, 0.0
    %v410 = vpack.c.bf16 %v395, %v394
    %v411 = vpack.c.bf16 %v397, %v396
    %v412 = vpack.c.bf16 %v399, %v398
    %v413 = vpack.c.bf16 %v401, %v400
    %v414 = vpack.c.bf16 %v403, %v402
    %v415 = vpack.c.bf16 %v405, %v404
    %v416 = vpack.c.bf16 %v407, %v406
    %v417 = vpack.c.bf16 %v409, %v408
    %v418 = vld [vmem:[%s5] sm:$0xff]
    %v419 = vld [vmem:[%s5 + $0x8] sm:$0xff]
    %v420 = vld [vmem:[%s5 + $0x10] sm:$0xff]
    %v421 = vld [vmem:[%s5 + $0x18] sm:$0xff]
    %v422 = vld [vmem:[%s5 + $0x20] sm:$0xff]
    %v423 = vld [vmem:[%s5 + $0x28] sm:$0xff]
    %v424 = vld [vmem:[%s5 + $0x30] sm:$0xff]
    %v425 = vld [vmem:[%s5 + $0x38] sm:$0xff]
    %v426 = vld [vmem:[%s5 + $0x40] sm:$0xff]
    %v427 = vld [vmem:[%s5 + $0x48] sm:$0xff]
    %v428 = vld [vmem:[%s5 + $0x50] sm:$0xff]
    %v429 = vld [vmem:[%s5 + $0x58] sm:$0xff]
    %v430 = vld [vmem:[%s5 + $0x60] sm:$0xff]
    %v431 = vld [vmem:[%s5 + $0x68] sm:$0xff]
    %v432 = vld [vmem:[%s5 + $0x70] sm:$0xff]
    %v433 = vld [vmem:[%s5 + $0x78] sm:$0xff]
    %v434 = vld [vmem:[%s1] sm:$0xff]
    %v435 = vld [vmem:[%s1 + $0x8] sm:$0xff]
    %v436 = vld [vmem:[%s1 + $0x10] sm:$0xff]
    %v437 = vld [vmem:[%s1 + $0x18] sm:$0xff]
    %v438 = vld [vmem:[%s1 + $0x20] sm:$0xff]
    %v439 = vld [vmem:[%s1 + $0x28] sm:$0xff]
    %v440 = vld [vmem:[%s1 + $0x30] sm:$0xff]
    %v441 = vld [vmem:[%s1 + $0x38] sm:$0xff]
    %v442 = vld [vmem:[%s1 + $0x40] sm:$0xff]
    %v443 = vld [vmem:[%s1 + $0x48] sm:$0xff]
    %v444 = vld [vmem:[%s1 + $0x50] sm:$0xff]
    %v445 = vld [vmem:[%s1 + $0x58] sm:$0xff]
    %v446 = vld [vmem:[%s1 + $0x60] sm:$0xff]
    %v447 = vld [vmem:[%s1 + $0x68] sm:$0xff]
    %v448 = vld [vmem:[%s1 + $0x70] sm:$0xff]
    %v449 = vld [vmem:[%s1 + $0x78] sm:$0xff]
    %v450 = vld [vmem:[%s6] sm:$0xff]
    %v451 = vld [vmem:[%s6 + $0x8] sm:$0xff]
    %vm452 = vcmask 64512
    %v454 = vsel %vm452, %v434, 0
    %v457 = vsel %vm452, %v435, 0
    %v460 = vsel %vm452, %v436, 0
    %v463 = vsel %vm452, %v437, 0
    %v466 = vsel %vm452, %v438, 0
    %v469 = vsel %vm452, %v439, 0
    %v472 = vsel %vm452, %v440, 0
    %v475 = vsel %vm452, %v441, 0
    %v478 = vsel %vm452, %v442, 0
    %v481 = vsel %vm452, %v443, 0
    %v484 = vsel %vm452, %v444, 0
    %v487 = vsel %vm452, %v445, 0
    %v490 = vsel %vm452, %v446, 0
    %v493 = vsel %vm452, %v447, 0
    %v496 = vsel %vm452, %v448, 0
    %v499 = vsel %vm452, %v449, 0
    %501 = vmatprep.subr.mxu0 %v451
    %502 = vmatpush1.msra.mxu0 %v450
    %503 = vmatprep.subr.mxu0 0.0
    %504 = vmatpush1.msra.mxu0 0.0
    %505 = vmatprep.subr.mxu0 0.0
    %506 = vmatpush1.msra.mxu0 0.0
    %507 = vmatprep.subr.mxu0 0.0
    %508 = vmatpush1.msra.mxu0 0.0
    %509 = vmatprep.subr.mxu0 0.0
    %510 = vmatpush1.msra.mxu0 0.0
    %511 = vmatprep.subr.mxu0 0.0
    %512 = vmatpush1.msra.mxu0 0.0
    %513 = vmatprep.subr.mxu0 0.0
    %514 = vmatpush1.msra.mxu0 0.0
    %515 = vmatprep.subr.mxu0 0.0
    %516 = vmatpush1.msra.mxu0 0.0
    %517 = vmatprep.subr.mxu0 0.0
    %518 = vmatpush1.msra.mxu0 0.0
    %519 = vmatprep.subr.mxu0 0.0
    %520 = vmatpush1.msra.mxu0 0.0
    %521 = vmatprep.subr.mxu0 0.0
    %522 = vmatpush1.msra.mxu0 0.0
    %523 = vmatprep.subr.mxu0 0.0
    %524 = vmatpush1.msra.mxu0 0.0
    %525 = vmatprep.subr.mxu0 0.0
    %526 = vmatpush1.msra.mxu0 0.0
    %527 = vmatprep.subr.mxu0 0.0
    %528 = vmatpush1.msra.mxu0 0.0
    %529 = vmatprep.subr.mxu0 0.0
    %530 = vmatpush1.msra.mxu0 0.0
    %531 = vmatprep.subr.mxu0 0.0
    %532 = vmatpush1.msra.mxu0 0.0
    %533 = vmatprep.subr.mxu0 0.0
    %534 = vmatpush1.msra.mxu0 0.0
    %535 = vmatprep.subr.mxu0 0.0
    %536 = vmatpush1.msra.mxu0 0.0
    %537 = vmatprep.subr.mxu0 0.0
    %538 = vmatpush1.msra.mxu0 0.0
    %539 = vmatprep.subr.mxu0 0.0
    %540 = vmatpush1.msra.mxu0 0.0
    %541 = vmatprep.subr.mxu0 0.0
    %542 = vmatpush1.msra.mxu0 0.0
    %543 = vmatprep.subr.mxu0 0.0
    %544 = vmatpush1.msra.mxu0 0.0
    %545 = vmatprep.subr.mxu0 0.0
    %546 = vmatpush1.msra.mxu0 0.0
    %547 = vmatprep.subr.mxu0 0.0
    %548 = vmatpush1.msra.mxu0 0.0
    %549 = vmatprep.subr.mxu0 0.0
    %550 = vmatpush1.msra.mxu0 0.0
    %551 = vmatprep.subr.mxu0 0.0
    %552 = vmatpush1.msra.mxu0 0.0
    %553 = vmatprep.subr.mxu0 0.0
    %554 = vmatpush1.msra.mxu0 0.0
    %555 = vmatprep.subr.mxu0 0.0
    %556 = vmatpush1.msra.mxu0 0.0
    %557 = vmatprep.subr.mxu0 0.0
    %558 = vmatpush1.msra.mxu0 0.0
    %559 = vmatprep.subr.mxu0 0.0
    %560 = vmatpush1.msra.mxu0 0.0
    %561 = vmatprep.subr.mxu0 0.0
    %562 = vmatpush1.msra.mxu0 0.0
    %563 = vmatprep.subr.mxu0 0.0
    %564 = vmatpush1.msra.mxu0 0.0
    %565 = vmatprep.mubr.f32.mxu0 0.0
    %566 = vmatmul.mubr.f32.gmra.mrb[0].mxu0 %v454
    %v567 = vpop.f32.mrb[0].mxu0
    %v568 = vadd.f32 0.0, %v567
    %v569 = vpop.f32.mrb[0].mxu0
    %v570 = vadd.f32 0.0, %v569
    %571 = vmatprep.mubr.f32.mxu0 0.0
    %572 = vmatmul.mubr.f32.gmra.mrb[0].mxu0 %v457
    %v573 = vpop.f32.mrb[0].mxu0
    %v574 = vadd.f32 0.0, %v573
    %v575 = vpop.f32.mrb[0].mxu0
    %v576 = vadd.f32 0.0, %v575
    %577 = vmatprep.mubr.f32.mxu0 0.0
    %578 = vmatmul.mubr.f32.gmra.mrb[0].mxu0 %v460
    %v579 = vpop.f32.mrb[0].mxu0
    %v580 = vadd.f32 0.0, %v579
    %v581 = vpop.f32.mrb[0].mxu0
    %v582 = vadd.f32 0.0, %v581
    %583 = vmatprep.mubr.f32.mxu0 0.0
    %584 = vmatmul.mubr.f32.gmra.mrb[0].mxu0 %v463
    %v585 = vpop.f32.mrb[0].mxu0
    %v586 = vadd.f32 0.0, %v585
    %v587 = vpop.f32.mrb[0].mxu0
    %v588 = vadd.f32 0.0, %v587
    %589 = vmatprep.mubr.f32.mxu0 0.0
    %590 = vmatmul.mubr.f32.gmra.mrb[0].mxu0 %v466
    %v591 = vpop.f32.mrb[0].mxu0
    %v592 = vadd.f32 0.0, %v591
    %v593 = vpop.f32.mrb[0].mxu0
    %v594 = vadd.f32 0.0, %v593
    %595 = vmatprep.mubr.f32.mxu0 0.0
    %596 = vmatmul.mubr.f32.gmra.mrb[0].mxu0 %v469
    %v597 = vpop.f32.mrb[0].mxu0
    %v598 = vadd.f32 0.0, %v597
    %v599 = vpop.f32.mrb[0].mxu0
    %v600 = vadd.f32 0.0, %v599
    %601 = vmatprep.mubr.f32.mxu0 0.0
    %602 = vmatmul.mubr.f32.gmra.mrb[0].mxu0 %v472
    %v603 = vpop.f32.mrb[0].mxu0
    %v604 = vadd.f32 0.0, %v603
    %v605 = vpop.f32.mrb[0].mxu0
    %v606 = vadd.f32 0.0, %v605
    %607 = vmatprep.mubr.f32.mxu0 0.0
    %608 = vmatmul.mubr.f32.gmra.mrb[0].mxu0 %v475
    %v609 = vpop.f32.mrb[0].mxu0
    %v610 = vadd.f32 0.0, %v609
    %v611 = vpop.f32.mrb[0].mxu0
    %v612 = vadd.f32 0.0, %v611
    %613 = vmatprep.mubr.f32.mxu0 0.0
    %614 = vmatmul.mubr.f32.gmra.mrb[0].mxu0 %v478
    %v615 = vpop.f32.mrb[0].mxu0
    %v616 = vadd.f32 0.0, %v615
    %v617 = vpop.f32.mrb[0].mxu0
    %v618 = vadd.f32 0.0, %v617
    %619 = vmatprep.mubr.f32.mxu0 0.0
    %620 = vmatmul.mubr.f32.gmra.mrb[0].mxu0 %v481
    %v621 = vpop.f32.mrb[0].mxu0
    %v622 = vadd.f32 0.0, %v621
    %v623 = vpop.f32.mrb[0].mxu0
    %v624 = vadd.f32 0.0, %v623
    %625 = vmatprep.mubr.f32.mxu0 0.0
    %626 = vmatmul.mubr.f32.gmra.mrb[0].mxu0 %v484
    %v627 = vpop.f32.mrb[0].mxu0
    %v628 = vadd.f32 0.0, %v627
    %v629 = vpop.f32.mrb[0].mxu0
    %v630 = vadd.f32 0.0, %v629
    %631 = vmatprep.mubr.f32.mxu0 0.0
    %632 = vmatmul.mubr.f32.gmra.mrb[0].mxu0 %v487
    %v633 = vpop.f32.mrb[0].mxu0
    %v634 = vadd.f32 0.0, %v633
    %v635 = vpop.f32.mrb[0].mxu0
    %v636 = vadd.f32 0.0, %v635
    %637 = vmatprep.mubr.f32.mxu0 0.0
    %638 = vmatmul.mubr.f32.gmra.mrb[0].mxu0 %v490
    %v639 = vpop.f32.mrb[0].mxu0
    %v640 = vadd.f32 0.0, %v639
    %v641 = vpop.f32.mrb[0].mxu0
    %v642 = vadd.f32 0.0, %v641
    %643 = vmatprep.mubr.f32.mxu0 0.0
    %644 = vmatmul.mubr.f32.gmra.mrb[0].mxu0 %v493
    %v645 = vpop.f32.mrb[0].mxu0
    %v646 = vadd.f32 0.0, %v645
    %v647 = vpop.f32.mrb[0].mxu0
    %v648 = vadd.f32 0.0, %v647
    %649 = vmatprep.mubr.f32.mxu0 0.0
    %650 = vmatmul.mubr.f32.gmra.mrb[0].mxu0 %v496
    %v651 = vpop.f32.mrb[0].mxu0
    %v652 = vadd.f32 0.0, %v651
    %v653 = vpop.f32.mrb[0].mxu0
    %v654 = vadd.f32 0.0, %v653
    %655 = vmatprep.mubr.f32.mxu0 0.0
    %656 = vmatmul.mubr.f32.gmra.mrb[0].mxu0 %v499
    %v657 = vpop.f32.mrb[0].mxu0
    %v658 = vadd.f32 0.0, %v657
    %v659 = vpop.f32.mrb[0].mxu0
    %v660 = vadd.f32 0.0, %v659
    %661 = vdwg.mxu0
    %v678 = vunpack.c.l.b16 %v418
    %v679 = vunpack.c.h.b16 %v418
    %v680 = vunpack.c.l.b16 %v419
    %v681 = vunpack.c.h.b16 %v419
    %v682 = vunpack.c.l.b16 %v420
    %v683 = vunpack.c.h.b16 %v420
    %v684 = vunpack.c.l.b16 %v421
    %v685 = vunpack.c.h.b16 %v421
    %v686 = vunpack.c.l.b16 %v422
    %v687 = vunpack.c.h.b16 %v422
    %v688 = vunpack.c.l.b16 %v423
    %v689 = vunpack.c.h.b16 %v423
    %v690 = vunpack.c.l.b16 %v424
    %v691 = vunpack.c.h.b16 %v424
    %v692 = vunpack.c.l.b16 %v425
    %v693 = vunpack.c.h.b16 %v425
    %v694 = vunpack.c.l.b16 %v426
    %v695 = vunpack.c.h.b16 %v426
    %v696 = vunpack.c.l.b16 %v427
    %v697 = vunpack.c.h.b16 %v427
    %v698 = vunpack.c.l.b16 %v428
    %v699 = vunpack.c.h.b16 %v428
    %v700 = vunpack.c.l.b16 %v429
    %v701 = vunpack.c.h.b16 %v429
    %v702 = vunpack.c.l.b16 %v430
    %v703 = vunpack.c.h.b16 %v430
    %v704 = vunpack.c.l.b16 %v431
    %v705 = vunpack.c.h.b16 %v431
    %v706 = vunpack.c.l.b16 %v432
    %v707 = vunpack.c.h.b16 %v432
    %v708 = vunpack.c.l.b16 %v433
    %v709 = vunpack.c.h.b16 %v433
    %v710 = vpack.c.b16 %v680, %v678
    %v711 = vpack.c.b16 %v681, %v679
    %v712 = vpack.c.b16 %v684, %v682
    %v713 = vpack.c.b16 %v685, %v683
    %v714 = vpack.c.b16 %v688, %v686
    %v715 = vpack.c.b16 %v689, %v687
    %v716 = vpack.c.b16 %v692, %v690
    %v717 = vpack.c.b16 %v693, %v691
    %v718 = vpack.c.b16 %v696, %v694
    %v719 = vpack.c.b16 %v697, %v695
    %v720 = vpack.c.b16 %v700, %v698
    %v721 = vpack.c.b16 %v701, %v699
    %v722 = vpack.c.b16 %v704, %v702
    %v723 = vpack.c.b16 %v705, %v703
    %v724 = vpack.c.b16 %v708, %v706
    %v725 = vpack.c.b16 %v709, %v707
    %742 = vmatprep.subr.bf16.mxu0 %v711
    %743 = vmatpush1.bf16.msra.mxu0 %v710
    %744 = vmatprep.subr.bf16.mxu0 %v713
    %745 = vmatpush1.bf16.msra.mxu0 %v712
    %746 = vmatprep.subr.bf16.mxu0 %v715
    %747 = vmatpush1.bf16.msra.mxu0 %v714
    %748 = vmatprep.subr.bf16.mxu0 %v717
    %749 = vmatpush1.bf16.msra.mxu0 %v716
    %750 = vmatprep.subr.bf16.mxu0 %v719
    %751 = vmatpush1.bf16.msra.mxu0 %v718
    %752 = vmatprep.subr.bf16.mxu0 %v721
    %753 = vmatpush1.bf16.msra.mxu0 %v720
    %754 = vmatprep.subr.bf16.mxu0 %v723
    %755 = vmatpush1.bf16.msra.mxu0 %v722
    %756 = vmatprep.subr.bf16.mxu0 %v725
    %757 = vmatpush1.bf16.msra.mxu0 %v724
    %758 = vmatprep.subr.bf16.mxu0 0
    %759 = vmatpush1.bf16.msra.mxu0 0
    %760 = vmatprep.subr.bf16.mxu0 0
    %761 = vmatpush1.bf16.msra.mxu0 0
    %762 = vmatprep.subr.bf16.mxu0 0
    %763 = vmatpush1.bf16.msra.mxu0 0
    %764 = vmatprep.subr.bf16.mxu0 0
    %765 = vmatpush1.bf16.msra.mxu0 0
    %766 = vmatprep.subr.bf16.mxu0 0
    %767 = vmatpush1.bf16.msra.mxu0 0
    %768 = vmatprep.subr.bf16.mxu0 0
    %769 = vmatpush1.bf16.msra.mxu0 0
    %770 = vmatprep.subr.bf16.mxu0 0
    %771 = vmatpush1.bf16.msra.mxu0 0
    %772 = vmatprep.subr.bf16.mxu0 0
    %773 = vmatpush1.bf16.msra.mxu0 0
    %774 = vmatprep.mubr.bf16.mxu0 0
    %775 = vmatmul.mubr.bf16.gmra.mrb[0].mxu0 %v410
    %v776 = vpop.f32.mrb[0].mxu0
    %v777 = vadd.f32 %v568, %v776
    %v778 = vpop.f32.mrb[0].mxu0
    %v779 = vadd.f32 %v570, %v778
    %v780 = vpop.f32.mrb[0].mxu0
    %v781 = vadd.f32 %v574, %v780
    %v782 = vpop.f32.mrb[0].mxu0
    %v783 = vadd.f32 %v576, %v782
    %784 = vmatprep.mubr.bf16.mxu0 0
    %785 = vmatmul.mubr.bf16.gmra.mrb[0].mxu0 %v411
    %v786 = vpop.f32.mrb[0].mxu0
    %v787 = vadd.f32 %v580, %v786
    %v788 = vpop.f32.mrb[0].mxu0
    %v789 = vadd.f32 %v582, %v788
    %v790 = vpop.f32.mrb[0].mxu0
    %v791 = vadd.f32 %v586, %v790
    %v792 = vpop.f32.mrb[0].mxu0
    %v793 = vadd.f32 %v588, %v792
    %794 = vmatprep.mubr.bf16.mxu0 0
    %795 = vmatmul.mubr.bf16.gmra.mrb[0].mxu0 %v412
    %v796 = vpop.f32.mrb[0].mxu0
    %v797 = vadd.f32 %v592, %v796
    %v798 = vpop.f32.mrb[0].mxu0
    %v799 = vadd.f32 %v594, %v798
    %v800 = vpop.f32.mrb[0].mxu0
    %v801 = vadd.f32 %v598, %v800
    %v802 = vpop.f32.mrb[0].mxu0
    %v803 = vadd.f32 %v600, %v802
    %804 = vmatprep.mubr.bf16.mxu0 0
    %805 = vmatmul.mubr.bf16.gmra.mrb[0].mxu0 %v413
    %v806 = vpop.f32.mrb[0].mxu0
    %v807 = vadd.f32 %v604, %v806
    %v808 = vpop.f32.mrb[0].mxu0
    %v809 = vadd.f32 %v606, %v808
    %v810 = vpop.f32.mrb[0].mxu0
    %v811 = vadd.f32 %v610, %v810
    %v812 = vpop.f32.mrb[0].mxu0
    %v813 = vadd.f32 %v612, %v812
    %814 = vmatprep.mubr.bf16.mxu0 0
    %815 = vmatmul.mubr.bf16.gmra.mrb[0].mxu0 %v414
    %v816 = vpop.f32.mrb[0].mxu0
    %v817 = vadd.f32 %v616, %v816
    %v818 = vpop.f32.mrb[0].mxu0
    %v819 = vadd.f32 %v618, %v818
    %v820 = vpop.f32.mrb[0].mxu0
    %v821 = vadd.f32 %v622, %v820
    %v822 = vpop.f32.mrb[0].mxu0
    %v823 = vadd.f32 %v624, %v822
    %824 = vmatprep.mubr.bf16.mxu0 0
    %825 = vmatmul.mubr.bf16.gmra.mrb[0].mxu0 %v415
    %v826 = vpop.f32.mrb[0].mxu0
    %v827 = vadd.f32 %v628, %v826
    %v828 = vpop.f32.mrb[0].mxu0
    %v829 = vadd.f32 %v630, %v828
    %v830 = vpop.f32.mrb[0].mxu0
    %v831 = vadd.f32 %v634, %v830
    %v832 = vpop.f32.mrb[0].mxu0
    %v833 = vadd.f32 %v636, %v832
    %834 = vmatprep.mubr.bf16.mxu0 0
    %835 = vmatmul.mubr.bf16.gmra.mrb[0].mxu0 %v416
    %v836 = vpop.f32.mrb[0].mxu0
    %v837 = vadd.f32 %v640, %v836
    %v838 = vpop.f32.mrb[0].mxu0
    %v839 = vadd.f32 %v642, %v838
    %v840 = vpop.f32.mrb[0].mxu0
    %v841 = vadd.f32 %v646, %v840
    %v842 = vpop.f32.mrb[0].mxu0
    %v843 = vadd.f32 %v648, %v842
    %844 = vmatprep.mubr.bf16.mxu0 0
    %845 = vmatmul.mubr.bf16.gmra.mrb[0].mxu0 %v417
    %v846 = vpop.f32.mrb[0].mxu0
    %v847 = vadd.f32 %v652, %v846
    %v848 = vpop.f32.mrb[0].mxu0
    %v849 = vadd.f32 %v654, %v848
    %v850 = vpop.f32.mrb[0].mxu0
    %v851 = vadd.f32 %v658, %v850
    %v852 = vpop.f32.mrb[0].mxu0
    %v853 = vadd.f32 %v660, %v852
    %854 = vdwg.mxu0
    %v855 = vld [vmem:[%s7] sm:$0x3]
    %v857 = vlaneseq
    %v858 = vshrl.u32 %v857, 7
    %v859 = vsub.s32 0, %v858
    %v860 = vrot.slane %v855, %v859
    %v861 = vlaneseq
    %v862 = vshrl.u32 %v861, 7
    %v863 = vsub.s32 1, %v862
    %v864 = vrot.slane %v855, %v863
    %v867 = vadd.f32 %v777, %v860
    %v868 = vadd.f32 %v779, %v864
    %v869 = vadd.f32 %v781, %v860
    %v870 = vadd.f32 %v783, %v864
    %v871 = vadd.f32 %v787, %v860
    %v872 = vadd.f32 %v789, %v864
    %v873 = vadd.f32 %v791, %v860
    %v874 = vadd.f32 %v793, %v864
    %v875 = vadd.f32 %v797, %v860
    %v876 = vadd.f32 %v799, %v864
    %v877 = vadd.f32 %v801, %v860
    %v878 = vadd.f32 %v803, %v864
    %v879 = vadd.f32 %v807, %v860
    %v880 = vadd.f32 %v809, %v864
    %v881 = vadd.f32 %v811, %v860
    %v882 = vadd.f32 %v813, %v864
    %v883 = vadd.f32 %v817, %v860
    %v884 = vadd.f32 %v819, %v864
    %v885 = vadd.f32 %v821, %v860
    %v886 = vadd.f32 %v823, %v864
    %v887 = vadd.f32 %v827, %v860
    %v888 = vadd.f32 %v829, %v864
    %v889 = vadd.f32 %v831, %v860
    %v890 = vadd.f32 %v833, %v864
    %v891 = vadd.f32 %v837, %v860
    %v892 = vadd.f32 %v839, %v864
    %v893 = vadd.f32 %v841, %v860
    %v894 = vadd.f32 %v843, %v864
    %v895 = vadd.f32 %v847, %v860
    %v896 = vadd.f32 %v849, %v864
    %v897 = vadd.f32 %v851, %v860
    %v898 = vadd.f32 %v853, %v864
    %v899 = vld [vmem:[#allocation5] sm:$0xf]
    %v900 = vld [vmem:[#allocation5 + $0x4] sm:$0xf]
    %v901 = vld [vmem:[#allocation5 + $0x8] sm:$0xf]
    %v902 = vld [vmem:[#allocation5 + $0xc] sm:$0xf]
    %v903 = vld [vmem:[#allocation5 + $0x10] sm:$0xf]
    %v904 = vld [vmem:[#allocation5 + $0x14] sm:$0xf]
    %v905 = vld [vmem:[#allocation5 + $0x18] sm:$0xf]
    %v906 = vld [vmem:[#allocation5 + $0x1c] sm:$0xf]
    %v907 = vld [vmem:[#allocation5 + $0x20] sm:$0xf]
    %v908 = vld [vmem:[#allocation5 + $0x24] sm:$0xf]
    %v909 = vld [vmem:[#allocation5 + $0x28] sm:$0xf]
    %v910 = vld [vmem:[#allocation5 + $0x2c] sm:$0xf]
    %v911 = vld [vmem:[#allocation5 + $0x30] sm:$0xf]
    %v912 = vld [vmem:[#allocation5 + $0x34] sm:$0xf]
    %v913 = vld [vmem:[#allocation5 + $0x38] sm:$0xf]
    %v914 = vld [vmem:[#allocation5 + $0x3c] sm:$0xf]
    %v915 = vpack.c.bf16 %v870, %v868
    %v916 = vpack.c.bf16 %v874, %v872
    %v917 = vpack.c.bf16 %v878, %v876
    %v918 = vpack.c.bf16 %v882, %v880
    %v919 = vpack.c.bf16 %v886, %v884
    %v920 = vpack.c.bf16 %v890, %v888
    %v921 = vpack.c.bf16 %v894, %v892
    %v922 = vpack.c.bf16 %v898, %v896
    %v939 = vunpack.c.l.b16 %v899
    %v940 = vunpack.c.l.b16 %v900
    %v941 = vunpack.c.l.b16 %v901
    %v942 = vunpack.c.l.b16 %v902
    %v943 = vunpack.c.l.b16 %v903
    %v944 = vunpack.c.l.b16 %v904
    %v945 = vunpack.c.l.b16 %v905
    %v946 = vunpack.c.l.b16 %v906
    %v947 = vunpack.c.l.b16 %v907
    %v948 = vunpack.c.l.b16 %v908
    %v949 = vunpack.c.l.b16 %v909
    %v950 = vunpack.c.l.b16 %v910
    %v951 = vunpack.c.l.b16 %v911
    %v952 = vunpack.c.l.b16 %v912
    %v953 = vunpack.c.l.b16 %v913
    %v954 = vunpack.c.l.b16 %v914
    %v955 = vpack.c.b16 %v940, %v939
    %v956 = vpack.c.b16 %v942, %v941
    %v957 = vpack.c.b16 %v944, %v943
    %v958 = vpack.c.b16 %v946, %v945
    %v959 = vpack.c.b16 %v948, %v947
    %v960 = vpack.c.b16 %v950, %v949
    %v961 = vpack.c.b16 %v952, %v951
    %v962 = vpack.c.b16 %v954, %v953
    %971 = vmatprep.subr.bf16.mxu0 0
    %972 = vmatpush1.bf16.msra.mxu0 %v915
    %973 = vmatprep.subr.bf16.mxu0 0
    %974 = vmatpush1.bf16.msra.mxu0 %v916
    %975 = vmatprep.subr.bf16.mxu0 0
    %976 = vmatpush1.bf16.msra.mxu0 %v917
    %977 = vmatprep.subr.bf16.mxu0 0
    %978 = vmatpush1.bf16.msra.mxu0 %v918
    %979 = vmatprep.subr.bf16.mxu0 0
    %980 = vmatpush1.bf16.msra.mxu0 %v919
    %981 = vmatprep.subr.bf16.mxu0 0
    %982 = vmatpush1.bf16.msra.mxu0 %v920
    %983 = vmatprep.subr.bf16.mxu0 0
    %984 = vmatpush1.bf16.msra.mxu0 %v921
    %985 = vmatprep.subr.bf16.mxu0 0
    %986 = vmatpush1.bf16.msra.mxu0 %v922
    %987 = vmatprep.subr.bf16.mxu0 0
    %988 = vmatpush1.bf16.msra.mxu0 0
    %989 = vmatprep.subr.bf16.mxu0 0
    %990 = vmatpush1.bf16.msra.mxu0 0
    %991 = vmatprep.subr.bf16.mxu0 0
    %992 = vmatpush1.bf16.msra.mxu0 0
    %993 = vmatprep.subr.bf16.mxu0 0
    %994 = vmatpush1.bf16.msra.mxu0 0
    %995 = vmatprep.subr.bf16.mxu0 0
    %996 = vmatpush1.bf16.msra.mxu0 0
    %997 = vmatprep.subr.bf16.mxu0 0
    %998 = vmatpush1.bf16.msra.mxu0 0
    %999 = vmatprep.subr.bf16.mxu0 0
    %1000 = vmatpush1.bf16.msra.mxu0 0
    %1001 = vmatprep.subr.bf16.mxu0 0
    %1002 = vmatpush1.bf16.msra.mxu0 0
    %1003 = vmatprep.mubr.bf16.mxu0 0
    %1004 = vmatmul.mubr.bf16.gmra.mrb[0].mxu0 %v955
    %v1005 = vpop.f32.mrb[0].mxu0
    %v1006 = vadd.f32 0.0, %v1005
    %v1007 = vpop.f32.mrb[0].mxu0
    %v1008 = vpop.f32.mrb[0].mxu0
    %v1009 = vadd.f32 0.0, %v1008
    %v1010 = vpop.f32.mrb[0].mxu0
    %1011 = vmatprep.mubr.bf16.mxu0 0
    %1012 = vmatmul.mubr.bf16.gmra.mrb[0].mxu0 %v956
    %v1013 = vpop.f32.mrb[0].mxu0
    %v1014 = vadd.f32 0.0, %v1013
    %v1015 = vpop.f32.mrb[0].mxu0
    %v1016 = vpop.f32.mrb[0].mxu0
    %v1017 = vadd.f32 0.0, %v1016
    %v1018 = vpop.f32.mrb[0].mxu0
    %1019 = vmatprep.mubr.bf16.mxu0 0
    %1020 = vmatmul.mubr.bf16.gmra.mrb[0].mxu0 %v957
    %v1021 = vpop.f32.mrb[0].mxu0
    %v1022 = vadd.f32 0.0, %v1021
    %v1023 = vpop.f32.mrb[0].mxu0
    %v1024 = vpop.f32.mrb[0].mxu0
    %v1025 = vadd.f32 0.0, %v1024
    %v1026 = vpop.f32.mrb[0].mxu0
    %1027 = vmatprep.mubr.bf16.mxu0 0
    %1028 = vmatmul.mubr.bf16.gmra.mrb[0].mxu0 %v958
    %v1029 = vpop.f32.mrb[0].mxu0
    %v1030 = vadd.f32 0.0, %v1029
    %v1031 = vpop.f32.mrb[0].mxu0
    %v1032 = vpop.f32.mrb[0].mxu0
    %v1033 = vadd.f32 0.0, %v1032
    %v1034 = vpop.f32.mrb[0].mxu0
    %1035 = vmatprep.mubr.bf16.mxu0 0
    %1036 = vmatmul.mubr.bf16.gmra.mrb[0].mxu0 %v959
    %v1037 = vpop.f32.mrb[0].mxu0
    %v1038 = vadd.f32 0.0, %v1037
    %v1039 = vpop.f32.mrb[0].mxu0
    %v1040 = vpop.f32.mrb[0].mxu0
    %v1041 = vadd.f32 0.0, %v1040
    %v1042 = vpop.f32.mrb[0].mxu0
    %1043 = vmatprep.mubr.bf16.mxu0 0
    %1044 = vmatmul.mubr.bf16.gmra.mrb[0].mxu0 %v960
    %v1045 = vpop.f32.mrb[0].mxu0
    %v1046 = vadd.f32 0.0, %v1045
    %v1047 = vpop.f32.mrb[0].mxu0
    %v1048 = vpop.f32.mrb[0].mxu0
    %v1049 = vadd.f32 0.0, %v1048
    %v1050 = vpop.f32.mrb[0].mxu0
    %1051 = vmatprep.mubr.bf16.mxu0 0
    %1052 = vmatmul.mubr.bf16.gmra.mrb[0].mxu0 %v961
    %v1053 = vpop.f32.mrb[0].mxu0
    %v1054 = vadd.f32 0.0, %v1053
    %v1055 = vpop.f32.mrb[0].mxu0
    %v1056 = vpop.f32.mrb[0].mxu0
    %v1057 = vadd.f32 0.0, %v1056
    %v1058 = vpop.f32.mrb[0].mxu0
    %1059 = vmatprep.mubr.bf16.mxu0 0
    %1060 = vmatmul.mubr.bf16.gmra.mrb[0].mxu0 %v962
    %v1061 = vpop.f32.mrb[0].mxu0
    %v1062 = vadd.f32 0.0, %v1061
    %v1063 = vpop.f32.mrb[0].mxu0
    %v1064 = vpop.f32.mrb[0].mxu0
    %v1065 = vadd.f32 0.0, %v1064
    %v1066 = vpop.f32.mrb[0].mxu0
    %1067 = vdwg.mxu0
    %v1068 = vadd.f32 %v867, %v1006
    %v1069 = vadd.f32 %v869, %v1009
    %v1070 = vadd.f32 %v871, %v1014
    %v1071 = vadd.f32 %v873, %v1017
    %v1072 = vadd.f32 %v875, %v1022
    %v1073 = vadd.f32 %v877, %v1025
    %v1074 = vadd.f32 %v879, %v1030
    %v1075 = vadd.f32 %v881, %v1033
    %v1076 = vadd.f32 %v883, %v1038
    %v1077 = vadd.f32 %v885, %v1041
    %v1078 = vadd.f32 %v887, %v1046
    %v1079 = vadd.f32 %v889, %v1049
    %v1080 = vadd.f32 %v891, %v1054
    %v1081 = vadd.f32 %v893, %v1057
    %v1082 = vadd.f32 %v895, %v1062
    %v1083 = vadd.f32 %v897, %v1065
    %v1084 = vmax.f32 %v1068, 0.0
    %v1085 = vmax.f32 %v1069, 0.0
    %v1086 = vmax.f32 %v1070, 0.0
    %v1087 = vmax.f32 %v1071, 0.0
    %v1088 = vmax.f32 %v1072, 0.0
    %v1089 = vmax.f32 %v1073, 0.0
    %v1090 = vmax.f32 %v1074, 0.0
    %v1091 = vmax.f32 %v1075, 0.0
    %v1092 = vmax.f32 %v1076, 0.0
    %v1093 = vmax.f32 %v1077, 0.0
    %v1094 = vmax.f32 %v1078, 0.0
    %v1095 = vmax.f32 %v1079, 0.0
    %v1096 = vmax.f32 %v1080, 0.0
    %v1097 = vmax.f32 %v1081, 0.0
    %v1098 = vmax.f32 %v1082, 0.0
    %v1099 = vmax.f32 %v1083, 0.0
    %v1100 = vpack.c.bf16 %v1085, %v1084
    %v1101 = vpack.c.bf16 %v1087, %v1086
    %v1102 = vpack.c.bf16 %v1089, %v1088
    %v1103 = vpack.c.bf16 %v1091, %v1090
    %v1104 = vpack.c.bf16 %v1093, %v1092
    %v1105 = vpack.c.bf16 %v1095, %v1094
    %v1106 = vpack.c.bf16 %v1097, %v1096
    %v1107 = vpack.c.bf16 %v1099, %v1098
    %v1108 = vld [vmem:[#allocation10] sm:$0xff]
    %v1109 = vld [vmem:[#allocation10 + $0x8] sm:$0xff]
    %v1110 = vld [vmem:[#allocation10 + $0x10] sm:$0xff]
    %v1111 = vld [vmem:[#allocation10 + $0x18] sm:$0xff]
    %v1112 = vld [vmem:[#allocation10 + $0x20] sm:$0xff]
    %v1113 = vld [vmem:[#allocation10 + $0x28] sm:$0xff]
    %v1114 = vld [vmem:[#allocation10 + $0x30] sm:$0xff]
    %v1115 = vld [vmem:[#allocation10 + $0x38] sm:$0xff]
    %v1116 = vld [vmem:[#allocation10 + $0x40] sm:$0xff]
    %v1117 = vld [vmem:[#allocation10 + $0x48] sm:$0xff]
    %v1118 = vld [vmem:[#allocation10 + $0x50] sm:$0xff]
    %v1119 = vld [vmem:[#allocation10 + $0x58] sm:$0xff]
    %v1120 = vld [vmem:[#allocation10 + $0x60] sm:$0xff]
    %v1121 = vld [vmem:[#allocation10 + $0x68] sm:$0xff]
    %v1122 = vld [vmem:[#allocation10 + $0x70] sm:$0xff]
    %v1123 = vld [vmem:[#allocation10 + $0x78] sm:$0xff]
    %v1124 = vld [vmem:[%s9] sm:$0x3]
    %v1126 = vlaneseq
    %v1127 = vshrl.u32 %v1126, 7
    %v1128 = vsub.s32 0, %v1127
    %v1129 = vrot.slane %v1124, %v1128
    %v1130 = vlaneseq
    %v1131 = vshrl.u32 %v1130, 7
    %v1132 = vsub.s32 1, %v1131
    %v1133 = vrot.slane %v1124, %v1132
    %v1152 = vunpack.c.l.b16 %v1108
    %v1153 = vunpack.c.h.b16 %v1108
    %v1154 = vunpack.c.l.b16 %v1109
    %v1155 = vunpack.c.h.b16 %v1109
    %v1156 = vunpack.c.l.b16 %v1110
    %v1157 = vunpack.c.h.b16 %v1110
    %v1158 = vunpack.c.l.b16 %v1111
    %v1159 = vunpack.c.h.b16 %v1111
    %v1160 = vunpack.c.l.b16 %v1112
    %v1161 = vunpack.c.h.b16 %v1112
    %v1162 = vunpack.c.l.b16 %v1113
    %v1163 = vunpack.c.h.b16 %v1113
    %v1164 = vunpack.c.l.b16 %v1114
    %v1165 = vunpack.c.h.b16 %v1114
    %v1166 = vunpack.c.l.b16 %v1115
    %v1167 = vunpack.c.h.b16 %v1115
    %v1168 = vunpack.c.l.b16 %v1116
    %v1169 = vunpack.c.h.b16 %v1116
    %v1170 = vunpack.c.l.b16 %v1117
    %v1171 = vunpack.c.h.b16 %v1117
    %v1172 = vunpack.c.l.b16 %v1118
    %v1173 = vunpack.c.h.b16 %v1118
    %v1174 = vunpack.c.l.b16 %v1119
    %v1175 = vunpack.c.h.b16 %v1119
    %v1176 = vunpack.c.l.b16 %v1120
    %v1177 = vunpack.c.h.b16 %v1120
    %v1178 = vunpack.c.l.b16 %v1121
    %v1179 = vunpack.c.h.b16 %v1121
    %v1180 = vunpack.c.l.b16 %v1122
    %v1181 = vunpack.c.h.b16 %v1122
    %v1182 = vunpack.c.l.b16 %v1123
    %v1183 = vunpack.c.h.b16 %v1123
    %v1184 = vpack.c.b16 %v1154, %v1152
    %v1185 = vpack.c.b16 %v1155, %v1153
    %v1186 = vpack.c.b16 %v1158, %v1156
    %v1187 = vpack.c.b16 %v1159, %v1157
    %v1188 = vpack.c.b16 %v1162, %v1160
    %v1189 = vpack.c.b16 %v1163, %v1161
    %v1190 = vpack.c.b16 %v1166, %v1164
    %v1191 = vpack.c.b16 %v1167, %v1165
    %v1192 = vpack.c.b16 %v1170, %v1168
    %v1193 = vpack.c.b16 %v1171, %v1169
    %v1194 = vpack.c.b16 %v1174, %v1172
    %v1195 = vpack.c.b16 %v1175, %v1173
    %v1196 = vpack.c.b16 %v1178, %v1176
    %v1197 = vpack.c.b16 %v1179, %v1177
    %v1198 = vpack.c.b16 %v1182, %v1180
    %v1199 = vpack.c.b16 %v1183, %v1181
    %1216 = vmatprep.subr.bf16.mxu0 %v1185
    %1217 = vmatpush1.bf16.msra.mxu0 %v1184
    %1218 = vmatprep.subr.bf16.mxu0 %v1187
    %1219 = vmatpush1.bf16.msra.mxu0 %v1186
    %1220 = vmatprep.subr.bf16.mxu0 %v1189
    %1221 = vmatpush1.bf16.msra.mxu0 %v1188
    %1222 = vmatprep.subr.bf16.mxu0 %v1191
    %1223 = vmatpush1.bf16.msra.mxu0 %v1190
    %1224 = vmatprep.subr.bf16.mxu0 %v1193
    %1225 = vmatpush1.bf16.msra.mxu0 %v1192
    %1226 = vmatprep.subr.bf16.mxu0 %v1195
    %1227 = vmatpush1.bf16.msra.mxu0 %v1194
    %1228 = vmatprep.subr.bf16.mxu0 %v1197
    %1229 = vmatpush1.bf16.msra.mxu0 %v1196
    %1230 = vmatprep.subr.bf16.mxu0 %v1199
    %1231 = vmatpush1.bf16.msra.mxu0 %v1198
    %1232 = vmatprep.subr.bf16.mxu0 0
    %1233 = vmatpush1.bf16.msra.mxu0 0
    %1234 = vmatprep.subr.bf16.mxu0 0
    %1235 = vmatpush1.bf16.msra.mxu0 0
    %1236 = vmatprep.subr.bf16.mxu0 0
    %1237 = vmatpush1.bf16.msra.mxu0 0
    %1238 = vmatprep.subr.bf16.mxu0 0
    %1239 = vmatpush1.bf16.msra.mxu0 0
    %1240 = vmatprep.subr.bf16.mxu0 0
    %1241 = vmatpush1.bf16.msra.mxu0 0
    %1242 = vmatprep.subr.bf16.mxu0 0
    %1243 = vmatpush1.bf16.msra.mxu0 0
    %1244 = vmatprep.subr.bf16.mxu0 0
    %1245 = vmatpush1.bf16.msra.mxu0 0
    %1246 = vmatprep.subr.bf16.mxu0 0
    %1247 = vmatpush1.bf16.msra.mxu0 0
    %1248 = vmatprep.mubr.bf16.mxu0 0
    %1249 = vmatmul.mubr.bf16.gmra.mrb[0].mxu0 %v1100
    %v1250 = vpop.f32.mrb[0].mxu0
    %v1251 = vadd.f32 %v1129, %v1250
    %v1252 = vpop.f32.mrb[0].mxu0
    %v1253 = vadd.f32 %v1133, %v1252
    %v1254 = vpop.f32.mrb[0].mxu0
    %v1255 = vadd.f32 %v1129, %v1254
    %v1256 = vpop.f32.mrb[0].mxu0
    %v1257 = vadd.f32 %v1133, %v1256
    %1258 = vmatprep.mubr.bf16.mxu0 0
    %1259 = vmatmul.mubr.bf16.gmra.mrb[0].mxu0 %v1101
    %v1260 = vpop.f32.mrb[0].mxu0
    %v1261 = vadd.f32 %v1129, %v1260
    %v1262 = vpop.f32.mrb[0].mxu0
    %v1263 = vadd.f32 %v1133, %v1262
    %v1264 = vpop.f32.mrb[0].mxu0
    %v1265 = vadd.f32 %v1129, %v1264
    %v1266 = vpop.f32.mrb[0].mxu0
    %v1267 = vadd.f32 %v1133, %v1266
    %1268 = vmatprep.mubr.bf16.mxu0 0
    %1269 = vmatmul.mubr.bf16.gmra.mrb[0].mxu0 %v1102
    %v1270 = vpop.f32.mrb[0].mxu0
    %v1271 = vadd.f32 %v1129, %v1270
    %v1272 = vpop.f32.mrb[0].mxu0
    %v1273 = vadd.f32 %v1133, %v1272
    %v1274 = vpop.f32.mrb[0].mxu0
    %v1275 = vadd.f32 %v1129, %v1274
    %v1276 = vpop.f32.mrb[0].mxu0
    %v1277 = vadd.f32 %v1133, %v1276
    %1278 = vmatprep.mubr.bf16.mxu0 0
    %1279 = vmatmul.mubr.bf16.gmra.mrb[0].mxu0 %v1103
    %v1280 = vpop.f32.mrb[0].mxu0
    %v1281 = vadd.f32 %v1129, %v1280
    %v1282 = vpop.f32.mrb[0].mxu0
    %v1283 = vadd.f32 %v1133, %v1282
    %v1284 = vpop.f32.mrb[0].mxu0
    %v1285 = vadd.f32 %v1129, %v1284
    %v1286 = vpop.f32.mrb[0].mxu0
    %v1287 = vadd.f32 %v1133, %v1286
    %1288 = vmatprep.mubr.bf16.mxu0 0
    %1289 = vmatmul.mubr.bf16.gmra.mrb[0].mxu0 %v1104
    %v1290 = vpop.f32.mrb[0].mxu0
    %v1291 = vadd.f32 %v1129, %v1290
    %v1292 = vpop.f32.mrb[0].mxu0
    %v1293 = vadd.f32 %v1133, %v1292
    %v1294 = vpop.f32.mrb[0].mxu0
    %v1295 = vadd.f32 %v1129, %v1294
    %v1296 = vpop.f32.mrb[0].mxu0
    %v1297 = vadd.f32 %v1133, %v1296
    %1298 = vmatprep.mubr.bf16.mxu0 0
    %1299 = vmatmul.mubr.bf16.gmra.mrb[0].mxu0 %v1105
    %v1300 = vpop.f32.mrb[0].mxu0
    %v1301 = vadd.f32 %v1129, %v1300
    %v1302 = vpop.f32.mrb[0].mxu0
    %v1303 = vadd.f32 %v1133, %v1302
    %v1304 = vpop.f32.mrb[0].mxu0
    %v1305 = vadd.f32 %v1129, %v1304
    %v1306 = vpop.f32.mrb[0].mxu0
    %v1307 = vadd.f32 %v1133, %v1306
    %1308 = vmatprep.mubr.bf16.mxu0 0
    %1309 = vmatmul.mubr.bf16.gmra.mrb[0].mxu0 %v1106
    %v1310 = vpop.f32.mrb[0].mxu0
    %v1311 = vadd.f32 %v1129, %v1310
    %v1312 = vpop.f32.mrb[0].mxu0
    %v1313 = vadd.f32 %v1133, %v1312
    %v1314 = vpop.f32.mrb[0].mxu0
    %v1315 = vadd.f32 %v1129, %v1314
    %v1316 = vpop.f32.mrb[0].mxu0
    %v1317 = vadd.f32 %v1133, %v1316
    %1318 = vmatprep.mubr.bf16.mxu0 0
    %1319 = vmatmul.mubr.bf16.gmra.mrb[0].mxu0 %v1107
    %v1320 = vpop.f32.mrb[0].mxu0
    %v1321 = vadd.f32 %v1129, %v1320
    %v1322 = vpop.f32.mrb[0].mxu0
    %v1323 = vadd.f32 %v1133, %v1322
    %v1324 = vpop.f32.mrb[0].mxu0
    %v1325 = vadd.f32 %v1129, %v1324
    %v1326 = vpop.f32.mrb[0].mxu0
    %v1327 = vadd.f32 %v1133, %v1326
    %1328 = vdwg.mxu0
    %v1329 = vpack.c.bf16 %v1257, %v1253
    %v1330 = vpack.c.bf16 %v1267, %v1263
    %v1331 = vpack.c.bf16 %v1277, %v1273
    %v1332 = vpack.c.bf16 %v1287, %v1283
    %v1333 = vpack.c.bf16 %v1297, %v1293
    %v1334 = vpack.c.bf16 %v1307, %v1303
    %v1335 = vpack.c.bf16 %v1317, %v1313
    %v1336 = vpack.c.bf16 %v1327, %v1323
    %1337 = vmatprep.subr.bf16.mxu0 0
    %1338 = vmatpush1.bf16.msra.mxu0 %v1329
    %1339 = vmatprep.subr.bf16.mxu0 0
    %1340 = vmatpush1.bf16.msra.mxu0 %v1330
    %1341 = vmatprep.subr.bf16.mxu0 0
    %1342 = vmatpush1.bf16.msra.mxu0 %v1331
    %1343 = vmatprep.subr.bf16.mxu0 0
    %1344 = vmatpush1.bf16.msra.mxu0 %v1332
    %1345 = vmatprep.subr.bf16.mxu0 0
    %1346 = vmatpush1.bf16.msra.mxu0 %v1333
    %1347 = vmatprep.subr.bf16.mxu0 0
    %1348 = vmatpush1.bf16.msra.mxu0 %v1334
    %1349 = vmatprep.subr.bf16.mxu0 0
    %1350 = vmatpush1.bf16.msra.mxu0 %v1335
    %1351 = vmatprep.subr.bf16.mxu0 0
    %1352 = vmatpush1.bf16.msra.mxu0 %v1336
    %1353 = vmatprep.subr.bf16.mxu0 0
    %1354 = vmatpush1.bf16.msra.mxu0 0
    %1355 = vmatprep.subr.bf16.mxu0 0
    %1356 = vmatpush1.bf16.msra.mxu0 0
    %1357 = vmatprep.subr.bf16.mxu0 0
    %1358 = vmatpush1.bf16.msra.mxu0 0
    %1359 = vmatprep.subr.bf16.mxu0 0
    %1360 = vmatpush1.bf16.msra.mxu0 0
    %1361 = vmatprep.subr.bf16.mxu0 0
    %1362 = vmatpush1.bf16.msra.mxu0 0
    %1363 = vmatprep.subr.bf16.mxu0 0
    %1364 = vmatpush1.bf16.msra.mxu0 0
    %1365 = vmatprep.subr.bf16.mxu0 0
    %1366 = vmatpush1.bf16.msra.mxu0 0
    %1367 = vmatprep.subr.bf16.mxu0 0
    %1368 = vmatpush1.bf16.msra.mxu0 0
    %1369 = vmatprep.mubr.bf16.mxu0 0
    %1370 = vmatmul.mubr.bf16.gmra.mrb[0].mxu0 %v955
    %v1371 = vpop.f32.mrb[0].mxu0
    %v1372 = vadd.f32 0.0, %v1371
    %v1373 = vpop.f32.mrb[0].mxu0
    %v1374 = vpop.f32.mrb[0].mxu0
    %v1375 = vadd.f32 0.0, %v1374
    %v1376 = vpop.f32.mrb[0].mxu0
    %1377 = vmatprep.mubr.bf16.mxu0 0
    %1378 = vmatmul.mubr.bf16.gmra.mrb[0].mxu0 %v956
    %v1379 = vpop.f32.mrb[0].mxu0
    %v1380 = vadd.f32 0.0, %v1379
    %v1381 = vpop.f32.mrb[0].mxu0
    %v1382 = vpop.f32.mrb[0].mxu0
    %v1383 = vadd.f32 0.0, %v1382
    %v1384 = vpop.f32.mrb[0].mxu0
    %1385 = vmatprep.mubr.bf16.mxu0 0
    %1386 = vmatmul.mubr.bf16.gmra.mrb[0].mxu0 %v957
    %v1387 = vpop.f32.mrb[0].mxu0
    %v1388 = vadd.f32 0.0, %v1387
    %v1389 = vpop.f32.mrb[0].mxu0
    %v1390 = vpop.f32.mrb[0].mxu0
    %v1391 = vadd.f32 0.0, %v1390
    %v1392 = vpop.f32.mrb[0].mxu0
    %1393 = vmatprep.mubr.bf16.mxu0 0
    %1394 = vmatmul.mubr.bf16.gmra.mrb[0].mxu0 %v958
    %v1395 = vpop.f32.mrb[0].mxu0
    %v1396 = vadd.f32 0.0, %v1395
    %v1397 = vpop.f32.mrb[0].mxu0
    %v1398 = vpop.f32.mrb[0].mxu0
    %v1399 = vadd.f32 0.0, %v1398
    %v1400 = vpop.f32.mrb[0].mxu0
    %1401 = vmatprep.mubr.bf16.mxu0 0
    %1402 = vmatmul.mubr.bf16.gmra.mrb[0].mxu0 %v959
    %v1403 = vpop.f32.mrb[0].mxu0
    %v1404 = vadd.f32 0.0, %v1403
    %v1405 = vpop.f32.mrb[0].mxu0
    %v1406 = vpop.f32.mrb[0].mxu0
    %v1407 = vadd.f32 0.0, %v1406
    %v1408 = vpop.f32.mrb[0].mxu0
    %1409 = vmatprep.mubr.bf16.mxu0 0
    %1410 = vmatmul.mubr.bf16.gmra.mrb[0].mxu0 %v960
    %v1411 = vpop.f32.mrb[0].mxu0
    %v1412 = vadd.f32 0.0, %v1411
    %v1413 = vpop.f32.mrb[0].mxu0
    %v1414 = vpop.f32.mrb[0].mxu0
    %v1415 = vadd.f32 0.0, %v1414
    %v1416 = vpop.f32.mrb[0].mxu0
    %1417 = vmatprep.mubr.bf16.mxu0 0
    %1418 = vmatmul.mubr.bf16.gmra.mrb[0].mxu0 %v961
    %v1419 = vpop.f32.mrb[0].mxu0
    %v1420 = vadd.f32 0.0, %v1419
    %v1421 = vpop.f32.mrb[0].mxu0
    %v1422 = vpop.f32.mrb[0].mxu0
    %v1423 = vadd.f32 0.0, %v1422
    %v1424 = vpop.f32.mrb[0].mxu0
    %1425 = vmatprep.mubr.bf16.mxu0 0
    %1426 = vmatmul.mubr.bf16.gmra.mrb[0].mxu0 %v962
    %v1427 = vpop.f32.mrb[0].mxu0
    %v1428 = vadd.f32 0.0, %v1427
    %v1429 = vpop.f32.mrb[0].mxu0
    %v1430 = vpop.f32.mrb[0].mxu0
    %v1431 = vadd.f32 0.0, %v1430
    %v1432 = vpop.f32.mrb[0].mxu0
    %1433 = vdwg.mxu0
    %v1434 = vadd.f32 %v1251, %v1372
    %v1435 = vadd.f32 %v1255, %v1375
    %v1436 = vadd.f32 %v1261, %v1380
    %v1437 = vadd.f32 %v1265, %v1383
    %v1438 = vadd.f32 %v1271, %v1388
    %v1439 = vadd.f32 %v1275, %v1391
    %v1440 = vadd.f32 %v1281, %v1396
    %v1441 = vadd.f32 %v1285, %v1399
    %v1442 = vadd.f32 %v1291, %v1404
    %v1443 = vadd.f32 %v1295, %v1407
    %v1444 = vadd.f32 %v1301, %v1412
    %v1445 = vadd.f32 %v1305, %v1415
    %v1446 = vadd.f32 %v1311, %v1420
    %v1447 = vadd.f32 %v1315, %v1423
    %v1448 = vadd.f32 %v1321, %v1428
    %v1449 = vadd.f32 %v1325, %v1431
    %v1450 = vmax.f32 %v1434, 0.0
    %v1451 = vmax.f32 %v1435, 0.0
    %v1452 = vmax.f32 %v1436, 0.0
    %v1453 = vmax.f32 %v1437, 0.0
    %v1454 = vmax.f32 %v1438, 0.0
    %v1455 = vmax.f32 %v1439, 0.0
    %v1456 = vmax.f32 %v1440, 0.0
    %v1457 = vmax.f32 %v1441, 0.0
    %v1458 = vmax.f32 %v1442, 0.0
    %v1459 = vmax.f32 %v1443, 0.0
    %v1460 = vmax.f32 %v1444, 0.0
    %v1461 = vmax.f32 %v1445, 0.0
    %v1462 = vmax.f32 %v1446, 0.0
    %v1463 = vmax.f32 %v1447, 0.0
    %v1464 = vmax.f32 %v1448, 0.0
    %v1465 = vmax.f32 %v1449, 0.0
    %v1466 = vpack.c.bf16 %v1451, %v1450
    %v1467 = vpack.c.bf16 %v1453, %v1452
    %v1468 = vpack.c.bf16 %v1455, %v1454
    %v1469 = vpack.c.bf16 %v1457, %v1456
    %v1470 = vpack.c.bf16 %v1459, %v1458
    %v1471 = vpack.c.bf16 %v1461, %v1460
    %v1472 = vpack.c.bf16 %v1463, %v1462
    %v1473 = vpack.c.bf16 %v1465, %v1464
    %s1474 = scalar_lea.vmem [#allocation10], 128
    %v1475 = vld [vmem:[%s1474] sm:$0xff]
    %v1476 = vld [vmem:[%s1474 + $0x8] sm:$0xff]
    %v1477 = vld [vmem:[%s1474 + $0x10] sm:$0xff]
    %v1478 = vld [vmem:[%s1474 + $0x18] sm:$0xff]
    %v1479 = vld [vmem:[%s1474 + $0x20] sm:$0xff]
    %v1480 = vld [vmem:[%s1474 + $0x28] sm:$0xff]
    %v1481 = vld [vmem:[%s1474 + $0x30] sm:$0xff]
    %v1482 = vld [vmem:[%s1474 + $0x38] sm:$0xff]
    %v1483 = vld [vmem:[%s1474 + $0x40] sm:$0xff]
    %v1484 = vld [vmem:[%s1474 + $0x48] sm:$0xff]
    %v1485 = vld [vmem:[%s1474 + $0x50] sm:$0xff]
    %v1486 = vld [vmem:[%s1474 + $0x58] sm:$0xff]
    %v1487 = vld [vmem:[%s1474 + $0x60] sm:$0xff]
    %v1488 = vld [vmem:[%s1474 + $0x68] sm:$0xff]
    %v1489 = vld [vmem:[%s1474 + $0x70] sm:$0xff]
    %v1490 = vld [vmem:[%s1474 + $0x78] sm:$0xff]
    %s1491 = scalar_lea.vmem %s9, 2
    %v1492 = vld [vmem:[%s1491] sm:$0x3]
    %v1494 = vlaneseq
    %v1495 = vshrl.u32 %v1494, 7
    %v1496 = vsub.s32 0, %v1495
    %v1497 = vrot.slane %v1492, %v1496
    %v1498 = vlaneseq
    %v1499 = vshrl.u32 %v1498, 7
    %v1500 = vsub.s32 1, %v1499
    %v1501 = vrot.slane %v1492, %v1500
    %v1520 = vunpack.c.l.b16 %v1475
    %v1521 = vunpack.c.h.b16 %v1475
    %v1522 = vunpack.c.l.b16 %v1476
    %v1523 = vunpack.c.h.b16 %v1476
    %v1524 = vunpack.c.l.b16 %v1477
    %v1525 = vunpack.c.h.b16 %v1477
    %v1526 = vunpack.c.l.b16 %v1478
    %v1527 = vunpack.c.h.b16 %v1478
    %v1528 = vunpack.c.l.b16 %v1479
    %v1529 = vunpack.c.h.b16 %v1479
    %v1530 = vunpack.c.l.b16 %v1480
    %v1531 = vunpack.c.h.b16 %v1480
    %v1532 = vunpack.c.l.b16 %v1481
    %v1533 = vunpack.c.h.b16 %v1481
    %v1534 = vunpack.c.l.b16 %v1482
    %v1535 = vunpack.c.h.b16 %v1482
    %v1536 = vunpack.c.l.b16 %v1483
    %v1537 = vunpack.c.h.b16 %v1483
    %v1538 = vunpack.c.l.b16 %v1484
    %v1539 = vunpack.c.h.b16 %v1484
    %v1540 = vunpack.c.l.b16 %v1485
    %v1541 = vunpack.c.h.b16 %v1485
    %v1542 = vunpack.c.l.b16 %v1486
    %v1543 = vunpack.c.h.b16 %v1486
    %v1544 = vunpack.c.l.b16 %v1487
    %v1545 = vunpack.c.h.b16 %v1487
    %v1546 = vunpack.c.l.b16 %v1488
    %v1547 = vunpack.c.h.b16 %v1488
    %v1548 = vunpack.c.l.b16 %v1489
    %v1549 = vunpack.c.h.b16 %v1489
    %v1550 = vunpack.c.l.b16 %v1490
    %v1551 = vunpack.c.h.b16 %v1490
    %v1552 = vpack.c.b16 %v1522, %v1520
    %v1553 = vpack.c.b16 %v1523, %v1521
    %v1554 = vpack.c.b16 %v1526, %v1524
    %v1555 = vpack.c.b16 %v1527, %v1525
    %v1556 = vpack.c.b16 %v1530, %v1528
    %v1557 = vpack.c.b16 %v1531, %v1529
    %v1558 = vpack.c.b16 %v1534, %v1532
    %v1559 = vpack.c.b16 %v1535, %v1533
    %v1560 = vpack.c.b16 %v1538, %v1536
    %v1561 = vpack.c.b16 %v1539, %v1537
    %v1562 = vpack.c.b16 %v1542, %v1540
    %v1563 = vpack.c.b16 %v1543, %v1541
    %v1564 = vpack.c.b16 %v1546, %v1544
    %v1565 = vpack.c.b16 %v1547, %v1545
    %v1566 = vpack.c.b16 %v1550, %v1548
    %v1567 = vpack.c.b16 %v1551, %v1549
    %1584 = vmatprep.subr.bf16.mxu0 %v1553
    %1585 = vmatpush1.bf16.msra.mxu0 %v1552
    %1586 = vmatprep.subr.bf16.mxu0 %v1555
    %1587 = vmatpush1.bf16.msra.mxu0 %v1554
    %1588 = vmatprep.subr.bf16.mxu0 %v1557
    %1589 = vmatpush1.bf16.msra.mxu0 %v1556
    %1590 = vmatprep.subr.bf16.mxu0 %v1559
    %1591 = vmatpush1.bf16.msra.mxu0 %v1558
    %1592 = vmatprep.subr.bf16.mxu0 %v1561
    %1593 = vmatpush1.bf16.msra.mxu0 %v1560
    %1594 = vmatprep.subr.bf16.mxu0 %v1563
    %1595 = vmatpush1.bf16.msra.mxu0 %v1562
    %1596 = vmatprep.subr.bf16.mxu0 %v1565
    %1597 = vmatpush1.bf16.msra.mxu0 %v1564
    %1598 = vmatprep.subr.bf16.mxu0 %v1567
    %1599 = vmatpush1.bf16.msra.mxu0 %v1566
    %1600 = vmatprep.subr.bf16.mxu0 0
    %1601 = vmatpush1.bf16.msra.mxu0 0
    %1602 = vmatprep.subr.bf16.mxu0 0
    %1603 = vmatpush1.bf16.msra.mxu0 0
    %1604 = vmatprep.subr.bf16.mxu0 0
    %1605 = vmatpush1.bf16.msra.mxu0 0
    %1606 = vmatprep.subr.bf16.mxu0 0
    %1607 = vmatpush1.bf16.msra.mxu0 0
    %1608 = vmatprep.subr.bf16.mxu0 0
    %1609 = vmatpush1.bf16.msra.mxu0 0
    %1610 = vmatprep.subr.bf16.mxu0 0
    %1611 = vmatpush1.bf16.msra.mxu0 0
    %1612 = vmatprep.subr.bf16.mxu0 0
    %1613 = vmatpush1.bf16.msra.mxu0 0
    %1614 = vmatprep.subr.bf16.mxu0 0
    %1615 = vmatpush1.bf16.msra.mxu0 0
    %1616 = vmatprep.mubr.bf16.mxu0 0
    %1617 = vmatmul.mubr.bf16.gmra.mrb[0].mxu0 %v1466
    %v1618 = vpop.f32.mrb[0].mxu0
    %v1619 = vadd.f32 %v1497, %v1618
    %v1620 = vpop.f32.mrb[0].mxu0
    %v1621 = vadd.f32 %v1501, %v1620
    %v1622 = vpop.f32.mrb[0].mxu0
    %v1623 = vadd.f32 %v1497, %v1622
    %v1624 = vpop.f32.mrb[0].mxu0
    %v1625 = vadd.f32 %v1501, %v1624
    %1626 = vmatprep.mubr.bf16.mxu0 0
    %1627 = vmatmul.mubr.bf16.gmra.mrb[0].mxu0 %v1467
    %v1628 = vpop.f32.mrb[0].mxu0
    %v1629 = vadd.f32 %v1497, %v1628
    %v1630 = vpop.f32.mrb[0].mxu0
    %v1631 = vadd.f32 %v1501, %v1630
    %v1632 = vpop.f32.mrb[0].mxu0
    %v1633 = vadd.f32 %v1497, %v1632
    %v1634 = vpop.f32.mrb[0].mxu0
    %v1635 = vadd.f32 %v1501, %v1634
    %1636 = vmatprep.mubr.bf16.mxu0 0
    %1637 = vmatmul.mubr.bf16.gmra.mrb[0].mxu0 %v1468
    %v1638 = vpop.f32.mrb[0].mxu0
    %v1639 = vadd.f32 %v1497, %v1638
    %v1640 = vpop.f32.mrb[0].mxu0
    %v1641 = vadd.f32 %v1501, %v1640
    %v1642 = vpop.f32.mrb[0].mxu0
    %v1643 = vadd.f32 %v1497, %v1642
    %v1644 = vpop.f32.mrb[0].mxu0
    %v1645 = vadd.f32 %v1501, %v1644
    %1646 = vmatprep.mubr.bf16.mxu0 0
    %1647 = vmatmul.mubr.bf16.gmra.mrb[0].mxu0 %v1469
    %v1648 = vpop.f32.mrb[0].mxu0
    %v1649 = vadd.f32 %v1497, %v1648
    %v1650 = vpop.f32.mrb[0].mxu0
    %v1651 = vadd.f32 %v1501, %v1650
    %v1652 = vpop.f32.mrb[0].mxu0
    %v1653 = vadd.f32 %v1497, %v1652
    %v1654 = vpop.f32.mrb[0].mxu0
    %v1655 = vadd.f32 %v1501, %v1654
    %1656 = vmatprep.mubr.bf16.mxu0 0
    %1657 = vmatmul.mubr.bf16.gmra.mrb[0].mxu0 %v1470
    %v1658 = vpop.f32.mrb[0].mxu0
    %v1659 = vadd.f32 %v1497, %v1658
    %v1660 = vpop.f32.mrb[0].mxu0
    %v1661 = vadd.f32 %v1501, %v1660
    %v1662 = vpop.f32.mrb[0].mxu0
    %v1663 = vadd.f32 %v1497, %v1662
    %v1664 = vpop.f32.mrb[0].mxu0
    %v1665 = vadd.f32 %v1501, %v1664
    %1666 = vmatprep.mubr.bf16.mxu0 0
    %1667 = vmatmul.mubr.bf16.gmra.mrb[0].mxu0 %v1471
    %v1668 = vpop.f32.mrb[0].mxu0
    %v1669 = vadd.f32 %v1497, %v1668
    %v1670 = vpop.f32.mrb[0].mxu0
    %v1671 = vadd.f32 %v1501, %v1670
    %v1672 = vpop.f32.mrb[0].mxu0
    %v1673 = vadd.f32 %v1497, %v1672
    %v1674 = vpop.f32.mrb[0].mxu0
    %v1675 = vadd.f32 %v1501, %v1674
    %1676 = vmatprep.mubr.bf16.mxu0 0
    %1677 = vmatmul.mubr.bf16.gmra.mrb[0].mxu0 %v1472
    %v1678 = vpop.f32.mrb[0].mxu0
    %v1679 = vadd.f32 %v1497, %v1678
    %v1680 = vpop.f32.mrb[0].mxu0
    %v1681 = vadd.f32 %v1501, %v1680
    %v1682 = vpop.f32.mrb[0].mxu0
    %v1683 = vadd.f32 %v1497, %v1682
    %v1684 = vpop.f32.mrb[0].mxu0
    %v1685 = vadd.f32 %v1501, %v1684
    %1686 = vmatprep.mubr.bf16.mxu0 0
    %1687 = vmatmul.mubr.bf16.gmra.mrb[0].mxu0 %v1473
    %v1688 = vpop.f32.mrb[0].mxu0
    %v1689 = vadd.f32 %v1497, %v1688
    %v1690 = vpop.f32.mrb[0].mxu0
    %v1691 = vadd.f32 %v1501, %v1690
    %v1692 = vpop.f32.mrb[0].mxu0
    %v1693 = vadd.f32 %v1497, %v1692
    %v1694 = vpop.f32.mrb[0].mxu0
    %v1695 = vadd.f32 %v1501, %v1694
    %1696 = vdwg.mxu0
    %v1697 = vpack.c.bf16 %v1625, %v1621
    %v1698 = vpack.c.bf16 %v1635, %v1631
    %v1699 = vpack.c.bf16 %v1645, %v1641
    %v1700 = vpack.c.bf16 %v1655, %v1651
    %v1701 = vpack.c.bf16 %v1665, %v1661
    %v1702 = vpack.c.bf16 %v1675, %v1671
    %v1703 = vpack.c.bf16 %v1685, %v1681
    %v1704 = vpack.c.bf16 %v1695, %v1691
    %1705 = vmatprep.subr.bf16.mxu0 0
    %1706 = vmatpush1.bf16.msra.mxu0 %v1697
    %1707 = vmatprep.subr.bf16.mxu0 0
    %1708 = vmatpush1.bf16.msra.mxu0 %v1698
    %1709 = vmatprep.subr.bf16.mxu0 0
    %1710 = vmatpush1.bf16.msra.mxu0 %v1699
    %1711 = vmatprep.subr.bf16.mxu0 0
    %1712 = vmatpush1.bf16.msra.mxu0 %v1700
    %1713 = vmatprep.subr.bf16.mxu0 0
    %1714 = vmatpush1.bf16.msra.mxu0 %v1701
    %1715 = vmatprep.subr.bf16.mxu0 0
    %1716 = vmatpush1.bf16.msra.mxu0 %v1702
    %1717 = vmatprep.subr.bf16.mxu0 0
    %1718 = vmatpush1.bf16.msra.mxu0 %v1703
    %1719 = vmatprep.subr.bf16.mxu0 0
    %1720 = vmatpush1.bf16.msra.mxu0 %v1704
    %1721 = vmatprep.subr.bf16.mxu0 0
    %1722 = vmatpush1.bf16.msra.mxu0 0
    %1723 = vmatprep.subr.bf16.mxu0 0
    %1724 = vmatpush1.bf16.msra.mxu0 0
    %1725 = vmatprep.subr.bf16.mxu0 0
    %1726 = vmatpush1.bf16.msra.mxu0 0
    %1727 = vmatprep.subr.bf16.mxu0 0
    %1728 = vmatpush1.bf16.msra.mxu0 0
    %1729 = vmatprep.subr.bf16.mxu0 0
    %1730 = vmatpush1.bf16.msra.mxu0 0
    %1731 = vmatprep.subr.bf16.mxu0 0
    %1732 = vmatpush1.bf16.msra.mxu0 0
    %1733 = vmatprep.subr.bf16.mxu0 0
    %1734 = vmatpush1.bf16.msra.mxu0 0
    %1735 = vmatprep.subr.bf16.mxu0 0
    %1736 = vmatpush1.bf16.msra.mxu0 0
    %1737 = vmatprep.mubr.bf16.mxu0 0
    %1738 = vmatmul.mubr.bf16.gmra.mrb[0].mxu0 %v955
    %v1739 = vpop.f32.mrb[0].mxu0
    %v1740 = vadd.f32 0.0, %v1739
    %v1741 = vpop.f32.mrb[0].mxu0
    %v1742 = vpop.f32.mrb[0].mxu0
    %v1743 = vadd.f32 0.0, %v1742
    %v1744 = vpop.f32.mrb[0].mxu0
    %1745 = vmatprep.mubr.bf16.mxu0 0
    %1746 = vmatmul.mubr.bf16.gmra.mrb[0].mxu0 %v956
    %v1747 = vpop.f32.mrb[0].mxu0
    %v1748 = vadd.f32 0.0, %v1747
    %v1749 = vpop.f32.mrb[0].mxu0
    %v1750 = vpop.f32.mrb[0].mxu0
    %v1751 = vadd.f32 0.0, %v1750
    %v1752 = vpop.f32.mrb[0].mxu0
    %1753 = vmatprep.mubr.bf16.mxu0 0
    %1754 = vmatmul.mubr.bf16.gmra.mrb[0].mxu0 %v957
    %v1755 = vpop.f32.mrb[0].mxu0
    %v1756 = vadd.f32 0.0, %v1755
    %v1757 = vpop.f32.mrb[0].mxu0
    %v1758 = vpop.f32.mrb[0].mxu0
    %v1759 = vadd.f32 0.0, %v1758
    %v1760 = vpop.f32.mrb[0].mxu0
    %1761 = vmatprep.mubr.bf16.mxu0 0
    %1762 = vmatmul.mubr.bf16.gmra.mrb[0].mxu0 %v958
    %v1763 = vpop.f32.mrb[0].mxu0
    %v1764 = vadd.f32 0.0, %v1763
    %v1765 = vpop.f32.mrb[0].mxu0
    %v1766 = vpop.f32.mrb[0].mxu0
    %v1767 = vadd.f32 0.0, %v1766
    %v1768 = vpop.f32.mrb[0].mxu0
    %1769 = vmatprep.mubr.bf16.mxu0 0
    %1770 = vmatmul.mubr.bf16.gmra.mrb[0].mxu0 %v959
    %v1771 = vpop.f32.mrb[0].mxu0
    %v1772 = vadd.f32 0.0, %v1771
    %v1773 = vpop.f32.mrb[0].mxu0
    %v1774 = vpop.f32.mrb[0].mxu0
    %v1775 = vadd.f32 0.0, %v1774
    %v1776 = vpop.f32.mrb[0].mxu0
    %1777 = vmatprep.mubr.bf16.mxu0 0
    %1778 = vmatmul.mubr.bf16.gmra.mrb[0].mxu0 %v960
    %v1779 = vpop.f32.mrb[0].mxu0
    %v1780 = vadd.f32 0.0, %v1779
    %v1781 = vpop.f32.mrb[0].mxu0
    %v1782 = vpop.f32.mrb[0].mxu0
    %v1783 = vadd.f32 0.0, %v1782
    %v1784 = vpop.f32.mrb[0].mxu0
    %1785 = vmatprep.mubr.bf16.mxu0 0
    %1786 = vmatmul.mubr.bf16.gmra.mrb[0].mxu0 %v961
    %v1787 = vpop.f32.mrb[0].mxu0
    %v1788 = vadd.f32 0.0, %v1787
    %v1789 = vpop.f32.mrb[0].mxu0
    %v1790 = vpop.f32.mrb[0].mxu0
    %v1791 = vadd.f32 0.0, %v1790
    %v1792 = vpop.f32.mrb[0].mxu0
    %1793 = vmatprep.mubr.bf16.mxu0 0
    %1794 = vmatmul.mubr.bf16.gmra.mrb[0].mxu0 %v962
    %v1795 = vpop.f32.mrb[0].mxu0
    %v1796 = vadd.f32 0.0, %v1795
    %v1797 = vpop.f32.mrb[0].mxu0
    %v1798 = vpop.f32.mrb[0].mxu0
    %v1799 = vadd.f32 0.0, %v1798
    %v1800 = vpop.f32.mrb[0].mxu0
    %1801 = vdwg.mxu0
    %v1802 = vadd.f32 %v1619, %v1740
    %v1803 = vadd.f32 %v1623, %v1743
    %v1804 = vadd.f32 %v1629, %v1748
    %v1805 = vadd.f32 %v1633, %v1751
    %v1806 = vadd.f32 %v1639, %v1756
    %v1807 = vadd.f32 %v1643, %v1759
    %v1808 = vadd.f32 %v1649, %v1764
    %v1809 = vadd.f32 %v1653, %v1767
    %v1810 = vadd.f32 %v1659, %v1772
    %v1811 = vadd.f32 %v1663, %v1775
    %v1812 = vadd.f32 %v1669, %v1780
    %v1813 = vadd.f32 %v1673, %v1783
    %v1814 = vadd.f32 %v1679, %v1788
    %v1815 = vadd.f32 %v1683, %v1791
    %v1816 = vadd.f32 %v1689, %v1796
    %v1817 = vadd.f32 %v1693, %v1799
    %v1818 = vmax.f32 %v1802, 0.0
    %v1819 = vmax.f32 %v1803, 0.0
    %v1820 = vmax.f32 %v1804, 0.0
    %v1821 = vmax.f32 %v1805, 0.0
    %v1822 = vmax.f32 %v1806, 0.0
    %v1823 = vmax.f32 %v1807, 0.0
    %v1824 = vmax.f32 %v1808, 0.0
    %v1825 = vmax.f32 %v1809, 0.0
    %v1826 = vmax.f32 %v1810, 0.0
    %v1827 = vmax.f32 %v1811, 0.0
    %v1828 = vmax.f32 %v1812, 0.0
    %v1829 = vmax.f32 %v1813, 0.0
    %v1830 = vmax.f32 %v1814, 0.0
    %v1831 = vmax.f32 %v1815, 0.0
    %v1832 = vmax.f32 %v1816, 0.0
    %v1833 = vmax.f32 %v1817, 0.0
    %v1834 = vpack.c.bf16 %v1819, %v1818
    %v1835 = vpack.c.bf16 %v1821, %v1820
    %v1836 = vpack.c.bf16 %v1823, %v1822
    %v1837 = vpack.c.bf16 %v1825, %v1824
    %v1838 = vpack.c.bf16 %v1827, %v1826
    %v1839 = vpack.c.bf16 %v1829, %v1828
    %v1840 = vpack.c.bf16 %v1831, %v1830
    %v1841 = vpack.c.bf16 %v1833, %v1832
    %s1842 = scalar_lea.vmem [#allocation10], 256
    %v1843 = vld [vmem:[%s1842] sm:$0xff]
    %v1844 = vld [vmem:[%s1842 + $0x8] sm:$0xff]
    %v1845 = vld [vmem:[%s1842 + $0x10] sm:$0xff]
    %v1846 = vld [vmem:[%s1842 + $0x18] sm:$0xff]
    %v1847 = vld [vmem:[%s1842 + $0x20] sm:$0xff]
    %v1848 = vld [vmem:[%s1842 + $0x28] sm:$0xff]
    %v1849 = vld [vmem:[%s1842 + $0x30] sm:$0xff]
    %v1850 = vld [vmem:[%s1842 + $0x38] sm:$0xff]
    %v1851 = vld [vmem:[%s1842 + $0x40] sm:$0xff]
    %v1852 = vld [vmem:[%s1842 + $0x48] sm:$0xff]
    %v1853 = vld [vmem:[%s1842 + $0x50] sm:$0xff]
    %v1854 = vld [vmem:[%s1842 + $0x58] sm:$0xff]
    %v1855 = vld [vmem:[%s1842 + $0x60] sm:$0xff]
    %v1856 = vld [vmem:[%s1842 + $0x68] sm:$0xff]
    %v1857 = vld [vmem:[%s1842 + $0x70] sm:$0xff]
    %v1858 = vld [vmem:[%s1842 + $0x78] sm:$0xff]
    %s1859 = scalar_lea.vmem %s9, 4
    %v1860 = vld [vmem:[%s1859] sm:$0x3]
    %v1862 = vlaneseq
    %v1863 = vshrl.u32 %v1862, 7
    %v1864 = vsub.s32 0, %v1863
    %v1865 = vrot.slane %v1860, %v1864
    %v1866 = vlaneseq
    %v1867 = vshrl.u32 %v1866, 7
    %v1868 = vsub.s32 1, %v1867
    %v1869 = vrot.slane %v1860, %v1868
    %v1888 = vunpack.c.l.b16 %v1843
    %v1889 = vunpack.c.h.b16 %v1843
    %v1890 = vunpack.c.l.b16 %v1844
    %v1891 = vunpack.c.h.b16 %v1844
    %v1892 = vunpack.c.l.b16 %v1845
    %v1893 = vunpack.c.h.b16 %v1845
    %v1894 = vunpack.c.l.b16 %v1846
    %v1895 = vunpack.c.h.b16 %v1846
    %v1896 = vunpack.c.l.b16 %v1847
    %v1897 = vunpack.c.h.b16 %v1847
    %v1898 = vunpack.c.l.b16 %v1848
    %v1899 = vunpack.c.h.b16 %v1848
    %v1900 = vunpack.c.l.b16 %v1849
    %v1901 = vunpack.c.h.b16 %v1849
    %v1902 = vunpack.c.l.b16 %v1850
    %v1903 = vunpack.c.h.b16 %v1850
    %v1904 = vunpack.c.l.b16 %v1851
    %v1905 = vunpack.c.h.b16 %v1851
    %v1906 = vunpack.c.l.b16 %v1852
    %v1907 = vunpack.c.h.b16 %v1852
    %v1908 = vunpack.c.l.b16 %v1853
    %v1909 = vunpack.c.h.b16 %v1853
    %v1910 = vunpack.c.l.b16 %v1854
    %v1911 = vunpack.c.h.b16 %v1854
    %v1912 = vunpack.c.l.b16 %v1855
    %v1913 = vunpack.c.h.b16 %v1855
    %v1914 = vunpack.c.l.b16 %v1856
    %v1915 = vunpack.c.h.b16 %v1856
    %v1916 = vunpack.c.l.b16 %v1857
    %v1917 = vunpack.c.h.b16 %v1857
    %v1918 = vunpack.c.l.b16 %v1858
    %v1919 = vunpack.c.h.b16 %v1858
    %v1920 = vpack.c.b16 %v1890, %v1888
    %v1921 = vpack.c.b16 %v1891, %v1889
    %v1922 = vpack.c.b16 %v1894, %v1892
    %v1923 = vpack.c.b16 %v1895, %v1893
    %v1924 = vpack.c.b16 %v1898, %v1896
    %v1925 = vpack.c.b16 %v1899, %v1897
    %v1926 = vpack.c.b16 %v1902, %v1900
    %v1927 = vpack.c.b16 %v1903, %v1901
    %v1928 = vpack.c.b16 %v1906, %v1904
    %v1929 = vpack.c.b16 %v1907, %v1905
    %v1930 = vpack.c.b16 %v1910, %v1908
    %v1931 = vpack.c.b16 %v1911, %v1909
    %v1932 = vpack.c.b16 %v1914, %v1912
    %v1933 = vpack.c.b16 %v1915, %v1913
    %v1934 = vpack.c.b16 %v1918, %v1916
    %v1935 = vpack.c.b16 %v1919, %v1917
    %1952 = vmatprep.subr.bf16.mxu0 %v1921
    %1953 = vmatpush1.bf16.msra.mxu0 %v1920
    %1954 = vmatprep.subr.bf16.mxu0 %v1923
    %1955 = vmatpush1.bf16.msra.mxu0 %v1922
    %1956 = vmatprep.subr.bf16.mxu0 %v1925
    %1957 = vmatpush1.bf16.msra.mxu0 %v1924
    %1958 = vmatprep.subr.bf16.mxu0 %v1927
    %1959 = vmatpush1.bf16.msra.mxu0 %v1926
    %1960 = vmatprep.subr.bf16.mxu0 %v1929
    %1961 = vmatpush1.bf16.msra.mxu0 %v1928
    %1962 = vmatprep.subr.bf16.mxu0 %v1931
    %1963 = vmatpush1.bf16.msra.mxu0 %v1930
    %1964 = vmatprep.subr.bf16.mxu0 %v1933
    %1965 = vmatpush1.bf16.msra.mxu0 %v1932
    %1966 = vmatprep.subr.bf16.mxu0 %v1935
    %1967 = vmatpush1.bf16.msra.mxu0 %v1934
    %1968 = vmatprep.subr.bf16.mxu0 0
    %1969 = vmatpush1.bf16.msra.mxu0 0
    %1970 = vmatprep.subr.bf16.mxu0 0
    %1971 = vmatpush1.bf16.msra.mxu0 0
    %1972 = vmatprep.subr.bf16.mxu0 0
    %1973 = vmatpush1.bf16.msra.mxu0 0
    %1974 = vmatprep.subr.bf16.mxu0 0
    %1975 = vmatpush1.bf16.msra.mxu0 0
    %1976 = vmatprep.subr.bf16.mxu0 0
    %1977 = vmatpush1.bf16.msra.mxu0 0
    %1978 = vmatprep.subr.bf16.mxu0 0
    %1979 = vmatpush1.bf16.msra.mxu0 0
    %1980 = vmatprep.subr.bf16.mxu0 0
    %1981 = vmatpush1.bf16.msra.mxu0 0
    %1982 = vmatprep.subr.bf16.mxu0 0
    %1983 = vmatpush1.bf16.msra.mxu0 0
    %1984 = vmatprep.mubr.bf16.mxu0 0
    %1985 = vmatmul.mubr.bf16.gmra.mrb[0].mxu0 %v1834
    %v1986 = vpop.f32.mrb[0].mxu0
    %v1987 = vadd.f32 %v1865, %v1986
    %v1988 = vpop.f32.mrb[0].mxu0
    %v1989 = vadd.f32 %v1869, %v1988
    %v1990 = vpop.f32.mrb[0].mxu0
    %v1991 = vadd.f32 %v1865, %v1990
    %v1992 = vpop.f32.mrb[0].mxu0
    %v1993 = vadd.f32 %v1869, %v1992
    %1994 = vmatprep.mubr.bf16.mxu0 0
    %1995 = vmatmul.mubr.bf16.gmra.mrb[0].mxu0 %v1835
    %v1996 = vpop.f32.mrb[0].mxu0
    %v1997 = vadd.f32 %v1865, %v1996
    %v1998 = vpop.f32.mrb[0].mxu0
    %v1999 = vadd.f32 %v1869, %v1998
    %v2000 = vpop.f32.mrb[0].mxu0
    %v2001 = vadd.f32 %v1865, %v2000
    %v2002 = vpop.f32.mrb[0].mxu0
    %v2003 = vadd.f32 %v1869, %v2002
    %2004 = vmatprep.mubr.bf16.mxu0 0
    %2005 = vmatmul.mubr.bf16.gmra.mrb[0].mxu0 %v1836
    %v2006 = vpop.f32.mrb[0].mxu0
    %v2007 = vadd.f32 %v1865, %v2006
    %v2008 = vpop.f32.mrb[0].mxu0
    %v2009 = vadd.f32 %v1869, %v2008
    %v2010 = vpop.f32.mrb[0].mxu0
    %v2011 = vadd.f32 %v1865, %v2010
    %v2012 = vpop.f32.mrb[0].mxu0
    %v2013 = vadd.f32 %v1869, %v2012
    %2014 = vmatprep.mubr.bf16.mxu0 0
    %2015 = vmatmul.mubr.bf16.gmra.mrb[0].mxu0 %v1837
    %v2016 = vpop.f32.mrb[0].mxu0
    %v2017 = vadd.f32 %v1865, %v2016
    %v2018 = vpop.f32.mrb[0].mxu0
    %v2019 = vadd.f32 %v1869, %v2018
    %v2020 = vpop.f32.mrb[0].mxu0
    %v2021 = vadd.f32 %v1865, %v2020
    %v2022 = vpop.f32.mrb[0].mxu0
    %v2023 = vadd.f32 %v1869, %v2022
    %2024 = vmatprep.mubr.bf16.mxu0 0
    %2025 = vmatmul.mubr.bf16.gmra.mrb[0].mxu0 %v1838
    %v2026 = vpop.f32.mrb[0].mxu0
    %v2027 = vadd.f32 %v1865, %v2026
    %v2028 = vpop.f32.mrb[0].mxu0
    %v2029 = vadd.f32 %v1869, %v2028
    %v2030 = vpop.f32.mrb[0].mxu0
    %v2031 = vadd.f32 %v1865, %v2030
    %v2032 = vpop.f32.mrb[0].mxu0
    %v2033 = vadd.f32 %v1869, %v2032
    %2034 = vmatprep.mubr.bf16.mxu0 0
    %2035 = vmatmul.mubr.bf16.gmra.mrb[0].mxu0 %v1839
    %v2036 = vpop.f32.mrb[0].mxu0
    %v2037 = vadd.f32 %v1865, %v2036
    %v2038 = vpop.f32.mrb[0].mxu0
    %v2039 = vadd.f32 %v1869, %v2038
    %v2040 = vpop.f32.mrb[0].mxu0
    %v2041 = vadd.f32 %v1865, %v2040
    %v2042 = vpop.f32.mrb[0].mxu0
    %v2043 = vadd.f32 %v1869, %v2042
    %2044 = vmatprep.mubr.bf16.mxu0 0
    %2045 = vmatmul.mubr.bf16.gmra.mrb[0].mxu0 %v1840
    %v2046 = vpop.f32.mrb[0].mxu0
    %v2047 = vadd.f32 %v1865, %v2046
    %v2048 = vpop.f32.mrb[0].mxu0
    %v2049 = vadd.f32 %v1869, %v2048
    %v2050 = vpop.f32.mrb[0].mxu0
    %v2051 = vadd.f32 %v1865, %v2050
    %v2052 = vpop.f32.mrb[0].mxu0
    %v2053 = vadd.f32 %v1869, %v2052
    %2054 = vmatprep.mubr.bf16.mxu0 0
    %2055 = vmatmul.mubr.bf16.gmra.mrb[0].mxu0 %v1841
    %v2056 = vpop.f32.mrb[0].mxu0
    %v2057 = vadd.f32 %v1865, %v2056
    %v2058 = vpop.f32.mrb[0].mxu0
    %v2059 = vadd.f32 %v1869, %v2058
    %v2060 = vpop.f32.mrb[0].mxu0
    %v2061 = vadd.f32 %v1865, %v2060
    %v2062 = vpop.f32.mrb[0].mxu0
    %v2063 = vadd.f32 %v1869, %v2062
    %2064 = vdwg.mxu0
    %v2065 = vpack.c.bf16 %v1993, %v1989
    %v2066 = vpack.c.bf16 %v2003, %v1999
    %v2067 = vpack.c.bf16 %v2013, %v2009
    %v2068 = vpack.c.bf16 %v2023, %v2019
    %v2069 = vpack.c.bf16 %v2033, %v2029
    %v2070 = vpack.c.bf16 %v2043, %v2039
    %v2071 = vpack.c.bf16 %v2053, %v2049
    %v2072 = vpack.c.bf16 %v2063, %v2059
    %2073 = vmatprep.subr.bf16.mxu0 0
    %2074 = vmatpush1.bf16.msra.mxu0 %v2065
    %2075 = vmatprep.subr.bf16.mxu0 0
    %2076 = vmatpush1.bf16.msra.mxu0 %v2066
    %2077 = vmatprep.subr.bf16.mxu0 0
    %2078 = vmatpush1.bf16.msra.mxu0 %v2067
    %2079 = vmatprep.subr.bf16.mxu0 0
    %2080 = vmatpush1.bf16.msra.mxu0 %v2068
    %2081 = vmatprep.subr.bf16.mxu0 0
    %2082 = vmatpush1.bf16.msra.mxu0 %v2069
    %2083 = vmatprep.subr.bf16.mxu0 0
    %2084 = vmatpush1.bf16.msra.mxu0 %v2070
    %2085 = vmatprep.subr.bf16.mxu0 0
    %2086 = vmatpush1.bf16.msra.mxu0 %v2071
    %2087 = vmatprep.subr.bf16.mxu0 0
    %2088 = vmatpush1.bf16.msra.mxu0 %v2072
    %2089 = vmatprep.subr.bf16.mxu0 0
    %2090 = vmatpush1.bf16.msra.mxu0 0
    %2091 = vmatprep.subr.bf16.mxu0 0
    %2092 = vmatpush1.bf16.msra.mxu0 0
    %2093 = vmatprep.subr.bf16.mxu0 0
    %2094 = vmatpush1.bf16.msra.mxu0 0
    %2095 = vmatprep.subr.bf16.mxu0 0
    %2096 = vmatpush1.bf16.msra.mxu0 0
    %2097 = vmatprep.subr.bf16.mxu0 0
    %2098 = vmatpush1.bf16.msra.mxu0 0
    %2099 = vmatprep.subr.bf16.mxu0 0
    %2100 = vmatpush1.bf16.msra.mxu0 0
    %2101 = vmatprep.subr.bf16.mxu0 0
    %2102 = vmatpush1.bf16.msra.mxu0 0
    %2103 = vmatprep.subr.bf16.mxu0 0
    %2104 = vmatpush1.bf16.msra.mxu0 0
    %2105 = vmatprep.mubr.bf16.mxu0 0
    %2106 = vmatmul.mubr.bf16.gmra.mrb[0].mxu0 %v955
    %v2107 = vpop.f32.mrb[0].mxu0
    %v2108 = vadd.f32 0.0, %v2107
    %v2109 = vpop.f32.mrb[0].mxu0
    %v2110 = vpop.f32.mrb[0].mxu0
    %v2111 = vadd.f32 0.0, %v2110
    %v2112 = vpop.f32.mrb[0].mxu0
    %2113 = vmatprep.mubr.bf16.mxu0 0
    %2114 = vmatmul.mubr.bf16.gmra.mrb[0].mxu0 %v956
    %v2115 = vpop.f32.mrb[0].mxu0
    %v2116 = vadd.f32 0.0, %v2115
    %v2117 = vpop.f32.mrb[0].mxu0
    %v2118 = vpop.f32.mrb[0].mxu0
    %v2119 = vadd.f32 0.0, %v2118
    %v2120 = vpop.f32.mrb[0].mxu0
    %2121 = vmatprep.mubr.bf16.mxu0 0
    %2122 = vmatmul.mubr.bf16.gmra.mrb[0].mxu0 %v957
    %v2123 = vpop.f32.mrb[0].mxu0
    %v2124 = vadd.f32 0.0, %v2123
    %v2125 = vpop.f32.mrb[0].mxu0
    %v2126 = vpop.f32.mrb[0].mxu0
    %v2127 = vadd.f32 0.0, %v2126
    %v2128 = vpop.f32.mrb[0].mxu0
    %2129 = vmatprep.mubr.bf16.mxu0 0
    %2130 = vmatmul.mubr.bf16.gmra.mrb[0].mxu0 %v958
    %v2131 = vpop.f32.mrb[0].mxu0
    %v2132 = vadd.f32 0.0, %v2131
    %v2133 = vpop.f32.mrb[0].mxu0
    %v2134 = vpop.f32.mrb[0].mxu0
    %v2135 = vadd.f32 0.0, %v2134
    %v2136 = vpop.f32.mrb[0].mxu0
    %2137 = vmatprep.mubr.bf16.mxu0 0
    %2138 = vmatmul.mubr.bf16.gmra.mrb[0].mxu0 %v959
    %v2139 = vpop.f32.mrb[0].mxu0
    %v2140 = vadd.f32 0.0, %v2139
    %v2141 = vpop.f32.mrb[0].mxu0
    %v2142 = vpop.f32.mrb[0].mxu0
    %v2143 = vadd.f32 0.0, %v2142
    %v2144 = vpop.f32.mrb[0].mxu0
    %2145 = vmatprep.mubr.bf16.mxu0 0
    %2146 = vmatmul.mubr.bf16.gmra.mrb[0].mxu0 %v960
    %v2147 = vpop.f32.mrb[0].mxu0
    %v2148 = vadd.f32 0.0, %v2147
    %v2149 = vpop.f32.mrb[0].mxu0
    %v2150 = vpop.f32.mrb[0].mxu0
    %v2151 = vadd.f32 0.0, %v2150
    %v2152 = vpop.f32.mrb[0].mxu0
    %2153 = vmatprep.mubr.bf16.mxu0 0
    %2154 = vmatmul.mubr.bf16.gmra.mrb[0].mxu0 %v961
    %v2155 = vpop.f32.mrb[0].mxu0
    %v2156 = vadd.f32 0.0, %v2155
    %v2157 = vpop.f32.mrb[0].mxu0
    %v2158 = vpop.f32.mrb[0].mxu0
    %v2159 = vadd.f32 0.0, %v2158
    %v2160 = vpop.f32.mrb[0].mxu0
    %2161 = vmatprep.mubr.bf16.mxu0 0
    %2162 = vmatmul.mubr.bf16.gmra.mrb[0].mxu0 %v962
    %v2163 = vpop.f32.mrb[0].mxu0
    %v2164 = vadd.f32 0.0, %v2163
    %v2165 = vpop.f32.mrb[0].mxu0
    %v2166 = vpop.f32.mrb[0].mxu0
    %v2167 = vadd.f32 0.0, %v2166
    %v2168 = vpop.f32.mrb[0].mxu0
    %2169 = vdwg.mxu0
    %v2170 = vadd.f32 %v1987, %v2108
    %v2171 = vadd.f32 %v1991, %v2111
    %v2172 = vadd.f32 %v1997, %v2116
    %v2173 = vadd.f32 %v2001, %v2119
    %v2174 = vadd.f32 %v2007, %v2124
    %v2175 = vadd.f32 %v2011, %v2127
    %v2176 = vadd.f32 %v2017, %v2132
    %v2177 = vadd.f32 %v2021, %v2135
    %v2178 = vadd.f32 %v2027, %v2140
    %v2179 = vadd.f32 %v2031, %v2143
    %v2180 = vadd.f32 %v2037, %v2148
    %v2181 = vadd.f32 %v2041, %v2151
    %v2182 = vadd.f32 %v2047, %v2156
    %v2183 = vadd.f32 %v2051, %v2159
    %v2184 = vadd.f32 %v2057, %v2164
    %v2185 = vadd.f32 %v2061, %v2167
    %v2186 = vmax.f32 %v2170, 0.0
    %v2187 = vmax.f32 %v2171, 0.0
    %v2188 = vmax.f32 %v2172, 0.0
    %v2189 = vmax.f32 %v2173, 0.0
    %v2190 = vmax.f32 %v2174, 0.0
    %v2191 = vmax.f32 %v2175, 0.0
    %v2192 = vmax.f32 %v2176, 0.0
    %v2193 = vmax.f32 %v2177, 0.0
    %v2194 = vmax.f32 %v2178, 0.0
    %v2195 = vmax.f32 %v2179, 0.0
    %v2196 = vmax.f32 %v2180, 0.0
    %v2197 = vmax.f32 %v2181, 0.0
    %v2198 = vmax.f32 %v2182, 0.0
    %v2199 = vmax.f32 %v2183, 0.0
    %v2200 = vmax.f32 %v2184, 0.0
    %v2201 = vmax.f32 %v2185, 0.0
    %v2202 = vpack.c.bf16 %v2187, %v2186
    %v2203 = vpack.c.bf16 %v2189, %v2188
    %v2204 = vpack.c.bf16 %v2191, %v2190
    %v2205 = vpack.c.bf16 %v2193, %v2192
    %v2206 = vpack.c.bf16 %v2195, %v2194
    %v2207 = vpack.c.bf16 %v2197, %v2196
    %v2208 = vpack.c.bf16 %v2199, %v2198
    %v2209 = vpack.c.bf16 %v2201, %v2200
    %s2210 = scalar_lea.vmem [#allocation10], 384
    %v2211 = vld [vmem:[%s2210] sm:$0xff]
    %v2212 = vld [vmem:[%s2210 + $0x8] sm:$0xff]
    %v2213 = vld [vmem:[%s2210 + $0x10] sm:$0xff]
    %v2214 = vld [vmem:[%s2210 + $0x18] sm:$0xff]
    %v2215 = vld [vmem:[%s2210 + $0x20] sm:$0xff]
    %v2216 = vld [vmem:[%s2210 + $0x28] sm:$0xff]
    %v2217 = vld [vmem:[%s2210 + $0x30] sm:$0xff]
    %v2218 = vld [vmem:[%s2210 + $0x38] sm:$0xff]
    %v2219 = vld [vmem:[%s2210 + $0x40] sm:$0xff]
    %v2220 = vld [vmem:[%s2210 + $0x48] sm:$0xff]
    %v2221 = vld [vmem:[%s2210 + $0x50] sm:$0xff]
    %v2222 = vld [vmem:[%s2210 + $0x58] sm:$0xff]
    %v2223 = vld [vmem:[%s2210 + $0x60] sm:$0xff]
    %v2224 = vld [vmem:[%s2210 + $0x68] sm:$0xff]
    %v2225 = vld [vmem:[%s2210 + $0x70] sm:$0xff]
    %v2226 = vld [vmem:[%s2210 + $0x78] sm:$0xff]
    %s2227 = scalar_lea.vmem %s9, 6
    %v2228 = vld [vmem:[%s2227] sm:$0x3]
    %v2230 = vlaneseq
    %v2231 = vshrl.u32 %v2230, 7
    %v2232 = vsub.s32 0, %v2231
    %v2233 = vrot.slane %v2228, %v2232
    %v2234 = vlaneseq
    %v2235 = vshrl.u32 %v2234, 7
    %v2236 = vsub.s32 1, %v2235
    %v2237 = vrot.slane %v2228, %v2236
    %v2256 = vunpack.c.l.b16 %v2211
    %v2257 = vunpack.c.h.b16 %v2211
    %v2258 = vunpack.c.l.b16 %v2212
    %v2259 = vunpack.c.h.b16 %v2212
    %v2260 = vunpack.c.l.b16 %v2213
    %v2261 = vunpack.c.h.b16 %v2213
    %v2262 = vunpack.c.l.b16 %v2214
    %v2263 = vunpack.c.h.b16 %v2214
    %v2264 = vunpack.c.l.b16 %v2215
    %v2265 = vunpack.c.h.b16 %v2215
    %v2266 = vunpack.c.l.b16 %v2216
    %v2267 = vunpack.c.h.b16 %v2216
    %v2268 = vunpack.c.l.b16 %v2217
    %v2269 = vunpack.c.h.b16 %v2217
    %v2270 = vunpack.c.l.b16 %v2218
    %v2271 = vunpack.c.h.b16 %v2218
    %v2272 = vunpack.c.l.b16 %v2219
    %v2273 = vunpack.c.h.b16 %v2219
    %v2274 = vunpack.c.l.b16 %v2220
    %v2275 = vunpack.c.h.b16 %v2220
    %v2276 = vunpack.c.l.b16 %v2221
    %v2277 = vunpack.c.h.b16 %v2221
    %v2278 = vunpack.c.l.b16 %v2222
    %v2279 = vunpack.c.h.b16 %v2222
    %v2280 = vunpack.c.l.b16 %v2223
    %v2281 = vunpack.c.h.b16 %v2223
    %v2282 = vunpack.c.l.b16 %v2224
    %v2283 = vunpack.c.h.b16 %v2224
    %v2284 = vunpack.c.l.b16 %v2225
    %v2285 = vunpack.c.h.b16 %v2225
    %v2286 = vunpack.c.l.b16 %v2226
    %v2287 = vunpack.c.h.b16 %v2226
    %v2288 = vpack.c.b16 %v2258, %v2256
    %v2289 = vpack.c.b16 %v2259, %v2257
    %v2290 = vpack.c.b16 %v2262, %v2260
    %v2291 = vpack.c.b16 %v2263, %v2261
    %v2292 = vpack.c.b16 %v2266, %v2264
    %v2293 = vpack.c.b16 %v2267, %v2265
    %v2294 = vpack.c.b16 %v2270, %v2268
    %v2295 = vpack.c.b16 %v2271, %v2269
    %v2296 = vpack.c.b16 %v2274, %v2272
    %v2297 = vpack.c.b16 %v2275, %v2273
    %v2298 = vpack.c.b16 %v2278, %v2276
    %v2299 = vpack.c.b16 %v2279, %v2277
    %v2300 = vpack.c.b16 %v2282, %v2280
    %v2301 = vpack.c.b16 %v2283, %v2281
    %v2302 = vpack.c.b16 %v2286, %v2284
    %v2303 = vpack.c.b16 %v2287, %v2285
    %2320 = vmatprep.subr.bf16.mxu0 %v2289
    %2321 = vmatpush1.bf16.msra.mxu0 %v2288
    %2322 = vmatprep.subr.bf16.mxu0 %v2291
    %2323 = vmatpush1.bf16.msra.mxu0 %v2290
    %2324 = vmatprep.subr.bf16.mxu0 %v2293
    %2325 = vmatpush1.bf16.msra.mxu0 %v2292
    %2326 = vmatprep.subr.bf16.mxu0 %v2295
    %2327 = vmatpush1.bf16.msra.mxu0 %v2294
    %2328 = vmatprep.subr.bf16.mxu0 %v2297
    %2329 = vmatpush1.bf16.msra.mxu0 %v2296
    %2330 = vmatprep.subr.bf16.mxu0 %v2299
    %2331 = vmatpush1.bf16.msra.mxu0 %v2298
    %2332 = vmatprep.subr.bf16.mxu0 %v2301
    %2333 = vmatpush1.bf16.msra.mxu0 %v2300
    %2334 = vmatprep.subr.bf16.mxu0 %v2303
    %2335 = vmatpush1.bf16.msra.mxu0 %v2302
    %2336 = vmatprep.subr.bf16.mxu0 0
    %2337 = vmatpush1.bf16.msra.mxu0 0
    %2338 = vmatprep.subr.bf16.mxu0 0
    %2339 = vmatpush1.bf16.msra.mxu0 0
    %2340 = vmatprep.subr.bf16.mxu0 0
    %2341 = vmatpush1.bf16.msra.mxu0 0
    %2342 = vmatprep.subr.bf16.mxu0 0
    %2343 = vmatpush1.bf16.msra.mxu0 0
    %2344 = vmatprep.subr.bf16.mxu0 0
    %2345 = vmatpush1.bf16.msra.mxu0 0
    %2346 = vmatprep.subr.bf16.mxu0 0
    %2347 = vmatpush1.bf16.msra.mxu0 0
    %2348 = vmatprep.subr.bf16.mxu0 0
    %2349 = vmatpush1.bf16.msra.mxu0 0
    %2350 = vmatprep.subr.bf16.mxu0 0
    %2351 = vmatpush1.bf16.msra.mxu0 0
    %2352 = vmatprep.mubr.bf16.mxu0 0
    %2353 = vmatmul.mubr.bf16.gmra.mrb[0].mxu0 %v2202
    %v2354 = vpop.f32.mrb[0].mxu0
    %v2355 = vadd.f32 %v2233, %v2354
    %v2356 = vpop.f32.mrb[0].mxu0
    %v2357 = vadd.f32 %v2237, %v2356
    %v2358 = vpop.f32.mrb[0].mxu0
    %v2359 = vadd.f32 %v2233, %v2358
    %v2360 = vpop.f32.mrb[0].mxu0
    %v2361 = vadd.f32 %v2237, %v2360
    %2362 = vmatprep.mubr.bf16.mxu0 0
    %2363 = vmatmul.mubr.bf16.gmra.mrb[0].mxu0 %v2203
    %v2364 = vpop.f32.mrb[0].mxu0
    %v2365 = vadd.f32 %v2233, %v2364
    %v2366 = vpop.f32.mrb[0].mxu0
    %v2367 = vadd.f32 %v2237, %v2366
    %v2368 = vpop.f32.mrb[0].mxu0
    %v2369 = vadd.f32 %v2233, %v2368
    %v2370 = vpop.f32.mrb[0].mxu0
    %v2371 = vadd.f32 %v2237, %v2370
    %2372 = vmatprep.mubr.bf16.mxu0 0
    %2373 = vmatmul.mubr.bf16.gmra.mrb[0].mxu0 %v2204
    %v2374 = vpop.f32.mrb[0].mxu0
    %v2375 = vadd.f32 %v2233, %v2374
    %v2376 = vpop.f32.mrb[0].mxu0
    %v2377 = vadd.f32 %v2237, %v2376
    %v2378 = vpop.f32.mrb[0].mxu0
    %v2379 = vadd.f32 %v2233, %v2378
    %v2380 = vpop.f32.mrb[0].mxu0
    %v2381 = vadd.f32 %v2237, %v2380
    %2382 = vmatprep.mubr.bf16.mxu0 0
    %2383 = vmatmul.mubr.bf16.gmra.mrb[0].mxu0 %v2205
    %v2384 = vpop.f32.mrb[0].mxu0
    %v2385 = vadd.f32 %v2233, %v2384
    %v2386 = vpop.f32.mrb[0].mxu0
    %v2387 = vadd.f32 %v2237, %v2386
    %v2388 = vpop.f32.mrb[0].mxu0
    %v2389 = vadd.f32 %v2233, %v2388
    %v2390 = vpop.f32.mrb[0].mxu0
    %v2391 = vadd.f32 %v2237, %v2390
    %2392 = vmatprep.mubr.bf16.mxu0 0
    %2393 = vmatmul.mubr.bf16.gmra.mrb[0].mxu0 %v2206
    %v2394 = vpop.f32.mrb[0].mxu0
    %v2395 = vadd.f32 %v2233, %v2394
    %v2396 = vpop.f32.mrb[0].mxu0
    %v2397 = vadd.f32 %v2237, %v2396
    %v2398 = vpop.f32.mrb[0].mxu0
    %v2399 = vadd.f32 %v2233, %v2398
    %v2400 = vpop.f32.mrb[0].mxu0
    %v2401 = vadd.f32 %v2237, %v2400
    %2402 = vmatprep.mubr.bf16.mxu0 0
    %2403 = vmatmul.mubr.bf16.gmra.mrb[0].mxu0 %v2207
    %v2404 = vpop.f32.mrb[0].mxu0
    %v2405 = vadd.f32 %v2233, %v2404
    %v2406 = vpop.f32.mrb[0].mxu0
    %v2407 = vadd.f32 %v2237, %v2406
    %v2408 = vpop.f32.mrb[0].mxu0
    %v2409 = vadd.f32 %v2233, %v2408
    %v2410 = vpop.f32.mrb[0].mxu0
    %v2411 = vadd.f32 %v2237, %v2410
    %2412 = vmatprep.mubr.bf16.mxu0 0
    %2413 = vmatmul.mubr.bf16.gmra.mrb[0].mxu0 %v2208
    %v2414 = vpop.f32.mrb[0].mxu0
    %v2415 = vadd.f32 %v2233, %v2414
    %v2416 = vpop.f32.mrb[0].mxu0
    %v2417 = vadd.f32 %v2237, %v2416
    %v2418 = vpop.f32.mrb[0].mxu0
    %v2419 = vadd.f32 %v2233, %v2418
    %v2420 = vpop.f32.mrb[0].mxu0
    %v2421 = vadd.f32 %v2237, %v2420
    %2422 = vmatprep.mubr.bf16.mxu0 0
    %2423 = vmatmul.mubr.bf16.gmra.mrb[0].mxu0 %v2209
    %v2424 = vpop.f32.mrb[0].mxu0
    %v2425 = vadd.f32 %v2233, %v2424
    %v2426 = vpop.f32.mrb[0].mxu0
    %v2427 = vadd.f32 %v2237, %v2426
    %v2428 = vpop.f32.mrb[0].mxu0
    %v2429 = vadd.f32 %v2233, %v2428
    %v2430 = vpop.f32.mrb[0].mxu0
    %v2431 = vadd.f32 %v2237, %v2430
    %2432 = vdwg.mxu0
    %v2433 = vpack.c.bf16 %v2361, %v2357
    %v2434 = vpack.c.bf16 %v2371, %v2367
    %v2435 = vpack.c.bf16 %v2381, %v2377
    %v2436 = vpack.c.bf16 %v2391, %v2387
    %v2437 = vpack.c.bf16 %v2401, %v2397
    %v2438 = vpack.c.bf16 %v2411, %v2407
    %v2439 = vpack.c.bf16 %v2421, %v2417
    %v2440 = vpack.c.bf16 %v2431, %v2427
    %2441 = vmatprep.subr.bf16.mxu0 0
    %2442 = vmatpush1.bf16.msra.mxu0 %v2433
    %2443 = vmatprep.subr.bf16.mxu0 0
    %2444 = vmatpush1.bf16.msra.mxu0 %v2434
    %2445 = vmatprep.subr.bf16.mxu0 0
    %2446 = vmatpush1.bf16.msra.mxu0 %v2435
    %2447 = vmatprep.subr.bf16.mxu0 0
    %2448 = vmatpush1.bf16.msra.mxu0 %v2436
    %2449 = vmatprep.subr.bf16.mxu0 0
    %2450 = vmatpush1.bf16.msra.mxu0 %v2437
    %2451 = vmatprep.subr.bf16.mxu0 0
    %2452 = vmatpush1.bf16.msra.mxu0 %v2438
    %2453 = vmatprep.subr.bf16.mxu0 0
    %2454 = vmatpush1.bf16.msra.mxu0 %v2439
    %2455 = vmatprep.subr.bf16.mxu0 0
    %2456 = vmatpush1.bf16.msra.mxu0 %v2440
    %2457 = vmatprep.subr.bf16.mxu0 0
    %2458 = vmatpush1.bf16.msra.mxu0 0
    %2459 = vmatprep.subr.bf16.mxu0 0
    %2460 = vmatpush1.bf16.msra.mxu0 0
    %2461 = vmatprep.subr.bf16.mxu0 0
    %2462 = vmatpush1.bf16.msra.mxu0 0
    %2463 = vmatprep.subr.bf16.mxu0 0
    %2464 = vmatpush1.bf16.msra.mxu0 0
    %2465 = vmatprep.subr.bf16.mxu0 0
    %2466 = vmatpush1.bf16.msra.mxu0 0
    %2467 = vmatprep.subr.bf16.mxu0 0
    %2468 = vmatpush1.bf16.msra.mxu0 0
    %2469 = vmatprep.subr.bf16.mxu0 0
    %2470 = vmatpush1.bf16.msra.mxu0 0
    %2471 = vmatprep.subr.bf16.mxu0 0
    %2472 = vmatpush1.bf16.msra.mxu0 0
    %2473 = vmatprep.mubr.bf16.mxu0 0
    %2474 = vmatmul.mubr.bf16.gmra.mrb[0].mxu0 %v955
    %v2475 = vpop.f32.mrb[0].mxu0
    %v2476 = vadd.f32 0.0, %v2475
    %v2477 = vpop.f32.mrb[0].mxu0
    %v2478 = vpop.f32.mrb[0].mxu0
    %v2479 = vadd.f32 0.0, %v2478
    %v2480 = vpop.f32.mrb[0].mxu0
    %2481 = vmatprep.mubr.bf16.mxu0 0
    %2482 = vmatmul.mubr.bf16.gmra.mrb[0].mxu0 %v956
    %v2483 = vpop.f32.mrb[0].mxu0
    %v2484 = vadd.f32 0.0, %v2483
    %v2485 = vpop.f32.mrb[0].mxu0
    %v2486 = vpop.f32.mrb[0].mxu0
    %v2487 = vadd.f32 0.0, %v2486
    %v2488 = vpop.f32.mrb[0].mxu0
    %2489 = vmatprep.mubr.bf16.mxu0 0
    %2490 = vmatmul.mubr.bf16.gmra.mrb[0].mxu0 %v957
    %v2491 = vpop.f32.mrb[0].mxu0
    %v2492 = vadd.f32 0.0, %v2491
    %v2493 = vpop.f32.mrb[0].mxu0
    %v2494 = vpop.f32.mrb[0].mxu0
    %v2495 = vadd.f32 0.0, %v2494
    %v2496 = vpop.f32.mrb[0].mxu0
    %2497 = vmatprep.mubr.bf16.mxu0 0
    %2498 = vmatmul.mubr.bf16.gmra.mrb[0].mxu0 %v958
    %v2499 = vpop.f32.mrb[0].mxu0
    %v2500 = vadd.f32 0.0, %v2499
    %v2501 = vpop.f32.mrb[0].mxu0
    %v2502 = vpop.f32.mrb[0].mxu0
    %v2503 = vadd.f32 0.0, %v2502
    %v2504 = vpop.f32.mrb[0].mxu0
    %2505 = vmatprep.mubr.bf16.mxu0 0
    %2506 = vmatmul.mubr.bf16.gmra.mrb[0].mxu0 %v959
    %v2507 = vpop.f32.mrb[0].mxu0
    %v2508 = vadd.f32 0.0, %v2507
    %v2509 = vpop.f32.mrb[0].mxu0
    %v2510 = vpop.f32.mrb[0].mxu0
    %v2511 = vadd.f32 0.0, %v2510
    %v2512 = vpop.f32.mrb[0].mxu0
    %2513 = vmatprep.mubr.bf16.mxu0 0
    %2514 = vmatmul.mubr.bf16.gmra.mrb[0].mxu0 %v960
    %v2515 = vpop.f32.mrb[0].mxu0
    %v2516 = vadd.f32 0.0, %v2515
    %v2517 = vpop.f32.mrb[0].mxu0
    %v2518 = vpop.f32.mrb[0].mxu0
    %v2519 = vadd.f32 0.0, %v2518
    %v2520 = vpop.f32.mrb[0].mxu0
    %2521 = vmatprep.mubr.bf16.mxu0 0
    %2522 = vmatmul.mubr.bf16.gmra.mrb[0].mxu0 %v961
    %v2523 = vpop.f32.mrb[0].mxu0
    %v2524 = vadd.f32 0.0, %v2523
    %v2525 = vpop.f32.mrb[0].mxu0
    %v2526 = vpop.f32.mrb[0].mxu0
    %v2527 = vadd.f32 0.0, %v2526
    %v2528 = vpop.f32.mrb[0].mxu0
    %2529 = vmatprep.mubr.bf16.mxu0 0
    %2530 = vmatmul.mubr.bf16.gmra.mrb[0].mxu0 %v962
    %v2531 = vpop.f32.mrb[0].mxu0
    %v2532 = vadd.f32 0.0, %v2531
    %v2533 = vpop.f32.mrb[0].mxu0
    %v2534 = vpop.f32.mrb[0].mxu0
    %v2535 = vadd.f32 0.0, %v2534
    %v2536 = vpop.f32.mrb[0].mxu0
    %2537 = vdwg.mxu0
    %v2538 = vadd.f32 %v2355, %v2476
    %v2539 = vadd.f32 %v2359, %v2479
    %v2540 = vadd.f32 %v2365, %v2484
    %v2541 = vadd.f32 %v2369, %v2487
    %v2542 = vadd.f32 %v2375, %v2492
    %v2543 = vadd.f32 %v2379, %v2495
    %v2544 = vadd.f32 %v2385, %v2500
    %v2545 = vadd.f32 %v2389, %v2503
    %v2546 = vadd.f32 %v2395, %v2508
    %v2547 = vadd.f32 %v2399, %v2511
    %v2548 = vadd.f32 %v2405, %v2516
    %v2549 = vadd.f32 %v2409, %v2519
    %v2550 = vadd.f32 %v2415, %v2524
    %v2551 = vadd.f32 %v2419, %v2527
    %v2552 = vadd.f32 %v2425, %v2532
    %v2553 = vadd.f32 %v2429, %v2535
    %v2554 = vmax.f32 %v2538, 0.0
    %v2555 = vmax.f32 %v2539, 0.0
    %v2556 = vmax.f32 %v2540, 0.0
    %v2557 = vmax.f32 %v2541, 0.0
    %v2558 = vmax.f32 %v2542, 0.0
    %v2559 = vmax.f32 %v2543, 0.0
    %v2560 = vmax.f32 %v2544, 0.0
    %v2561 = vmax.f32 %v2545, 0.0
    %v2562 = vmax.f32 %v2546, 0.0
    %v2563 = vmax.f32 %v2547, 0.0
    %v2564 = vmax.f32 %v2548, 0.0
    %v2565 = vmax.f32 %v2549, 0.0
    %v2566 = vmax.f32 %v2550, 0.0
    %v2567 = vmax.f32 %v2551, 0.0
    %v2568 = vmax.f32 %v2552, 0.0
    %v2569 = vmax.f32 %v2553, 0.0
    %v2570 = vpack.c.bf16 %v2555, %v2554
    %v2571 = vpack.c.bf16 %v2557, %v2556
    %v2572 = vpack.c.bf16 %v2559, %v2558
    %v2573 = vpack.c.bf16 %v2561, %v2560
    %v2574 = vpack.c.bf16 %v2563, %v2562
    %v2575 = vpack.c.bf16 %v2565, %v2564
    %v2576 = vpack.c.bf16 %v2567, %v2566
    %v2577 = vpack.c.bf16 %v2569, %v2568
    %s2578 = scalar_lea.vmem [#allocation10], 512
    %v2579 = vld [vmem:[%s2578] sm:$0xff]
    %v2580 = vld [vmem:[%s2578 + $0x8] sm:$0xff]
    %v2581 = vld [vmem:[%s2578 + $0x10] sm:$0xff]
    %v2582 = vld [vmem:[%s2578 + $0x18] sm:$0xff]
    %v2583 = vld [vmem:[%s2578 + $0x20] sm:$0xff]
    %v2584 = vld [vmem:[%s2578 + $0x28] sm:$0xff]
    %v2585 = vld [vmem:[%s2578 + $0x30] sm:$0xff]
    %v2586 = vld [vmem:[%s2578 + $0x38] sm:$0xff]
    %v2587 = vld [vmem:[%s2578 + $0x40] sm:$0xff]
    %v2588 = vld [vmem:[%s2578 + $0x48] sm:$0xff]
    %v2589 = vld [vmem:[%s2578 + $0x50] sm:$0xff]
    %v2590 = vld [vmem:[%s2578 + $0x58] sm:$0xff]
    %v2591 = vld [vmem:[%s2578 + $0x60] sm:$0xff]
    %v2592 = vld [vmem:[%s2578 + $0x68] sm:$0xff]
    %v2593 = vld [vmem:[%s2578 + $0x70] sm:$0xff]
    %v2594 = vld [vmem:[%s2578 + $0x78] sm:$0xff]
    %s2595 = scalar_lea.vmem %s9, 8
    %v2596 = vld [vmem:[%s2595] sm:$0x3]
    %v2598 = vlaneseq
    %v2599 = vshrl.u32 %v2598, 7
    %v2600 = vsub.s32 0, %v2599
    %v2601 = vrot.slane %v2596, %v2600
    %v2602 = vlaneseq
    %v2603 = vshrl.u32 %v2602, 7
    %v2604 = vsub.s32 1, %v2603
    %v2605 = vrot.slane %v2596, %v2604
    %v2624 = vunpack.c.l.b16 %v2579
    %v2625 = vunpack.c.h.b16 %v2579
    %v2626 = vunpack.c.l.b16 %v2580
    %v2627 = vunpack.c.h.b16 %v2580
    %v2628 = vunpack.c.l.b16 %v2581
    %v2629 = vunpack.c.h.b16 %v2581
    %v2630 = vunpack.c.l.b16 %v2582
    %v2631 = vunpack.c.h.b16 %v2582
    %v2632 = vunpack.c.l.b16 %v2583
    %v2633 = vunpack.c.h.b16 %v2583
    %v2634 = vunpack.c.l.b16 %v2584
    %v2635 = vunpack.c.h.b16 %v2584
    %v2636 = vunpack.c.l.b16 %v2585
    %v2637 = vunpack.c.h.b16 %v2585
    %v2638 = vunpack.c.l.b16 %v2586
    %v2639 = vunpack.c.h.b16 %v2586
    %v2640 = vunpack.c.l.b16 %v2587
    %v2641 = vunpack.c.h.b16 %v2587
    %v2642 = vunpack.c.l.b16 %v2588
    %v2643 = vunpack.c.h.b16 %v2588
    %v2644 = vunpack.c.l.b16 %v2589
    %v2645 = vunpack.c.h.b16 %v2589
    %v2646 = vunpack.c.l.b16 %v2590
    %v2647 = vunpack.c.h.b16 %v2590
    %v2648 = vunpack.c.l.b16 %v2591
    %v2649 = vunpack.c.h.b16 %v2591
    %v2650 = vunpack.c.l.b16 %v2592
    %v2651 = vunpack.c.h.b16 %v2592
    %v2652 = vunpack.c.l.b16 %v2593
    %v2653 = vunpack.c.h.b16 %v2593
    %v2654 = vunpack.c.l.b16 %v2594
    %v2655 = vunpack.c.h.b16 %v2594
    %v2656 = vpack.c.b16 %v2626, %v2624
    %v2657 = vpack.c.b16 %v2627, %v2625
    %v2658 = vpack.c.b16 %v2630, %v2628
    %v2659 = vpack.c.b16 %v2631, %v2629
    %v2660 = vpack.c.b16 %v2634, %v2632
    %v2661 = vpack.c.b16 %v2635, %v2633
    %v2662 = vpack.c.b16 %v2638, %v2636
    %v2663 = vpack.c.b16 %v2639, %v2637
    %v2664 = vpack.c.b16 %v2642, %v2640
    %v2665 = vpack.c.b16 %v2643, %v2641
    %v2666 = vpack.c.b16 %v2646, %v2644
    %v2667 = vpack.c.b16 %v2647, %v2645
    %v2668 = vpack.c.b16 %v2650, %v2648
    %v2669 = vpack.c.b16 %v2651, %v2649
    %v2670 = vpack.c.b16 %v2654, %v2652
    %v2671 = vpack.c.b16 %v2655, %v2653
    %2688 = vmatprep.subr.bf16.mxu0 %v2657
    %2689 = vmatpush1.bf16.msra.mxu0 %v2656
    %2690 = vmatprep.subr.bf16.mxu0 %v2659
    %2691 = vmatpush1.bf16.msra.mxu0 %v2658
    %2692 = vmatprep.subr.bf16.mxu0 %v2661
    %2693 = vmatpush1.bf16.msra.mxu0 %v2660
    %2694 = vmatprep.subr.bf16.mxu0 %v2663
    %2695 = vmatpush1.bf16.msra.mxu0 %v2662
    %2696 = vmatprep.subr.bf16.mxu0 %v2665
    %2697 = vmatpush1.bf16.msra.mxu0 %v2664
    %2698 = vmatprep.subr.bf16.mxu0 %v2667
    %2699 = vmatpush1.bf16.msra.mxu0 %v2666
    %2700 = vmatprep.subr.bf16.mxu0 %v2669
    %2701 = vmatpush1.bf16.msra.mxu0 %v2668
    %2702 = vmatprep.subr.bf16.mxu0 %v2671
    %2703 = vmatpush1.bf16.msra.mxu0 %v2670
    %2704 = vmatprep.subr.bf16.mxu0 0
    %2705 = vmatpush1.bf16.msra.mxu0 0
    %2706 = vmatprep.subr.bf16.mxu0 0
    %2707 = vmatpush1.bf16.msra.mxu0 0
    %2708 = vmatprep.subr.bf16.mxu0 0
    %2709 = vmatpush1.bf16.msra.mxu0 0
    %2710 = vmatprep.subr.bf16.mxu0 0
    %2711 = vmatpush1.bf16.msra.mxu0 0
    %2712 = vmatprep.subr.bf16.mxu0 0
    %2713 = vmatpush1.bf16.msra.mxu0 0
    %2714 = vmatprep.subr.bf16.mxu0 0
    %2715 = vmatpush1.bf16.msra.mxu0 0
    %2716 = vmatprep.subr.bf16.mxu0 0
    %2717 = vmatpush1.bf16.msra.mxu0 0
    %2718 = vmatprep.subr.bf16.mxu0 0
    %2719 = vmatpush1.bf16.msra.mxu0 0
    %2720 = vmatprep.mubr.bf16.mxu0 0
    %2721 = vmatmul.mubr.bf16.gmra.mrb[0].mxu0 %v2570
    %v2722 = vpop.f32.mrb[0].mxu0
    %v2723 = vadd.f32 %v2601, %v2722
    %v2724 = vpop.f32.mrb[0].mxu0
    %v2725 = vadd.f32 %v2605, %v2724
    %v2726 = vpop.f32.mrb[0].mxu0
    %v2727 = vadd.f32 %v2601, %v2726
    %v2728 = vpop.f32.mrb[0].mxu0
    %v2729 = vadd.f32 %v2605, %v2728
    %2730 = vmatprep.mubr.bf16.mxu0 0
    %2731 = vmatmul.mubr.bf16.gmra.mrb[0].mxu0 %v2571
    %v2732 = vpop.f32.mrb[0].mxu0
    %v2733 = vadd.f32 %v2601, %v2732
    %v2734 = vpop.f32.mrb[0].mxu0
    %v2735 = vadd.f32 %v2605, %v2734
    %v2736 = vpop.f32.mrb[0].mxu0
    %v2737 = vadd.f32 %v2601, %v2736
    %v2738 = vpop.f32.mrb[0].mxu0
    %v2739 = vadd.f32 %v2605, %v2738
    %2740 = vmatprep.mubr.bf16.mxu0 0
    %2741 = vmatmul.mubr.bf16.gmra.mrb[0].mxu0 %v2572
    %v2742 = vpop.f32.mrb[0].mxu0
    %v2743 = vadd.f32 %v2601, %v2742
    %v2744 = vpop.f32.mrb[0].mxu0
    %v2745 = vadd.f32 %v2605, %v2744
    %v2746 = vpop.f32.mrb[0].mxu0
    %v2747 = vadd.f32 %v2601, %v2746
    %v2748 = vpop.f32.mrb[0].mxu0
    %v2749 = vadd.f32 %v2605, %v2748
    %2750 = vmatprep.mubr.bf16.mxu0 0
    %2751 = vmatmul.mubr.bf16.gmra.mrb[0].mxu0 %v2573
    %v2752 = vpop.f32.mrb[0].mxu0
    %v2753 = vadd.f32 %v2601, %v2752
    %v2754 = vpop.f32.mrb[0].mxu0
    %v2755 = vadd.f32 %v2605, %v2754
    %v2756 = vpop.f32.mrb[0].mxu0
    %v2757 = vadd.f32 %v2601, %v2756
    %v2758 = vpop.f32.mrb[0].mxu0
    %v2759 = vadd.f32 %v2605, %v2758
    %2760 = vmatprep.mubr.bf16.mxu0 0
    %2761 = vmatmul.mubr.bf16.gmra.mrb[0].mxu0 %v2574
    %v2762 = vpop.f32.mrb[0].mxu0
    %v2763 = vadd.f32 %v2601, %v2762
    %v2764 = vpop.f32.mrb[0].mxu0
    %v2765 = vadd.f32 %v2605, %v2764
    %v2766 = vpop.f32.mrb[0].mxu0
    %v2767 = vadd.f32 %v2601, %v2766
    %v2768 = vpop.f32.mrb[0].mxu0
    %v2769 = vadd.f32 %v2605, %v2768
    %2770 = vmatprep.mubr.bf16.mxu0 0
    %2771 = vmatmul.mubr.bf16.gmra.mrb[0].mxu0 %v2575
    %v2772 = vpop.f32.mrb[0].mxu0
    %v2773 = vadd.f32 %v2601, %v2772
    %v2774 = vpop.f32.mrb[0].mxu0
    %v2775 = vadd.f32 %v2605, %v2774
    %v2776 = vpop.f32.mrb[0].mxu0
    %v2777 = vadd.f32 %v2601, %v2776
    %v2778 = vpop.f32.mrb[0].mxu0
    %v2779 = vadd.f32 %v2605, %v2778
    %2780 = vmatprep.mubr.bf16.mxu0 0
    %2781 = vmatmul.mubr.bf16.gmra.mrb[0].mxu0 %v2576
    %v2782 = vpop.f32.mrb[0].mxu0
    %v2783 = vadd.f32 %v2601, %v2782
    %v2784 = vpop.f32.mrb[0].mxu0
    %v2785 = vadd.f32 %v2605, %v2784
    %v2786 = vpop.f32.mrb[0].mxu0
    %v2787 = vadd.f32 %v2601, %v2786
    %v2788 = vpop.f32.mrb[0].mxu0
    %v2789 = vadd.f32 %v2605, %v2788
    %2790 = vmatprep.mubr.bf16.mxu0 0
    %2791 = vmatmul.mubr.bf16.gmra.mrb[0].mxu0 %v2577
    %v2792 = vpop.f32.mrb[0].mxu0
    %v2793 = vadd.f32 %v2601, %v2792
    %v2794 = vpop.f32.mrb[0].mxu0
    %v2795 = vadd.f32 %v2605, %v2794
    %v2796 = vpop.f32.mrb[0].mxu0
    %v2797 = vadd.f32 %v2601, %v2796
    %v2798 = vpop.f32.mrb[0].mxu0
    %v2799 = vadd.f32 %v2605, %v2798
    %2800 = vdwg.mxu0
    %v2801 = vpack.c.bf16 %v2729, %v2725
    %v2802 = vpack.c.bf16 %v2739, %v2735
    %v2803 = vpack.c.bf16 %v2749, %v2745
    %v2804 = vpack.c.bf16 %v2759, %v2755
    %v2805 = vpack.c.bf16 %v2769, %v2765
    %v2806 = vpack.c.bf16 %v2779, %v2775
    %v2807 = vpack.c.bf16 %v2789, %v2785
    %v2808 = vpack.c.bf16 %v2799, %v2795
    %2809 = vmatprep.subr.bf16.mxu0 0
    %2810 = vmatpush1.bf16.msra.mxu0 %v2801
    %2811 = vmatprep.subr.bf16.mxu0 0
    %2812 = vmatpush1.bf16.msra.mxu0 %v2802
    %2813 = vmatprep.subr.bf16.mxu0 0
    %2814 = vmatpush1.bf16.msra.mxu0 %v2803
    %2815 = vmatprep.subr.bf16.mxu0 0
    %2816 = vmatpush1.bf16.msra.mxu0 %v2804
    %2817 = vmatprep.subr.bf16.mxu0 0
    %2818 = vmatpush1.bf16.msra.mxu0 %v2805
    %2819 = vmatprep.subr.bf16.mxu0 0
    %2820 = vmatpush1.bf16.msra.mxu0 %v2806
    %2821 = vmatprep.subr.bf16.mxu0 0
    %2822 = vmatpush1.bf16.msra.mxu0 %v2807
    %2823 = vmatprep.subr.bf16.mxu0 0
    %2824 = vmatpush1.bf16.msra.mxu0 %v2808
    %2825 = vmatprep.subr.bf16.mxu0 0
    %2826 = vmatpush1.bf16.msra.mxu0 0
    %2827 = vmatprep.subr.bf16.mxu0 0
    %2828 = vmatpush1.bf16.msra.mxu0 0
    %2829 = vmatprep.subr.bf16.mxu0 0
    %2830 = vmatpush1.bf16.msra.mxu0 0
    %2831 = vmatprep.subr.bf16.mxu0 0
    %2832 = vmatpush1.bf16.msra.mxu0 0
    %2833 = vmatprep.subr.bf16.mxu0 0
    %2834 = vmatpush1.bf16.msra.mxu0 0
    %2835 = vmatprep.subr.bf16.mxu0 0
    %2836 = vmatpush1.bf16.msra.mxu0 0
    %2837 = vmatprep.subr.bf16.mxu0 0
    %2838 = vmatpush1.bf16.msra.mxu0 0
    %2839 = vmatprep.subr.bf16.mxu0 0
    %2840 = vmatpush1.bf16.msra.mxu0 0
    %2841 = vmatprep.mubr.bf16.mxu0 0
    %2842 = vmatmul.mubr.bf16.gmra.mrb[0].mxu0 %v955
    %v2843 = vpop.f32.mrb[0].mxu0
    %v2844 = vadd.f32 0.0, %v2843
    %v2845 = vpop.f32.mrb[0].mxu0
    %v2846 = vpop.f32.mrb[0].mxu0
    %v2847 = vadd.f32 0.0, %v2846
    %v2848 = vpop.f32.mrb[0].mxu0
    %2849 = vmatprep.mubr.bf16.mxu0 0
    %2850 = vmatmul.mubr.bf16.gmra.mrb[0].mxu0 %v956
    %v2851 = vpop.f32.mrb[0].mxu0
    %v2852 = vadd.f32 0.0, %v2851
    %v2853 = vpop.f32.mrb[0].mxu0
    %v2854 = vpop.f32.mrb[0].mxu0
    %v2855 = vadd.f32 0.0, %v2854
    %v2856 = vpop.f32.mrb[0].mxu0
    %2857 = vmatprep.mubr.bf16.mxu0 0
    %2858 = vmatmul.mubr.bf16.gmra.mrb[0].mxu0 %v957
    %v2859 = vpop.f32.mrb[0].mxu0
    %v2860 = vadd.f32 0.0, %v2859
    %v2861 = vpop.f32.mrb[0].mxu0
    %v2862 = vpop.f32.mrb[0].mxu0
    %v2863 = vadd.f32 0.0, %v2862
    %v2864 = vpop.f32.mrb[0].mxu0
    %2865 = vmatprep.mubr.bf16.mxu0 0
    %2866 = vmatmul.mubr.bf16.gmra.mrb[0].mxu0 %v958
    %v2867 = vpop.f32.mrb[0].mxu0
    %v2868 = vadd.f32 0.0, %v2867
    %v2869 = vpop.f32.mrb[0].mxu0
    %v2870 = vpop.f32.mrb[0].mxu0
    %v2871 = vadd.f32 0.0, %v2870
    %v2872 = vpop.f32.mrb[0].mxu0
    %2873 = vmatprep.mubr.bf16.mxu0 0
    %2874 = vmatmul.mubr.bf16.gmra.mrb[0].mxu0 %v959
    %v2875 = vpop.f32.mrb[0].mxu0
    %v2876 = vadd.f32 0.0, %v2875
    %v2877 = vpop.f32.mrb[0].mxu0
    %v2878 = vpop.f32.mrb[0].mxu0
    %v2879 = vadd.f32 0.0, %v2878
    %v2880 = vpop.f32.mrb[0].mxu0
    %2881 = vmatprep.mubr.bf16.mxu0 0
    %2882 = vmatmul.mubr.bf16.gmra.mrb[0].mxu0 %v960
    %v2883 = vpop.f32.mrb[0].mxu0
    %v2884 = vadd.f32 0.0, %v2883
    %v2885 = vpop.f32.mrb[0].mxu0
    %v2886 = vpop.f32.mrb[0].mxu0
    %v2887 = vadd.f32 0.0, %v2886
    %v2888 = vpop.f32.mrb[0].mxu0
    %2889 = vmatprep.mubr.bf16.mxu0 0
    %2890 = vmatmul.mubr.bf16.gmra.mrb[0].mxu0 %v961
    %v2891 = vpop.f32.mrb[0].mxu0
    %v2892 = vadd.f32 0.0, %v2891
    %v2893 = vpop.f32.mrb[0].mxu0
    %v2894 = vpop.f32.mrb[0].mxu0
    %v2895 = vadd.f32 0.0, %v2894
    %v2896 = vpop.f32.mrb[0].mxu0
    %2897 = vmatprep.mubr.bf16.mxu0 0
    %2898 = vmatmul.mubr.bf16.gmra.mrb[0].mxu0 %v962
    %v2899 = vpop.f32.mrb[0].mxu0
    %v2900 = vadd.f32 0.0, %v2899
    %v2901 = vpop.f32.mrb[0].mxu0
    %v2902 = vpop.f32.mrb[0].mxu0
    %v2903 = vadd.f32 0.0, %v2902
    %v2904 = vpop.f32.mrb[0].mxu0
    %2905 = vdwg.mxu0
    %v2906 = vadd.f32 %v2723, %v2844
    %v2907 = vadd.f32 %v2727, %v2847
    %v2908 = vadd.f32 %v2733, %v2852
    %v2909 = vadd.f32 %v2737, %v2855
    %v2910 = vadd.f32 %v2743, %v2860
    %v2911 = vadd.f32 %v2747, %v2863
    %v2912 = vadd.f32 %v2753, %v2868
    %v2913 = vadd.f32 %v2757, %v2871
    %v2914 = vadd.f32 %v2763, %v2876
    %v2915 = vadd.f32 %v2767, %v2879
    %v2916 = vadd.f32 %v2773, %v2884
    %v2917 = vadd.f32 %v2777, %v2887
    %v2918 = vadd.f32 %v2783, %v2892
    %v2919 = vadd.f32 %v2787, %v2895
    %v2920 = vadd.f32 %v2793, %v2900
    %v2921 = vadd.f32 %v2797, %v2903
    %v2922 = vmax.f32 %v2906, 0.0
    %v2923 = vmax.f32 %v2907, 0.0
    %v2924 = vmax.f32 %v2908, 0.0
    %v2925 = vmax.f32 %v2909, 0.0
    %v2926 = vmax.f32 %v2910, 0.0
    %v2927 = vmax.f32 %v2911, 0.0
    %v2928 = vmax.f32 %v2912, 0.0
    %v2929 = vmax.f32 %v2913, 0.0
    %v2930 = vmax.f32 %v2914, 0.0
    %v2931 = vmax.f32 %v2915, 0.0
    %v2932 = vmax.f32 %v2916, 0.0
    %v2933 = vmax.f32 %v2917, 0.0
    %v2934 = vmax.f32 %v2918, 0.0
    %v2935 = vmax.f32 %v2919, 0.0
    %v2936 = vmax.f32 %v2920, 0.0
    %v2937 = vmax.f32 %v2921, 0.0
    %v2938 = vpack.c.bf16 %v2923, %v2922
    %v2939 = vpack.c.bf16 %v2925, %v2924
    %v2940 = vpack.c.bf16 %v2927, %v2926
    %v2941 = vpack.c.bf16 %v2929, %v2928
    %v2942 = vpack.c.bf16 %v2931, %v2930
    %v2943 = vpack.c.bf16 %v2933, %v2932
    %v2944 = vpack.c.bf16 %v2935, %v2934
    %v2945 = vpack.c.bf16 %v2937, %v2936
    %s2946 = scalar_lea.vmem [#allocation10], 640
    %v2947 = vld [vmem:[%s2946] sm:$0xff]
    %v2948 = vld [vmem:[%s2946 + $0x8] sm:$0xff]
    %v2949 = vld [vmem:[%s2946 + $0x10] sm:$0xff]
    %v2950 = vld [vmem:[%s2946 + $0x18] sm:$0xff]
    %v2951 = vld [vmem:[%s2946 + $0x20] sm:$0xff]
    %v2952 = vld [vmem:[%s2946 + $0x28] sm:$0xff]
    %v2953 = vld [vmem:[%s2946 + $0x30] sm:$0xff]
    %v2954 = vld [vmem:[%s2946 + $0x38] sm:$0xff]
    %v2955 = vld [vmem:[%s2946 + $0x40] sm:$0xff]
    %v2956 = vld [vmem:[%s2946 + $0x48] sm:$0xff]
    %v2957 = vld [vmem:[%s2946 + $0x50] sm:$0xff]
    %v2958 = vld [vmem:[%s2946 + $0x58] sm:$0xff]
    %v2959 = vld [vmem:[%s2946 + $0x60] sm:$0xff]
    %v2960 = vld [vmem:[%s2946 + $0x68] sm:$0xff]
    %v2961 = vld [vmem:[%s2946 + $0x70] sm:$0xff]
    %v2962 = vld [vmem:[%s2946 + $0x78] sm:$0xff]
    %s2963 = scalar_lea.vmem %s9, 10
    %v2964 = vld [vmem:[%s2963] sm:$0x3]
    %v2966 = vlaneseq
    %v2967 = vshrl.u32 %v2966, 7
    %v2968 = vsub.s32 0, %v2967
    %v2969 = vrot.slane %v2964, %v2968
    %v2970 = vlaneseq
    %v2971 = vshrl.u32 %v2970, 7
    %v2972 = vsub.s32 1, %v2971
    %v2973 = vrot.slane %v2964, %v2972
    %v2992 = vunpack.c.l.b16 %v2947
    %v2993 = vunpack.c.h.b16 %v2947
    %v2994 = vunpack.c.l.b16 %v2948
    %v2995 = vunpack.c.h.b16 %v2948
    %v2996 = vunpack.c.l.b16 %v2949
    %v2997 = vunpack.c.h.b16 %v2949
    %v2998 = vunpack.c.l.b16 %v2950
    %v2999 = vunpack.c.h.b16 %v2950
    %v3000 = vunpack.c.l.b16 %v2951
    %v3001 = vunpack.c.h.b16 %v2951
    %v3002 = vunpack.c.l.b16 %v2952
    %v3003 = vunpack.c.h.b16 %v2952
    %v3004 = vunpack.c.l.b16 %v2953
    %v3005 = vunpack.c.h.b16 %v2953
    %v3006 = vunpack.c.l.b16 %v2954
    %v3007 = vunpack.c.h.b16 %v2954
    %v3008 = vunpack.c.l.b16 %v2955
    %v3009 = vunpack.c.h.b16 %v2955
    %v3010 = vunpack.c.l.b16 %v2956
    %v3011 = vunpack.c.h.b16 %v2956
    %v3012 = vunpack.c.l.b16 %v2957
    %v3013 = vunpack.c.h.b16 %v2957
    %v3014 = vunpack.c.l.b16 %v2958
    %v3015 = vunpack.c.h.b16 %v2958
    %v3016 = vunpack.c.l.b16 %v2959
    %v3017 = vunpack.c.h.b16 %v2959
    %v3018 = vunpack.c.l.b16 %v2960
    %v3019 = vunpack.c.h.b16 %v2960
    %v3020 = vunpack.c.l.b16 %v2961
    %v3021 = vunpack.c.h.b16 %v2961
    %v3022 = vunpack.c.l.b16 %v2962
    %v3023 = vunpack.c.h.b16 %v2962
    %v3024 = vpack.c.b16 %v2994, %v2992
    %v3025 = vpack.c.b16 %v2995, %v2993
    %v3026 = vpack.c.b16 %v2998, %v2996
    %v3027 = vpack.c.b16 %v2999, %v2997
    %v3028 = vpack.c.b16 %v3002, %v3000
    %v3029 = vpack.c.b16 %v3003, %v3001
    %v3030 = vpack.c.b16 %v3006, %v3004
    %v3031 = vpack.c.b16 %v3007, %v3005
    %v3032 = vpack.c.b16 %v3010, %v3008
    %v3033 = vpack.c.b16 %v3011, %v3009
    %v3034 = vpack.c.b16 %v3014, %v3012
    %v3035 = vpack.c.b16 %v3015, %v3013
    %v3036 = vpack.c.b16 %v3018, %v3016
    %v3037 = vpack.c.b16 %v3019, %v3017
    %v3038 = vpack.c.b16 %v3022, %v3020
    %v3039 = vpack.c.b16 %v3023, %v3021
    %3056 = vmatprep.subr.bf16.mxu0 %v3025
    %3057 = vmatpush1.bf16.msra.mxu0 %v3024
    %3058 = vmatprep.subr.bf16.mxu0 %v3027
    %3059 = vmatpush1.bf16.msra.mxu0 %v3026
    %3060 = vmatprep.subr.bf16.mxu0 %v3029
    %3061 = vmatpush1.bf16.msra.mxu0 %v3028
    %3062 = vmatprep.subr.bf16.mxu0 %v3031
    %3063 = vmatpush1.bf16.msra.mxu0 %v3030
    %3064 = vmatprep.subr.bf16.mxu0 %v3033
    %3065 = vmatpush1.bf16.msra.mxu0 %v3032
    %3066 = vmatprep.subr.bf16.mxu0 %v3035
    %3067 = vmatpush1.bf16.msra.mxu0 %v3034
    %3068 = vmatprep.subr.bf16.mxu0 %v3037
    %3069 = vmatpush1.bf16.msra.mxu0 %v3036
    %3070 = vmatprep.subr.bf16.mxu0 %v3039
    %3071 = vmatpush1.bf16.msra.mxu0 %v3038
    %3072 = vmatprep.subr.bf16.mxu0 0
    %3073 = vmatpush1.bf16.msra.mxu0 0
    %3074 = vmatprep.subr.bf16.mxu0 0
    %3075 = vmatpush1.bf16.msra.mxu0 0
    %3076 = vmatprep.subr.bf16.mxu0 0
    %3077 = vmatpush1.bf16.msra.mxu0 0
    %3078 = vmatprep.subr.bf16.mxu0 0
    %3079 = vmatpush1.bf16.msra.mxu0 0
    %3080 = vmatprep.subr.bf16.mxu0 0
    %3081 = vmatpush1.bf16.msra.mxu0 0
    %3082 = vmatprep.subr.bf16.mxu0 0
    %3083 = vmatpush1.bf16.msra.mxu0 0
    %3084 = vmatprep.subr.bf16.mxu0 0
    %3085 = vmatpush1.bf16.msra.mxu0 0
    %3086 = vmatprep.subr.bf16.mxu0 0
    %3087 = vmatpush1.bf16.msra.mxu0 0
    %3088 = vmatprep.mubr.bf16.mxu0 0
    %3089 = vmatmul.mubr.bf16.gmra.mrb[0].mxu0 %v2938
    %v3090 = vpop.f32.mrb[0].mxu0
    %v3091 = vadd.f32 %v2969, %v3090
    %v3092 = vpop.f32.mrb[0].mxu0
    %v3093 = vadd.f32 %v2973, %v3092
    %v3094 = vpop.f32.mrb[0].mxu0
    %v3095 = vadd.f32 %v2969, %v3094
    %v3096 = vpop.f32.mrb[0].mxu0
    %v3097 = vadd.f32 %v2973, %v3096
    %3098 = vmatprep.mubr.bf16.mxu0 0
    %3099 = vmatmul.mubr.bf16.gmra.mrb[0].mxu0 %v2939
    %v3100 = vpop.f32.mrb[0].mxu0
    %v3101 = vadd.f32 %v2969, %v3100
    %v3102 = vpop.f32.mrb[0].mxu0
    %v3103 = vadd.f32 %v2973, %v3102
    %v3104 = vpop.f32.mrb[0].mxu0
    %v3105 = vadd.f32 %v2969, %v3104
    %v3106 = vpop.f32.mrb[0].mxu0
    %v3107 = vadd.f32 %v2973, %v3106
    %3108 = vmatprep.mubr.bf16.mxu0 0
    %3109 = vmatmul.mubr.bf16.gmra.mrb[0].mxu0 %v2940
    %v3110 = vpop.f32.mrb[0].mxu0
    %v3111 = vadd.f32 %v2969, %v3110
    %v3112 = vpop.f32.mrb[0].mxu0
    %v3113 = vadd.f32 %v2973, %v3112
    %v3114 = vpop.f32.mrb[0].mxu0
    %v3115 = vadd.f32 %v2969, %v3114
    %v3116 = vpop.f32.mrb[0].mxu0
    %v3117 = vadd.f32 %v2973, %v3116
    %3118 = vmatprep.mubr.bf16.mxu0 0
    %3119 = vmatmul.mubr.bf16.gmra.mrb[0].mxu0 %v2941
    %v3120 = vpop.f32.mrb[0].mxu0
    %v3121 = vadd.f32 %v2969, %v3120
    %v3122 = vpop.f32.mrb[0].mxu0
    %v3123 = vadd.f32 %v2973, %v3122
    %v3124 = vpop.f32.mrb[0].mxu0
    %v3125 = vadd.f32 %v2969, %v3124
    %v3126 = vpop.f32.mrb[0].mxu0
    %v3127 = vadd.f32 %v2973, %v3126
    %3128 = vmatprep.mubr.bf16.mxu0 0
    %3129 = vmatmul.mubr.bf16.gmra.mrb[0].mxu0 %v2942
    %v3130 = vpop.f32.mrb[0].mxu0
    %v3131 = vadd.f32 %v2969, %v3130
    %v3132 = vpop.f32.mrb[0].mxu0
    %v3133 = vadd.f32 %v2973, %v3132
    %v3134 = vpop.f32.mrb[0].mxu0
    %v3135 = vadd.f32 %v2969, %v3134
    %v3136 = vpop.f32.mrb[0].mxu0
    %v3137 = vadd.f32 %v2973, %v3136
    %3138 = vmatprep.mubr.bf16.mxu0 0
    %3139 = vmatmul.mubr.bf16.gmra.mrb[0].mxu0 %v2943
    %v3140 = vpop.f32.mrb[0].mxu0
    %v3141 = vadd.f32 %v2969, %v3140
    %v3142 = vpop.f32.mrb[0].mxu0
    %v3143 = vadd.f32 %v2973, %v3142
    %v3144 = vpop.f32.mrb[0].mxu0
    %v3145 = vadd.f32 %v2969, %v3144
    %v3146 = vpop.f32.mrb[0].mxu0
    %v3147 = vadd.f32 %v2973, %v3146
    %3148 = vmatprep.mubr.bf16.mxu0 0
    %3149 = vmatmul.mubr.bf16.gmra.mrb[0].mxu0 %v2944
    %v3150 = vpop.f32.mrb[0].mxu0
    %v3151 = vadd.f32 %v2969, %v3150
    %v3152 = vpop.f32.mrb[0].mxu0
    %v3153 = vadd.f32 %v2973, %v3152
    %v3154 = vpop.f32.mrb[0].mxu0
    %v3155 = vadd.f32 %v2969, %v3154
    %v3156 = vpop.f32.mrb[0].mxu0
    %v3157 = vadd.f32 %v2973, %v3156
    %3158 = vmatprep.mubr.bf16.mxu0 0
    %3159 = vmatmul.mubr.bf16.gmra.mrb[0].mxu0 %v2945
    %v3160 = vpop.f32.mrb[0].mxu0
    %v3161 = vadd.f32 %v2969, %v3160
    %v3162 = vpop.f32.mrb[0].mxu0
    %v3163 = vadd.f32 %v2973, %v3162
    %v3164 = vpop.f32.mrb[0].mxu0
    %v3165 = vadd.f32 %v2969, %v3164
    %v3166 = vpop.f32.mrb[0].mxu0
    %v3167 = vadd.f32 %v2973, %v3166
    %3168 = vdwg.mxu0
    %v3169 = vpack.c.bf16 %v3097, %v3093
    %v3170 = vpack.c.bf16 %v3107, %v3103
    %v3171 = vpack.c.bf16 %v3117, %v3113
    %v3172 = vpack.c.bf16 %v3127, %v3123
    %v3173 = vpack.c.bf16 %v3137, %v3133
    %v3174 = vpack.c.bf16 %v3147, %v3143
    %v3175 = vpack.c.bf16 %v3157, %v3153
    %v3176 = vpack.c.bf16 %v3167, %v3163
    %3177 = vmatprep.subr.bf16.mxu0 0
    %3178 = vmatpush1.bf16.msra.mxu0 %v3169
    %3179 = vmatprep.subr.bf16.mxu0 0
    %3180 = vmatpush1.bf16.msra.mxu0 %v3170
    %3181 = vmatprep.subr.bf16.mxu0 0
    %3182 = vmatpush1.bf16.msra.mxu0 %v3171
    %3183 = vmatprep.subr.bf16.mxu0 0
    %3184 = vmatpush1.bf16.msra.mxu0 %v3172
    %3185 = vmatprep.subr.bf16.mxu0 0
    %3186 = vmatpush1.bf16.msra.mxu0 %v3173
    %3187 = vmatprep.subr.bf16.mxu0 0
    %3188 = vmatpush1.bf16.msra.mxu0 %v3174
    %3189 = vmatprep.subr.bf16.mxu0 0
    %3190 = vmatpush1.bf16.msra.mxu0 %v3175
    %3191 = vmatprep.subr.bf16.mxu0 0
    %3192 = vmatpush1.bf16.msra.mxu0 %v3176
    %3193 = vmatprep.subr.bf16.mxu0 0
    %3194 = vmatpush1.bf16.msra.mxu0 0
    %3195 = vmatprep.subr.bf16.mxu0 0
    %3196 = vmatpush1.bf16.msra.mxu0 0
    %3197 = vmatprep.subr.bf16.mxu0 0
    %3198 = vmatpush1.bf16.msra.mxu0 0
    %3199 = vmatprep.subr.bf16.mxu0 0
    %3200 = vmatpush1.bf16.msra.mxu0 0
    %3201 = vmatprep.subr.bf16.mxu0 0
    %3202 = vmatpush1.bf16.msra.mxu0 0
    %3203 = vmatprep.subr.bf16.mxu0 0
    %3204 = vmatpush1.bf16.msra.mxu0 0
    %3205 = vmatprep.subr.bf16.mxu0 0
    %3206 = vmatpush1.bf16.msra.mxu0 0
    %3207 = vmatprep.subr.bf16.mxu0 0
    %3208 = vmatpush1.bf16.msra.mxu0 0
    %3209 = vmatprep.mubr.bf16.mxu0 0
    %3210 = vmatmul.mubr.bf16.gmra.mrb[0].mxu0 %v955
    %v3211 = vpop.f32.mrb[0].mxu0
    %v3212 = vadd.f32 0.0, %v3211
    %v3213 = vpop.f32.mrb[0].mxu0
    %v3214 = vpop.f32.mrb[0].mxu0
    %v3215 = vadd.f32 0.0, %v3214
    %v3216 = vpop.f32.mrb[0].mxu0
    %3217 = vmatprep.mubr.bf16.mxu0 0
    %3218 = vmatmul.mubr.bf16.gmra.mrb[0].mxu0 %v956
    %v3219 = vpop.f32.mrb[0].mxu0
    %v3220 = vadd.f32 0.0, %v3219
    %v3221 = vpop.f32.mrb[0].mxu0
    %v3222 = vpop.f32.mrb[0].mxu0
    %v3223 = vadd.f32 0.0, %v3222
    %v3224 = vpop.f32.mrb[0].mxu0
    %3225 = vmatprep.mubr.bf16.mxu0 0
    %3226 = vmatmul.mubr.bf16.gmra.mrb[0].mxu0 %v957
    %v3227 = vpop.f32.mrb[0].mxu0
    %v3228 = vadd.f32 0.0, %v3227
    %v3229 = vpop.f32.mrb[0].mxu0
    %v3230 = vpop.f32.mrb[0].mxu0
    %v3231 = vadd.f32 0.0, %v3230
    %v3232 = vpop.f32.mrb[0].mxu0
    %3233 = vmatprep.mubr.bf16.mxu0 0
    %3234 = vmatmul.mubr.bf16.gmra.mrb[0].mxu0 %v958
    %v3235 = vpop.f32.mrb[0].mxu0
    %v3236 = vadd.f32 0.0, %v3235
    %v3237 = vpop.f32.mrb[0].mxu0
    %v3238 = vpop.f32.mrb[0].mxu0
    %v3239 = vadd.f32 0.0, %v3238
    %v3240 = vpop.f32.mrb[0].mxu0
    %3241 = vmatprep.mubr.bf16.mxu0 0
    %3242 = vmatmul.mubr.bf16.gmra.mrb[0].mxu0 %v959
    %v3243 = vpop.f32.mrb[0].mxu0
    %v3244 = vadd.f32 0.0, %v3243
    %v3245 = vpop.f32.mrb[0].mxu0
    %v3246 = vpop.f32.mrb[0].mxu0
    %v3247 = vadd.f32 0.0, %v3246
    %v3248 = vpop.f32.mrb[0].mxu0
    %3249 = vmatprep.mubr.bf16.mxu0 0
    %3250 = vmatmul.mubr.bf16.gmra.mrb[0].mxu0 %v960
    %v3251 = vpop.f32.mrb[0].mxu0
    %v3252 = vadd.f32 0.0, %v3251
    %v3253 = vpop.f32.mrb[0].mxu0
    %v3254 = vpop.f32.mrb[0].mxu0
    %v3255 = vadd.f32 0.0, %v3254
    %v3256 = vpop.f32.mrb[0].mxu0
    %3257 = vmatprep.mubr.bf16.mxu0 0
    %3258 = vmatmul.mubr.bf16.gmra.mrb[0].mxu0 %v961
    %v3259 = vpop.f32.mrb[0].mxu0
    %v3260 = vadd.f32 0.0, %v3259
    %v3261 = vpop.f32.mrb[0].mxu0
    %v3262 = vpop.f32.mrb[0].mxu0
    %v3263 = vadd.f32 0.0, %v3262
    %v3264 = vpop.f32.mrb[0].mxu0
    %3265 = vmatprep.mubr.bf16.mxu0 0
    %3266 = vmatmul.mubr.bf16.gmra.mrb[0].mxu0 %v962
    %v3267 = vpop.f32.mrb[0].mxu0
    %v3268 = vadd.f32 0.0, %v3267
    %v3269 = vpop.f32.mrb[0].mxu0
    %v3270 = vpop.f32.mrb[0].mxu0
    %v3271 = vadd.f32 0.0, %v3270
    %v3272 = vpop.f32.mrb[0].mxu0
    %3273 = vdwg.mxu0
    %v3274 = vadd.f32 %v3091, %v3212
    %v3275 = vadd.f32 %v3095, %v3215
    %v3276 = vadd.f32 %v3101, %v3220
    %v3277 = vadd.f32 %v3105, %v3223
    %v3278 = vadd.f32 %v3111, %v3228
    %v3279 = vadd.f32 %v3115, %v3231
    %v3280 = vadd.f32 %v3121, %v3236
    %v3281 = vadd.f32 %v3125, %v3239
    %v3282 = vadd.f32 %v3131, %v3244
    %v3283 = vadd.f32 %v3135, %v3247
    %v3284 = vadd.f32 %v3141, %v3252
    %v3285 = vadd.f32 %v3145, %v3255
    %v3286 = vadd.f32 %v3151, %v3260
    %v3287 = vadd.f32 %v3155, %v3263
    %v3288 = vadd.f32 %v3161, %v3268
    %v3289 = vadd.f32 %v3165, %v3271
    %v3290 = vmax.f32 %v3274, 0.0
    %v3291 = vmax.f32 %v3275, 0.0
    %v3292 = vmax.f32 %v3276, 0.0
    %v3293 = vmax.f32 %v3277, 0.0
    %v3294 = vmax.f32 %v3278, 0.0
    %v3295 = vmax.f32 %v3279, 0.0
    %v3296 = vmax.f32 %v3280, 0.0
    %v3297 = vmax.f32 %v3281, 0.0
    %v3298 = vmax.f32 %v3282, 0.0
    %v3299 = vmax.f32 %v3283, 0.0
    %v3300 = vmax.f32 %v3284, 0.0
    %v3301 = vmax.f32 %v3285, 0.0
    %v3302 = vmax.f32 %v3286, 0.0
    %v3303 = vmax.f32 %v3287, 0.0
    %v3304 = vmax.f32 %v3288, 0.0
    %v3305 = vmax.f32 %v3289, 0.0
    %v3306 = vpack.c.bf16 %v3291, %v3290
    %v3307 = vpack.c.bf16 %v3293, %v3292
    %v3308 = vpack.c.bf16 %v3295, %v3294
    %v3309 = vpack.c.bf16 %v3297, %v3296
    %v3310 = vpack.c.bf16 %v3299, %v3298
    %v3311 = vpack.c.bf16 %v3301, %v3300
    %v3312 = vpack.c.bf16 %v3303, %v3302
    %v3313 = vpack.c.bf16 %v3305, %v3304
    %s3314 = scalar_lea.vmem [#allocation10], 768
    %v3315 = vld [vmem:[%s3314] sm:$0xff]
    %v3316 = vld [vmem:[%s3314 + $0x8] sm:$0xff]
    %v3317 = vld [vmem:[%s3314 + $0x10] sm:$0xff]
    %v3318 = vld [vmem:[%s3314 + $0x18] sm:$0xff]
    %v3319 = vld [vmem:[%s3314 + $0x20] sm:$0xff]
    %v3320 = vld [vmem:[%s3314 + $0x28] sm:$0xff]
    %v3321 = vld [vmem:[%s3314 + $0x30] sm:$0xff]
    %v3322 = vld [vmem:[%s3314 + $0x38] sm:$0xff]
    %v3323 = vld [vmem:[%s3314 + $0x40] sm:$0xff]
    %v3324 = vld [vmem:[%s3314 + $0x48] sm:$0xff]
    %v3325 = vld [vmem:[%s3314 + $0x50] sm:$0xff]
    %v3326 = vld [vmem:[%s3314 + $0x58] sm:$0xff]
    %v3327 = vld [vmem:[%s3314 + $0x60] sm:$0xff]
    %v3328 = vld [vmem:[%s3314 + $0x68] sm:$0xff]
    %v3329 = vld [vmem:[%s3314 + $0x70] sm:$0xff]
    %v3330 = vld [vmem:[%s3314 + $0x78] sm:$0xff]
    %s3331 = scalar_lea.vmem %s9, 12
    %v3332 = vld [vmem:[%s3331] sm:$0x3]
    %v3334 = vlaneseq
    %v3335 = vshrl.u32 %v3334, 7
    %v3336 = vsub.s32 0, %v3335
    %v3337 = vrot.slane %v3332, %v3336
    %v3338 = vlaneseq
    %v3339 = vshrl.u32 %v3338, 7
    %v3340 = vsub.s32 1, %v3339
    %v3341 = vrot.slane %v3332, %v3340
    %v3360 = vunpack.c.l.b16 %v3315
    %v3361 = vunpack.c.h.b16 %v3315
    %v3362 = vunpack.c.l.b16 %v3316
    %v3363 = vunpack.c.h.b16 %v3316
    %v3364 = vunpack.c.l.b16 %v3317
    %v3365 = vunpack.c.h.b16 %v3317
    %v3366 = vunpack.c.l.b16 %v3318
    %v3367 = vunpack.c.h.b16 %v3318
    %v3368 = vunpack.c.l.b16 %v3319
    %v3369 = vunpack.c.h.b16 %v3319
    %v3370 = vunpack.c.l.b16 %v3320
    %v3371 = vunpack.c.h.b16 %v3320
    %v3372 = vunpack.c.l.b16 %v3321
    %v3373 = vunpack.c.h.b16 %v3321
    %v3374 = vunpack.c.l.b16 %v3322
    %v3375 = vunpack.c.h.b16 %v3322
    %v3376 = vunpack.c.l.b16 %v3323
    %v3377 = vunpack.c.h.b16 %v3323
    %v3378 = vunpack.c.l.b16 %v3324
    %v3379 = vunpack.c.h.b16 %v3324
    %v3380 = vunpack.c.l.b16 %v3325
    %v3381 = vunpack.c.h.b16 %v3325
    %v3382 = vunpack.c.l.b16 %v3326
    %v3383 = vunpack.c.h.b16 %v3326
    %v3384 = vunpack.c.l.b16 %v3327
    %v3385 = vunpack.c.h.b16 %v3327
    %v3386 = vunpack.c.l.b16 %v3328
    %v3387 = vunpack.c.h.b16 %v3328
    %v3388 = vunpack.c.l.b16 %v3329
    %v3389 = vunpack.c.h.b16 %v3329
    %v3390 = vunpack.c.l.b16 %v3330
    %v3391 = vunpack.c.h.b16 %v3330
    %v3392 = vpack.c.b16 %v3362, %v3360
    %v3393 = vpack.c.b16 %v3363, %v3361
    %v3394 = vpack.c.b16 %v3366, %v3364
    %v3395 = vpack.c.b16 %v3367, %v3365
    %v3396 = vpack.c.b16 %v3370, %v3368
    %v3397 = vpack.c.b16 %v3371, %v3369
    %v3398 = vpack.c.b16 %v3374, %v3372
    %v3399 = vpack.c.b16 %v3375, %v3373
    %v3400 = vpack.c.b16 %v3378, %v3376
    %v3401 = vpack.c.b16 %v3379, %v3377
    %v3402 = vpack.c.b16 %v3382, %v3380
    %v3403 = vpack.c.b16 %v3383, %v3381
    %v3404 = vpack.c.b16 %v3386, %v3384
    %v3405 = vpack.c.b16 %v3387, %v3385
    %v3406 = vpack.c.b16 %v3390, %v3388
    %v3407 = vpack.c.b16 %v3391, %v3389
    %3424 = vmatprep.subr.bf16.mxu0 %v3393
    %3425 = vmatpush1.bf16.msra.mxu0 %v3392
    %3426 = vmatprep.subr.bf16.mxu0 %v3395
    %3427 = vmatpush1.bf16.msra.mxu0 %v3394
    %3428 = vmatprep.subr.bf16.mxu0 %v3397
    %3429 = vmatpush1.bf16.msra.mxu0 %v3396
    %3430 = vmatprep.subr.bf16.mxu0 %v3399
    %3431 = vmatpush1.bf16.msra.mxu0 %v3398
    %3432 = vmatprep.subr.bf16.mxu0 %v3401
    %3433 = vmatpush1.bf16.msra.mxu0 %v3400
    %3434 = vmatprep.subr.bf16.mxu0 %v3403
    %3435 = vmatpush1.bf16.msra.mxu0 %v3402
    %3436 = vmatprep.subr.bf16.mxu0 %v3405
    %3437 = vmatpush1.bf16.msra.mxu0 %v3404
    %3438 = vmatprep.subr.bf16.mxu0 %v3407
    %3439 = vmatpush1.bf16.msra.mxu0 %v3406
    %3440 = vmatprep.subr.bf16.mxu0 0
    %3441 = vmatpush1.bf16.msra.mxu0 0
    %3442 = vmatprep.subr.bf16.mxu0 0
    %3443 = vmatpush1.bf16.msra.mxu0 0
    %3444 = vmatprep.subr.bf16.mxu0 0
    %3445 = vmatpush1.bf16.msra.mxu0 0
    %3446 = vmatprep.subr.bf16.mxu0 0
    %3447 = vmatpush1.bf16.msra.mxu0 0
    %3448 = vmatprep.subr.bf16.mxu0 0
    %3449 = vmatpush1.bf16.msra.mxu0 0
    %3450 = vmatprep.subr.bf16.mxu0 0
    %3451 = vmatpush1.bf16.msra.mxu0 0
    %3452 = vmatprep.subr.bf16.mxu0 0
    %3453 = vmatpush1.bf16.msra.mxu0 0
    %3454 = vmatprep.subr.bf16.mxu0 0
    %3455 = vmatpush1.bf16.msra.mxu0 0
    %3456 = vmatprep.mubr.bf16.mxu0 0
    %3457 = vmatmul.mubr.bf16.gmra.mrb[0].mxu0 %v3306
    %v3458 = vpop.f32.mrb[0].mxu0
    %v3459 = vadd.f32 %v3337, %v3458
    %v3460 = vpop.f32.mrb[0].mxu0
    %v3461 = vadd.f32 %v3341, %v3460
    %v3462 = vpop.f32.mrb[0].mxu0
    %v3463 = vadd.f32 %v3337, %v3462
    %v3464 = vpop.f32.mrb[0].mxu0
    %v3465 = vadd.f32 %v3341, %v3464
    %3466 = vmatprep.mubr.bf16.mxu0 0
    %3467 = vmatmul.mubr.bf16.gmra.mrb[0].mxu0 %v3307
    %v3468 = vpop.f32.mrb[0].mxu0
    %v3469 = vadd.f32 %v3337, %v3468
    %v3470 = vpop.f32.mrb[0].mxu0
    %v3471 = vadd.f32 %v3341, %v3470
    %v3472 = vpop.f32.mrb[0].mxu0
    %v3473 = vadd.f32 %v3337, %v3472
    %v3474 = vpop.f32.mrb[0].mxu0
    %v3475 = vadd.f32 %v3341, %v3474
    %3476 = vmatprep.mubr.bf16.mxu0 0
    %3477 = vmatmul.mubr.bf16.gmra.mrb[0].mxu0 %v3308
    %v3478 = vpop.f32.mrb[0].mxu0
    %v3479 = vadd.f32 %v3337, %v3478
    %v3480 = vpop.f32.mrb[0].mxu0
    %v3481 = vadd.f32 %v3341, %v3480
    %v3482 = vpop.f32.mrb[0].mxu0
    %v3483 = vadd.f32 %v3337, %v3482
    %v3484 = vpop.f32.mrb[0].mxu0
    %v3485 = vadd.f32 %v3341, %v3484
    %3486 = vmatprep.mubr.bf16.mxu0 0
    %3487 = vmatmul.mubr.bf16.gmra.mrb[0].mxu0 %v3309
    %v3488 = vpop.f32.mrb[0].mxu0
    %v3489 = vadd.f32 %v3337, %v3488
    %v3490 = vpop.f32.mrb[0].mxu0
    %v3491 = vadd.f32 %v3341, %v3490
    %v3492 = vpop.f32.mrb[0].mxu0
    %v3493 = vadd.f32 %v3337, %v3492
    %v3494 = vpop.f32.mrb[0].mxu0
    %v3495 = vadd.f32 %v3341, %v3494
    %3496 = vmatprep.mubr.bf16.mxu0 0
    %3497 = vmatmul.mubr.bf16.gmra.mrb[0].mxu0 %v3310
    %v3498 = vpop.f32.mrb[0].mxu0
    %v3499 = vadd.f32 %v3337, %v3498
    %v3500 = vpop.f32.mrb[0].mxu0
    %v3501 = vadd.f32 %v3341, %v3500
    %v3502 = vpop.f32.mrb[0].mxu0
    %v3503 = vadd.f32 %v3337, %v3502
    %v3504 = vpop.f32.mrb[0].mxu0
    %v3505 = vadd.f32 %v3341, %v3504
    %3506 = vmatprep.mubr.bf16.mxu0 0
    %3507 = vmatmul.mubr.bf16.gmra.mrb[0].mxu0 %v3311
    %v3508 = vpop.f32.mrb[0].mxu0
    %v3509 = vadd.f32 %v3337, %v3508
    %v3510 = vpop.f32.mrb[0].mxu0
    %v3511 = vadd.f32 %v3341, %v3510
    %v3512 = vpop.f32.mrb[0].mxu0
    %v3513 = vadd.f32 %v3337, %v3512
    %v3514 = vpop.f32.mrb[0].mxu0
    %v3515 = vadd.f32 %v3341, %v3514
    %3516 = vmatprep.mubr.bf16.mxu0 0
    %3517 = vmatmul.mubr.bf16.gmra.mrb[0].mxu0 %v3312
    %v3518 = vpop.f32.mrb[0].mxu0
    %v3519 = vadd.f32 %v3337, %v3518
    %v3520 = vpop.f32.mrb[0].mxu0
    %v3521 = vadd.f32 %v3341, %v3520
    %v3522 = vpop.f32.mrb[0].mxu0
    %v3523 = vadd.f32 %v3337, %v3522
    %v3524 = vpop.f32.mrb[0].mxu0
    %v3525 = vadd.f32 %v3341, %v3524
    %3526 = vmatprep.mubr.bf16.mxu0 0
    %3527 = vmatmul.mubr.bf16.gmra.mrb[0].mxu0 %v3313
    %v3528 = vpop.f32.mrb[0].mxu0
    %v3529 = vadd.f32 %v3337, %v3528
    %v3530 = vpop.f32.mrb[0].mxu0
    %v3531 = vadd.f32 %v3341, %v3530
    %v3532 = vpop.f32.mrb[0].mxu0
    %v3533 = vadd.f32 %v3337, %v3532
    %v3534 = vpop.f32.mrb[0].mxu0
    %v3535 = vadd.f32 %v3341, %v3534
    %3536 = vdwg.mxu0
    %v3537 = vpack.c.bf16 %v3465, %v3461
    %v3538 = vpack.c.bf16 %v3475, %v3471
    %v3539 = vpack.c.bf16 %v3485, %v3481
    %v3540 = vpack.c.bf16 %v3495, %v3491
    %v3541 = vpack.c.bf16 %v3505, %v3501
    %v3542 = vpack.c.bf16 %v3515, %v3511
    %v3543 = vpack.c.bf16 %v3525, %v3521
    %v3544 = vpack.c.bf16 %v3535, %v3531
    %3545 = vmatprep.subr.bf16.mxu0 0
    %3546 = vmatpush1.bf16.msra.mxu0 %v3537
    %3547 = vmatprep.subr.bf16.mxu0 0
    %3548 = vmatpush1.bf16.msra.mxu0 %v3538
    %3549 = vmatprep.subr.bf16.mxu0 0
    %3550 = vmatpush1.bf16.msra.mxu0 %v3539
    %3551 = vmatprep.subr.bf16.mxu0 0
    %3552 = vmatpush1.bf16.msra.mxu0 %v3540
    %3553 = vmatprep.subr.bf16.mxu0 0
    %3554 = vmatpush1.bf16.msra.mxu0 %v3541
    %3555 = vmatprep.subr.bf16.mxu0 0
    %3556 = vmatpush1.bf16.msra.mxu0 %v3542
    %3557 = vmatprep.subr.bf16.mxu0 0
    %3558 = vmatpush1.bf16.msra.mxu0 %v3543
    %3559 = vmatprep.subr.bf16.mxu0 0
    %3560 = vmatpush1.bf16.msra.mxu0 %v3544
    %3561 = vmatprep.subr.bf16.mxu0 0
    %3562 = vmatpush1.bf16.msra.mxu0 0
    %3563 = vmatprep.subr.bf16.mxu0 0
    %3564 = vmatpush1.bf16.msra.mxu0 0
    %3565 = vmatprep.subr.bf16.mxu0 0
    %3566 = vmatpush1.bf16.msra.mxu0 0
    %3567 = vmatprep.subr.bf16.mxu0 0
    %3568 = vmatpush1.bf16.msra.mxu0 0
    %3569 = vmatprep.subr.bf16.mxu0 0
    %3570 = vmatpush1.bf16.msra.mxu0 0
    %3571 = vmatprep.subr.bf16.mxu0 0
    %3572 = vmatpush1.bf16.msra.mxu0 0
    %3573 = vmatprep.subr.bf16.mxu0 0
    %3574 = vmatpush1.bf16.msra.mxu0 0
    %3575 = vmatprep.subr.bf16.mxu0 0
    %3576 = vmatpush1.bf16.msra.mxu0 0
    %3577 = vmatprep.mubr.bf16.mxu0 0
    %3578 = vmatmul.mubr.bf16.gmra.mrb[0].mxu0 %v955
    %v3579 = vpop.f32.mrb[0].mxu0
    %v3580 = vadd.f32 0.0, %v3579
    %v3581 = vpop.f32.mrb[0].mxu0
    %v3582 = vpop.f32.mrb[0].mxu0
    %v3583 = vadd.f32 0.0, %v3582
    %v3584 = vpop.f32.mrb[0].mxu0
    %3585 = vmatprep.mubr.bf16.mxu0 0
    %3586 = vmatmul.mubr.bf16.gmra.mrb[0].mxu0 %v956
    %v3587 = vpop.f32.mrb[0].mxu0
    %v3588 = vadd.f32 0.0, %v3587
    %v3589 = vpop.f32.mrb[0].mxu0
    %v3590 = vpop.f32.mrb[0].mxu0
    %v3591 = vadd.f32 0.0, %v3590
    %v3592 = vpop.f32.mrb[0].mxu0
    %3593 = vmatprep.mubr.bf16.mxu0 0
    %3594 = vmatmul.mubr.bf16.gmra.mrb[0].mxu0 %v957
    %v3595 = vpop.f32.mrb[0].mxu0
    %v3596 = vadd.f32 0.0, %v3595
    %v3597 = vpop.f32.mrb[0].mxu0
    %v3598 = vpop.f32.mrb[0].mxu0
    %v3599 = vadd.f32 0.0, %v3598
    %v3600 = vpop.f32.mrb[0].mxu0
    %3601 = vmatprep.mubr.bf16.mxu0 0
    %3602 = vmatmul.mubr.bf16.gmra.mrb[0].mxu0 %v958
    %v3603 = vpop.f32.mrb[0].mxu0
    %v3604 = vadd.f32 0.0, %v3603
    %v3605 = vpop.f32.mrb[0].mxu0
    %v3606 = vpop.f32.mrb[0].mxu0
    %v3607 = vadd.f32 0.0, %v3606
    %v3608 = vpop.f32.mrb[0].mxu0
    %3609 = vmatprep.mubr.bf16.mxu0 0
    %3610 = vmatmul.mubr.bf16.gmra.mrb[0].mxu0 %v959
    %v3611 = vpop.f32.mrb[0].mxu0
    %v3612 = vadd.f32 0.0, %v3611
    %v3613 = vpop.f32.mrb[0].mxu0
    %v3614 = vpop.f32.mrb[0].mxu0
    %v3615 = vadd.f32 0.0, %v3614
    %v3616 = vpop.f32.mrb[0].mxu0
    %3617 = vmatprep.mubr.bf16.mxu0 0
    %3618 = vmatmul.mubr.bf16.gmra.mrb[0].mxu0 %v960
    %v3619 = vpop.f32.mrb[0].mxu0
    %v3620 = vadd.f32 0.0, %v3619
    %v3621 = vpop.f32.mrb[0].mxu0
    %v3622 = vpop.f32.mrb[0].mxu0
    %v3623 = vadd.f32 0.0, %v3622
    %v3624 = vpop.f32.mrb[0].mxu0
    %3625 = vmatprep.mubr.bf16.mxu0 0
    %3626 = vmatmul.mubr.bf16.gmra.mrb[0].mxu0 %v961
    %v3627 = vpop.f32.mrb[0].mxu0
    %v3628 = vadd.f32 0.0, %v3627
    %v3629 = vpop.f32.mrb[0].mxu0
    %v3630 = vpop.f32.mrb[0].mxu0
    %v3631 = vadd.f32 0.0, %v3630
    %v3632 = vpop.f32.mrb[0].mxu0
    %3633 = vmatprep.mubr.bf16.mxu0 0
    %3634 = vmatmul.mubr.bf16.gmra.mrb[0].mxu0 %v962
    %v3635 = vpop.f32.mrb[0].mxu0
    %v3636 = vadd.f32 0.0, %v3635
    %v3637 = vpop.f32.mrb[0].mxu0
    %v3638 = vpop.f32.mrb[0].mxu0
    %v3639 = vadd.f32 0.0, %v3638
    %v3640 = vpop.f32.mrb[0].mxu0
    %3641 = vdwg.mxu0
    %v3642 = vadd.f32 %v3459, %v3580
    %v3643 = vadd.f32 %v3463, %v3583
    %v3644 = vadd.f32 %v3469, %v3588
    %v3645 = vadd.f32 %v3473, %v3591
    %v3646 = vadd.f32 %v3479, %v3596
    %v3647 = vadd.f32 %v3483, %v3599
    %v3648 = vadd.f32 %v3489, %v3604
    %v3649 = vadd.f32 %v3493, %v3607
    %v3650 = vadd.f32 %v3499, %v3612
    %v3651 = vadd.f32 %v3503, %v3615
    %v3652 = vadd.f32 %v3509, %v3620
    %v3653 = vadd.f32 %v3513, %v3623
    %v3654 = vadd.f32 %v3519, %v3628
    %v3655 = vadd.f32 %v3523, %v3631
    %v3656 = vadd.f32 %v3529, %v3636
    %v3657 = vadd.f32 %v3533, %v3639
    %v3658 = vmax.f32 %v3642, 0.0
    %v3659 = vmax.f32 %v3643, 0.0
    %v3660 = vmax.f32 %v3644, 0.0
    %v3661 = vmax.f32 %v3645, 0.0
    %v3662 = vmax.f32 %v3646, 0.0
    %v3663 = vmax.f32 %v3647, 0.0
    %v3664 = vmax.f32 %v3648, 0.0
    %v3665 = vmax.f32 %v3649, 0.0
    %v3666 = vmax.f32 %v3650, 0.0
    %v3667 = vmax.f32 %v3651, 0.0
    %v3668 = vmax.f32 %v3652, 0.0
    %v3669 = vmax.f32 %v3653, 0.0
    %v3670 = vmax.f32 %v3654, 0.0
    %v3671 = vmax.f32 %v3655, 0.0
    %v3672 = vmax.f32 %v3656, 0.0
    %v3673 = vmax.f32 %v3657, 0.0
    %v3674 = vpack.c.bf16 %v3659, %v3658
    %v3675 = vpack.c.bf16 %v3661, %v3660
    %v3676 = vpack.c.bf16 %v3663, %v3662
    %v3677 = vpack.c.bf16 %v3665, %v3664
    %v3678 = vpack.c.bf16 %v3667, %v3666
    %v3679 = vpack.c.bf16 %v3669, %v3668
    %v3680 = vpack.c.bf16 %v3671, %v3670
    %v3681 = vpack.c.bf16 %v3673, %v3672
    %v3682 = vld [vmem:[#allocation11] sm:$0xf]
    %v3683 = vld [vmem:[#allocation11 + $0x4] sm:$0xf]
    %v3684 = vld [vmem:[#allocation11 + $0x8] sm:$0xf]
    %v3685 = vld [vmem:[#allocation11 + $0xc] sm:$0xf]
    %v3686 = vld [vmem:[#allocation11 + $0x10] sm:$0xf]
    %v3687 = vld [vmem:[#allocation11 + $0x14] sm:$0xf]
    %v3688 = vld [vmem:[#allocation11 + $0x18] sm:$0xf]
    %v3689 = vld [vmem:[#allocation11 + $0x1c] sm:$0xf]
    %v3690 = vld [vmem:[#allocation11 + $0x20] sm:$0xf]
    %v3691 = vld [vmem:[#allocation11 + $0x24] sm:$0xf]
    %v3692 = vld [vmem:[#allocation11 + $0x28] sm:$0xf]
    %v3693 = vld [vmem:[#allocation11 + $0x2c] sm:$0xf]
    %v3694 = vld [vmem:[#allocation11 + $0x30] sm:$0xf]
    %v3695 = vld [vmem:[#allocation11 + $0x34] sm:$0xf]
    %v3696 = vld [vmem:[#allocation11 + $0x38] sm:$0xf]
    %v3697 = vld [vmem:[#allocation11 + $0x3c] sm:$0xf]
    %v3698 = vld [vmem:[%s11] sm:$0x1]
    %v3700 = vlaneseq
    %v3701 = vshrl.u32 %v3700, 7
    %v3702 = vsub.s32 0, %v3701
    %v3703 = vrot.slane %v3698, %v3702
    %v3721 = vunpack.c.l.b16 %v3682
    %v3722 = vunpack.c.l.b16 %v3683
    %v3723 = vunpack.c.l.b16 %v3684
    %v3724 = vunpack.c.l.b16 %v3685
    %v3725 = vunpack.c.l.b16 %v3686
    %v3726 = vunpack.c.l.b16 %v3687
    %v3727 = vunpack.c.l.b16 %v3688
    %v3728 = vunpack.c.l.b16 %v3689
    %v3729 = vunpack.c.l.b16 %v3690
    %v3730 = vunpack.c.l.b16 %v3691
    %v3731 = vunpack.c.l.b16 %v3692
    %v3732 = vunpack.c.l.b16 %v3693
    %v3733 = vunpack.c.l.b16 %v3694
    %v3734 = vunpack.c.l.b16 %v3695
    %v3735 = vunpack.c.l.b16 %v3696
    %v3736 = vunpack.c.l.b16 %v3697
    %v3737 = vpack.c.b16 %v3722, %v3721
    %v3738 = vpack.c.b16 %v3724, %v3723
    %v3739 = vpack.c.b16 %v3726, %v3725
    %v3740 = vpack.c.b16 %v3728, %v3727
    %v3741 = vpack.c.b16 %v3730, %v3729
    %v3742 = vpack.c.b16 %v3732, %v3731
    %v3743 = vpack.c.b16 %v3734, %v3733
    %v3744 = vpack.c.b16 %v3736, %v3735
    %3753 = vmatprep.subr.bf16.mxu0 0
    %3754 = vmatpush1.bf16.msra.mxu0 %v3737
    %3755 = vmatprep.subr.bf16.mxu0 0
    %3756 = vmatpush1.bf16.msra.mxu0 %v3738
    %3757 = vmatprep.subr.bf16.mxu0 0
    %3758 = vmatpush1.bf16.msra.mxu0 %v3739
    %3759 = vmatprep.subr.bf16.mxu0 0
    %3760 = vmatpush1.bf16.msra.mxu0 %v3740
    %3761 = vmatprep.subr.bf16.mxu0 0
    %3762 = vmatpush1.bf16.msra.mxu0 %v3741
    %3763 = vmatprep.subr.bf16.mxu0 0
    %3764 = vmatpush1.bf16.msra.mxu0 %v3742
    %3765 = vmatprep.subr.bf16.mxu0 0
    %3766 = vmatpush1.bf16.msra.mxu0 %v3743
    %3767 = vmatprep.subr.bf16.mxu0 0
    %3768 = vmatpush1.bf16.msra.mxu0 %v3744
    %3769 = vmatprep.subr.bf16.mxu0 0
    %3770 = vmatpush1.bf16.msra.mxu0 0
    %3771 = vmatprep.subr.bf16.mxu0 0
    %3772 = vmatpush1.bf16.msra.mxu0 0
    %3773 = vmatprep.subr.bf16.mxu0 0
    %3774 = vmatpush1.bf16.msra.mxu0 0
    %3775 = vmatprep.subr.bf16.mxu0 0
    %3776 = vmatpush1.bf16.msra.mxu0 0
    %3777 = vmatprep.subr.bf16.mxu0 0
    %3778 = vmatpush1.bf16.msra.mxu0 0
    %3779 = vmatprep.subr.bf16.mxu0 0
    %3780 = vmatpush1.bf16.msra.mxu0 0
    %3781 = vmatprep.subr.bf16.mxu0 0
    %3782 = vmatpush1.bf16.msra.mxu0 0
    %3783 = vmatprep.subr.bf16.mxu0 0
    %3784 = vmatpush1.bf16.msra.mxu0 0
    %3785 = vmatprep.mubr.bf16.mxu0 0
    %3786 = vmatmul.mubr.bf16.gmra.mrb[0].mxu0 %v3674
    %v3787 = vpop.f32.mrb[0].mxu0
    %v3788 = vadd.f32 %v3703, %v3787
    %v3789 = vpop.f32.mrb[0].mxu0
    %v3790 = vpop.f32.mrb[0].mxu0
    %v3791 = vadd.f32 %v3703, %v3790
    %v3792 = vpop.f32.mrb[0].mxu0
    %3793 = vmatprep.mubr.bf16.mxu0 0
    %3794 = vmatmul.mubr.bf16.gmra.mrb[0].mxu0 %v3675
    %v3795 = vpop.f32.mrb[0].mxu0
    %v3796 = vadd.f32 %v3703, %v3795
    %v3797 = vpop.f32.mrb[0].mxu0
    %v3798 = vpop.f32.mrb[0].mxu0
    %v3799 = vadd.f32 %v3703, %v3798
    %v3800 = vpop.f32.mrb[0].mxu0
    %3801 = vmatprep.mubr.bf16.mxu0 0
    %3802 = vmatmul.mubr.bf16.gmra.mrb[0].mxu0 %v3676
    %v3803 = vpop.f32.mrb[0].mxu0
    %v3804 = vadd.f32 %v3703, %v3803
    %v3805 = vpop.f32.mrb[0].mxu0
    %v3806 = vpop.f32.mrb[0].mxu0
    %v3807 = vadd.f32 %v3703, %v3806
    %v3808 = vpop.f32.mrb[0].mxu0
    %3809 = vmatprep.mubr.bf16.mxu0 0
    %3810 = vmatmul.mubr.bf16.gmra.mrb[0].mxu0 %v3677
    %v3811 = vpop.f32.mrb[0].mxu0
    %v3812 = vadd.f32 %v3703, %v3811
    %v3813 = vpop.f32.mrb[0].mxu0
    %v3814 = vpop.f32.mrb[0].mxu0
    %v3815 = vadd.f32 %v3703, %v3814
    %v3816 = vpop.f32.mrb[0].mxu0
    %3817 = vmatprep.mubr.bf16.mxu0 0
    %3818 = vmatmul.mubr.bf16.gmra.mrb[0].mxu0 %v3678
    %v3819 = vpop.f32.mrb[0].mxu0
    %v3820 = vadd.f32 %v3703, %v3819
    %v3821 = vpop.f32.mrb[0].mxu0
    %v3822 = vpop.f32.mrb[0].mxu0
    %v3823 = vadd.f32 %v3703, %v3822
    %v3824 = vpop.f32.mrb[0].mxu0
    %3825 = vmatprep.mubr.bf16.mxu0 0
    %3826 = vmatmul.mubr.bf16.gmra.mrb[0].mxu0 %v3679
    %v3827 = vpop.f32.mrb[0].mxu0
    %v3828 = vadd.f32 %v3703, %v3827
    %v3829 = vpop.f32.mrb[0].mxu0
    %v3830 = vpop.f32.mrb[0].mxu0
    %v3831 = vadd.f32 %v3703, %v3830
    %v3832 = vpop.f32.mrb[0].mxu0
    %3833 = vmatprep.mubr.bf16.mxu0 0
    %3834 = vmatmul.mubr.bf16.gmra.mrb[0].mxu0 %v3680
    %v3835 = vpop.f32.mrb[0].mxu0
    %v3836 = vadd.f32 %v3703, %v3835
    %v3837 = vpop.f32.mrb[0].mxu0
    %v3838 = vpop.f32.mrb[0].mxu0
    %v3839 = vadd.f32 %v3703, %v3838
    %v3840 = vpop.f32.mrb[0].mxu0
    %3841 = vmatprep.mubr.bf16.mxu0 0
    %3842 = vmatmul.mubr.bf16.gmra.mrb[0].mxu0 %v3681
    %v3843 = vpop.f32.mrb[0].mxu0
    %v3844 = vadd.f32 %v3703, %v3843
    %v3845 = vpop.f32.mrb[0].mxu0
    %v3846 = vpop.f32.mrb[0].mxu0
    %v3847 = vadd.f32 %v3703, %v3846
    %v3848 = vpop.f32.mrb[0].mxu0
    %3849 = vdwg.mxu0
    %v3850 = vmax.f32 %v3788, 0.0
    %v3851 = vmax.f32 %v3791, 0.0
    %v3852 = vmax.f32 %v3796, 0.0
    %v3853 = vmax.f32 %v3799, 0.0
    %v3854 = vmax.f32 %v3804, 0.0
    %v3855 = vmax.f32 %v3807, 0.0
    %v3856 = vmax.f32 %v3812, 0.0
    %v3857 = vmax.f32 %v3815, 0.0
    %v3858 = vmax.f32 %v3820, 0.0
    %v3859 = vmax.f32 %v3823, 0.0
    %v3860 = vmax.f32 %v3828, 0.0
    %v3861 = vmax.f32 %v3831, 0.0
    %v3862 = vmax.f32 %v3836, 0.0
    %v3863 = vmax.f32 %v3839, 0.0
    %v3864 = vmax.f32 %v3844, 0.0
    %v3865 = vmax.f32 %v3847, 0.0
    %v3866 = vpack.c.bf16 %v3851, %v3850
    %v3867 = vpack.c.bf16 %v3853, %v3852
    %v3868 = vpack.c.bf16 %v3855, %v3854
    %v3869 = vpack.c.bf16 %v3857, %v3856
    %v3870 = vpack.c.bf16 %v3859, %v3858
    %v3871 = vpack.c.bf16 %v3861, %v3860
    %v3872 = vpack.c.bf16 %v3863, %v3862
    %v3873 = vpack.c.bf16 %v3865, %v3864
    %v3874 = vld [vmem:[#allocation13] sm:$0xf]
    %v3875 = vld [vmem:[#allocation13 + $0x4] sm:$0xf]
    %v3876 = vld [vmem:[#allocation13 + $0x8] sm:$0xf]
    %v3877 = vld [vmem:[#allocation13 + $0xc] sm:$0xf]
    %v3878 = vld [vmem:[#allocation13 + $0x10] sm:$0xf]
    %v3879 = vld [vmem:[#allocation13 + $0x14] sm:$0xf]
    %v3880 = vld [vmem:[#allocation13 + $0x18] sm:$0xf]
    %v3881 = vld [vmem:[#allocation13 + $0x1c] sm:$0xf]
    %v3882 = vld [vmem:[#allocation13 + $0x20] sm:$0xf]
    %v3883 = vld [vmem:[#allocation13 + $0x24] sm:$0xf]
    %v3884 = vld [vmem:[#allocation13 + $0x28] sm:$0xf]
    %v3885 = vld [vmem:[#allocation13 + $0x2c] sm:$0xf]
    %v3886 = vld [vmem:[#allocation13 + $0x30] sm:$0xf]
    %v3887 = vld [vmem:[#allocation13 + $0x34] sm:$0xf]
    %v3888 = vld [vmem:[#allocation13 + $0x38] sm:$0xf]
    %v3889 = vld [vmem:[#allocation13 + $0x3c] sm:$0xf]
    %v3890 = vld [vmem:[%s13] sm:$0x1]
    %v3892 = vlaneseq
    %v3893 = vshrl.u32 %v3892, 7
    %v3894 = vsub.s32 0, %v3893
    %v3895 = vrot.slane %v3890, %v3894
    %v3913 = vunpack.c.l.b16 %v3874
    %v3914 = vunpack.c.l.b16 %v3875
    %v3915 = vunpack.c.l.b16 %v3876
    %v3916 = vunpack.c.l.b16 %v3877
    %v3917 = vunpack.c.l.b16 %v3878
    %v3918 = vunpack.c.l.b16 %v3879
    %v3919 = vunpack.c.l.b16 %v3880
    %v3920 = vunpack.c.l.b16 %v3881
    %v3921 = vunpack.c.l.b16 %v3882
    %v3922 = vunpack.c.l.b16 %v3883
    %v3923 = vunpack.c.l.b16 %v3884
    %v3924 = vunpack.c.l.b16 %v3885
    %v3925 = vunpack.c.l.b16 %v3886
    %v3926 = vunpack.c.l.b16 %v3887
    %v3927 = vunpack.c.l.b16 %v3888
    %v3928 = vunpack.c.l.b16 %v3889
    %v3929 = vpack.c.b16 %v3914, %v3913
    %v3930 = vpack.c.b16 %v3916, %v3915
    %v3931 = vpack.c.b16 %v3918, %v3917
    %v3932 = vpack.c.b16 %v3920, %v3919
    %v3933 = vpack.c.b16 %v3922, %v3921
    %v3934 = vpack.c.b16 %v3924, %v3923
    %v3935 = vpack.c.b16 %v3926, %v3925
    %v3936 = vpack.c.b16 %v3928, %v3927
    %3945 = vmatprep.subr.bf16.mxu0 0
    %3946 = vmatpush1.bf16.msra.mxu0 %v3929
    %3947 = vmatprep.subr.bf16.mxu0 0
    %3948 = vmatpush1.bf16.msra.mxu0 %v3930
    %3949 = vmatprep.subr.bf16.mxu0 0
    %3950 = vmatpush1.bf16.msra.mxu0 %v3931
    %3951 = vmatprep.subr.bf16.mxu0 0
    %3952 = vmatpush1.bf16.msra.mxu0 %v3932
    %3953 = vmatprep.subr.bf16.mxu0 0
    %3954 = vmatpush1.bf16.msra.mxu0 %v3933
    %3955 = vmatprep.subr.bf16.mxu0 0
    %3956 = vmatpush1.bf16.msra.mxu0 %v3934
    %3957 = vmatprep.subr.bf16.mxu0 0
    %3958 = vmatpush1.bf16.msra.mxu0 %v3935
    %3959 = vmatprep.subr.bf16.mxu0 0
    %3960 = vmatpush1.bf16.msra.mxu0 %v3936
    %3961 = vmatprep.subr.bf16.mxu0 0
    %3962 = vmatpush1.bf16.msra.mxu0 0
    %3963 = vmatprep.subr.bf16.mxu0 0
    %3964 = vmatpush1.bf16.msra.mxu0 0
    %3965 = vmatprep.subr.bf16.mxu0 0
    %3966 = vmatpush1.bf16.msra.mxu0 0
    %3967 = vmatprep.subr.bf16.mxu0 0
    %3968 = vmatpush1.bf16.msra.mxu0 0
    %3969 = vmatprep.subr.bf16.mxu0 0
    %3970 = vmatpush1.bf16.msra.mxu0 0
    %3971 = vmatprep.subr.bf16.mxu0 0
    %3972 = vmatpush1.bf16.msra.mxu0 0
    %3973 = vmatprep.subr.bf16.mxu0 0
    %3974 = vmatpush1.bf16.msra.mxu0 0
    %3975 = vmatprep.subr.bf16.mxu0 0
    %3976 = vmatpush1.bf16.msra.mxu0 0
    %3977 = vmatprep.mubr.bf16.mxu0 0
    %3978 = vmatmul.mubr.bf16.gmra.mrb[0].mxu0 %v3866
    %v3979 = vpop.f32.mrb[0].mxu0
    %v3980 = vadd.f32 %v3895, %v3979
    %v3981 = vpop.f32.mrb[0].mxu0
    %v3982 = vpop.f32.mrb[0].mxu0
    %v3983 = vadd.f32 %v3895, %v3982
    %v3984 = vpop.f32.mrb[0].mxu0
    %3985 = vmatprep.mubr.bf16.mxu0 0
    %3986 = vmatmul.mubr.bf16.gmra.mrb[0].mxu0 %v3867
    %v3987 = vpop.f32.mrb[0].mxu0
    %v3988 = vadd.f32 %v3895, %v3987
    %v3989 = vpop.f32.mrb[0].mxu0
    %v3990 = vpop.f32.mrb[0].mxu0
    %v3991 = vadd.f32 %v3895, %v3990
    %v3992 = vpop.f32.mrb[0].mxu0
    %3993 = vmatprep.mubr.bf16.mxu0 0
    %3994 = vmatmul.mubr.bf16.gmra.mrb[0].mxu0 %v3868
    %v3995 = vpop.f32.mrb[0].mxu0
    %v3996 = vadd.f32 %v3895, %v3995
    %v3997 = vpop.f32.mrb[0].mxu0
    %v3998 = vpop.f32.mrb[0].mxu0
    %v3999 = vadd.f32 %v3895, %v3998
    %v4000 = vpop.f32.mrb[0].mxu0
    %4001 = vmatprep.mubr.bf16.mxu0 0
    %4002 = vmatmul.mubr.bf16.gmra.mrb[0].mxu0 %v3869
    %v4003 = vpop.f32.mrb[0].mxu0
    %v4004 = vadd.f32 %v3895, %v4003
    %v4005 = vpop.f32.mrb[0].mxu0
    %v4006 = vpop.f32.mrb[0].mxu0
    %v4007 = vadd.f32 %v3895, %v4006
    %v4008 = vpop.f32.mrb[0].mxu0
    %4009 = vmatprep.mubr.bf16.mxu0 0
    %4010 = vmatmul.mubr.bf16.gmra.mrb[0].mxu0 %v3870
    %v4011 = vpop.f32.mrb[0].mxu0
    %v4012 = vadd.f32 %v3895, %v4011
    %v4013 = vpop.f32.mrb[0].mxu0
    %v4014 = vpop.f32.mrb[0].mxu0
    %v4015 = vadd.f32 %v3895, %v4014
    %v4016 = vpop.f32.mrb[0].mxu0
    %4017 = vmatprep.mubr.bf16.mxu0 0
    %4018 = vmatmul.mubr.bf16.gmra.mrb[0].mxu0 %v3871
    %v4019 = vpop.f32.mrb[0].mxu0
    %v4020 = vadd.f32 %v3895, %v4019
    %v4021 = vpop.f32.mrb[0].mxu0
    %v4022 = vpop.f32.mrb[0].mxu0
    %v4023 = vadd.f32 %v3895, %v4022
    %v4024 = vpop.f32.mrb[0].mxu0
    %4025 = vmatprep.mubr.bf16.mxu0 0
    %4026 = vmatmul.mubr.bf16.gmra.mrb[0].mxu0 %v3872
    %v4027 = vpop.f32.mrb[0].mxu0
    %v4028 = vadd.f32 %v3895, %v4027
    %v4029 = vpop.f32.mrb[0].mxu0
    %v4030 = vpop.f32.mrb[0].mxu0
    %v4031 = vadd.f32 %v3895, %v4030
    %v4032 = vpop.f32.mrb[0].mxu0
    %4033 = vmatprep.mubr.bf16.mxu0 0
    %4034 = vmatmul.mubr.bf16.gmra.mrb[0].mxu0 %v3873
    %v4035 = vpop.f32.mrb[0].mxu0
    %v4036 = vadd.f32 %v3895, %v4035
    %v4037 = vpop.f32.mrb[0].mxu0
    %v4038 = vpop.f32.mrb[0].mxu0
    %v4039 = vadd.f32 %v3895, %v4038
    %v4040 = vpop.f32.mrb[0].mxu0
    %4041 = vdwg.mxu0
    %v4042 = vmax.f32 %v3980, 0.0
    %v4043 = vmax.f32 %v3983, 0.0
    %v4044 = vmax.f32 %v3988, 0.0
    %v4045 = vmax.f32 %v3991, 0.0
    %v4046 = vmax.f32 %v3996, 0.0
    %v4047 = vmax.f32 %v3999, 0.0
    %v4048 = vmax.f32 %v4004, 0.0
    %v4049 = vmax.f32 %v4007, 0.0
    %v4050 = vmax.f32 %v4012, 0.0
    %v4051 = vmax.f32 %v4015, 0.0
    %v4052 = vmax.f32 %v4020, 0.0
    %v4053 = vmax.f32 %v4023, 0.0
    %v4054 = vmax.f32 %v4028, 0.0
    %v4055 = vmax.f32 %v4031, 0.0
    %v4056 = vmax.f32 %v4036, 0.0
    %v4057 = vmax.f32 %v4039, 0.0
    %v4058 = vpack.c.bf16 %v4043, %v4042
    %v4059 = vpack.c.bf16 %v4045, %v4044
    %v4060 = vpack.c.bf16 %v4047, %v4046
    %v4061 = vpack.c.bf16 %v4049, %v4048
    %v4062 = vpack.c.bf16 %v4051, %v4050
    %v4063 = vpack.c.bf16 %v4053, %v4052
    %v4064 = vpack.c.bf16 %v4055, %v4054
    %v4065 = vpack.c.bf16 %v4057, %v4056
    %v4066 = vld [vmem:[#allocation14] sm:$0xf]
    %v4067 = vld [vmem:[#allocation14 + $0x4] sm:$0xf]
    %v4068 = vld [vmem:[#allocation14 + $0x8] sm:$0xf]
    %v4069 = vld [vmem:[#allocation14 + $0xc] sm:$0xf]
    %v4070 = vld [vmem:[#allocation14 + $0x10] sm:$0xf]
    %v4071 = vld [vmem:[#allocation14 + $0x14] sm:$0xf]
    %v4072 = vld [vmem:[#allocation14 + $0x18] sm:$0xf]
    %v4073 = vld [vmem:[#allocation14 + $0x1c] sm:$0xf]
    %v4074 = vld [vmem:[#allocation14 + $0x20] sm:$0xf]
    %v4075 = vld [vmem:[#allocation14 + $0x24] sm:$0xf]
    %v4076 = vld [vmem:[#allocation14 + $0x28] sm:$0xf]
    %v4077 = vld [vmem:[#allocation14 + $0x2c] sm:$0xf]
    %v4078 = vld [vmem:[#allocation14 + $0x30] sm:$0xf]
    %v4079 = vld [vmem:[#allocation14 + $0x34] sm:$0xf]
    %v4080 = vld [vmem:[#allocation14 + $0x38] sm:$0xf]
    %v4081 = vld [vmem:[#allocation14 + $0x3c] sm:$0xf]
    %v4082 = vld [vmem:[%s15] sm:$0x1]
    %v4084 = vlaneseq
    %v4085 = vshrl.u32 %v4084, 7
    %v4086 = vsub.s32 0, %v4085
    %v4087 = vrot.slane %v4082, %v4086
    %v4105 = vunpack.c.l.b16 %v4066
    %v4106 = vunpack.c.l.b16 %v4067
    %v4107 = vunpack.c.l.b16 %v4068
    %v4108 = vunpack.c.l.b16 %v4069
    %v4109 = vunpack.c.l.b16 %v4070
    %v4110 = vunpack.c.l.b16 %v4071
    %v4111 = vunpack.c.l.b16 %v4072
    %v4112 = vunpack.c.l.b16 %v4073
    %v4113 = vunpack.c.l.b16 %v4074
    %v4114 = vunpack.c.l.b16 %v4075
    %v4115 = vunpack.c.l.b16 %v4076
    %v4116 = vunpack.c.l.b16 %v4077
    %v4117 = vunpack.c.l.b16 %v4078
    %v4118 = vunpack.c.l.b16 %v4079
    %v4119 = vunpack.c.l.b16 %v4080
    %v4120 = vunpack.c.l.b16 %v4081
    %v4121 = vpack.c.b16 %v4106, %v4105
    %v4122 = vpack.c.b16 %v4108, %v4107
    %v4123 = vpack.c.b16 %v4110, %v4109
    %v4124 = vpack.c.b16 %v4112, %v4111
    %v4125 = vpack.c.b16 %v4114, %v4113
    %v4126 = vpack.c.b16 %v4116, %v4115
    %v4127 = vpack.c.b16 %v4118, %v4117
    %v4128 = vpack.c.b16 %v4120, %v4119
    %4137 = vmatprep.subr.bf16.mxu0 0
    %4138 = vmatpush1.bf16.msra.mxu0 %v4121
    %4139 = vmatprep.subr.bf16.mxu0 0
    %4140 = vmatpush1.bf16.msra.mxu0 %v4122
    %4141 = vmatprep.subr.bf16.mxu0 0
    %4142 = vmatpush1.bf16.msra.mxu0 %v4123
    %4143 = vmatprep.subr.bf16.mxu0 0
    %4144 = vmatpush1.bf16.msra.mxu0 %v4124
    %4145 = vmatprep.subr.bf16.mxu0 0
    %4146 = vmatpush1.bf16.msra.mxu0 %v4125
    %4147 = vmatprep.subr.bf16.mxu0 0
    %4148 = vmatpush1.bf16.msra.mxu0 %v4126
    %4149 = vmatprep.subr.bf16.mxu0 0
    %4150 = vmatpush1.bf16.msra.mxu0 %v4127
    %4151 = vmatprep.subr.bf16.mxu0 0
    %4152 = vmatpush1.bf16.msra.mxu0 %v4128
    %4153 = vmatprep.subr.bf16.mxu0 0
    %4154 = vmatpush1.bf16.msra.mxu0 0
    %4155 = vmatprep.subr.bf16.mxu0 0
    %4156 = vmatpush1.bf16.msra.mxu0 0
    %4157 = vmatprep.subr.bf16.mxu0 0
    %4158 = vmatpush1.bf16.msra.mxu0 0
    %4159 = vmatprep.subr.bf16.mxu0 0
    %4160 = vmatpush1.bf16.msra.mxu0 0
    %4161 = vmatprep.subr.bf16.mxu0 0
    %4162 = vmatpush1.bf16.msra.mxu0 0
    %4163 = vmatprep.subr.bf16.mxu0 0
    %4164 = vmatpush1.bf16.msra.mxu0 0
    %4165 = vmatprep.subr.bf16.mxu0 0
    %4166 = vmatpush1.bf16.msra.mxu0 0
    %4167 = vmatprep.subr.bf16.mxu0 0
    %4168 = vmatpush1.bf16.msra.mxu0 0
    %4169 = vmatprep.mubr.bf16.mxu0 0
    %4170 = vmatmul.mubr.bf16.gmra.mrb[0].mxu0 %v4058
    %v4171 = vpop.f32.mrb[0].mxu0
    %v4172 = vadd.f32 %v4087, %v4171
    %v4173 = vpop.f32.mrb[0].mxu0
    %v4174 = vpop.f32.mrb[0].mxu0
    %v4175 = vadd.f32 %v4087, %v4174
    %v4176 = vpop.f32.mrb[0].mxu0
    %4177 = vmatprep.mubr.bf16.mxu0 0
    %4178 = vmatmul.mubr.bf16.gmra.mrb[0].mxu0 %v4059
    %v4179 = vpop.f32.mrb[0].mxu0
    %v4180 = vadd.f32 %v4087, %v4179
    %v4181 = vpop.f32.mrb[0].mxu0
    %v4182 = vpop.f32.mrb[0].mxu0
    %v4183 = vadd.f32 %v4087, %v4182
    %v4184 = vpop.f32.mrb[0].mxu0
    %4185 = vmatprep.mubr.bf16.mxu0 0
    %4186 = vmatmul.mubr.bf16.gmra.mrb[0].mxu0 %v4060
    %v4187 = vpop.f32.mrb[0].mxu0
    %v4188 = vadd.f32 %v4087, %v4187
    %v4189 = vpop.f32.mrb[0].mxu0
    %v4190 = vpop.f32.mrb[0].mxu0
    %v4191 = vadd.f32 %v4087, %v4190
    %v4192 = vpop.f32.mrb[0].mxu0
    %4193 = vmatprep.mubr.bf16.mxu0 0
    %4194 = vmatmul.mubr.bf16.gmra.mrb[0].mxu0 %v4061
    %v4195 = vpop.f32.mrb[0].mxu0
    %v4196 = vadd.f32 %v4087, %v4195
    %v4197 = vpop.f32.mrb[0].mxu0
    %v4198 = vpop.f32.mrb[0].mxu0
    %v4199 = vadd.f32 %v4087, %v4198
    %v4200 = vpop.f32.mrb[0].mxu0
    %4201 = vmatprep.mubr.bf16.mxu0 0
    %4202 = vmatmul.mubr.bf16.gmra.mrb[0].mxu0 %v4062
    %v4203 = vpop.f32.mrb[0].mxu0
    %v4204 = vadd.f32 %v4087, %v4203
    %v4205 = vpop.f32.mrb[0].mxu0
    %v4206 = vpop.f32.mrb[0].mxu0
    %v4207 = vadd.f32 %v4087, %v4206
    %v4208 = vpop.f32.mrb[0].mxu0
    %4209 = vmatprep.mubr.bf16.mxu0 0
    %4210 = vmatmul.mubr.bf16.gmra.mrb[0].mxu0 %v4063
    %v4211 = vpop.f32.mrb[0].mxu0
    %v4212 = vadd.f32 %v4087, %v4211
    %v4213 = vpop.f32.mrb[0].mxu0
    %v4214 = vpop.f32.mrb[0].mxu0
    %v4215 = vadd.f32 %v4087, %v4214
    %v4216 = vpop.f32.mrb[0].mxu0
    %4217 = vmatprep.mubr.bf16.mxu0 0
    %4218 = vmatmul.mubr.bf16.gmra.mrb[0].mxu0 %v4064
    %v4219 = vpop.f32.mrb[0].mxu0
    %v4220 = vadd.f32 %v4087, %v4219
    %v4221 = vpop.f32.mrb[0].mxu0
    %v4222 = vpop.f32.mrb[0].mxu0
    %v4223 = vadd.f32 %v4087, %v4222
    %v4224 = vpop.f32.mrb[0].mxu0
    %4225 = vmatprep.mubr.bf16.mxu0 0
    %4226 = vmatmul.mubr.bf16.gmra.mrb[0].mxu0 %v4065
    %v4227 = vpop.f32.mrb[0].mxu0
    %v4228 = vadd.f32 %v4087, %v4227
    %v4229 = vpop.f32.mrb[0].mxu0
    %v4230 = vpop.f32.mrb[0].mxu0
    %v4231 = vadd.f32 %v4087, %v4230
    %v4232 = vpop.f32.mrb[0].mxu0
    %4233 = vdwg.mxu0
    %v4234 = vxor.u32 %v4172, 2147483648
    %v4235 = vxor.u32 %v4175, 2147483648
    %v4236 = vxor.u32 %v4180, 2147483648
    %v4237 = vxor.u32 %v4183, 2147483648
    %v4238 = vxor.u32 %v4188, 2147483648
    %v4239 = vxor.u32 %v4191, 2147483648
    %v4240 = vxor.u32 %v4196, 2147483648
    %v4241 = vxor.u32 %v4199, 2147483648
    %v4242 = vxor.u32 %v4204, 2147483648
    %v4243 = vxor.u32 %v4207, 2147483648
    %v4244 = vxor.u32 %v4212, 2147483648
    %v4245 = vxor.u32 %v4215, 2147483648
    %v4246 = vxor.u32 %v4220, 2147483648
    %v4247 = vxor.u32 %v4223, 2147483648
    %v4248 = vxor.u32 %v4228, 2147483648
    %v4249 = vxor.u32 %v4231, 2147483648
    %v4250 = vmul.f32 %v4234, 1.442695
    %v4251 = vpow.pop %v4250
    %v4252 = vmul.f32 %v4235, 1.442695
    %v4253 = vpow.pop %v4252
    %v4254 = vmul.f32 %v4236, 1.442695
    %v4255 = vpow.pop %v4254
    %v4256 = vmul.f32 %v4237, 1.442695
    %v4257 = vpow.pop %v4256
    %v4258 = vmul.f32 %v4238, 1.442695
    %v4259 = vpow.pop %v4258
    %v4260 = vmul.f32 %v4239, 1.442695
    %v4261 = vpow.pop %v4260
    %v4262 = vmul.f32 %v4240, 1.442695
    %v4263 = vpow.pop %v4262
    %v4264 = vmul.f32 %v4241, 1.442695
    %v4265 = vpow.pop %v4264
    %v4266 = vmul.f32 %v4242, 1.442695
    %v4267 = vpow.pop %v4266
    %v4268 = vmul.f32 %v4243, 1.442695
    %v4269 = vpow.pop %v4268
    %v4270 = vmul.f32 %v4244, 1.442695
    %v4271 = vpow.pop %v4270
    %v4272 = vmul.f32 %v4245, 1.442695
    %v4273 = vpow.pop %v4272
    %v4274 = vmul.f32 %v4246, 1.442695
    %v4275 = vpow.pop %v4274
    %v4276 = vmul.f32 %v4247, 1.442695
    %v4277 = vpow.pop %v4276
    %v4278 = vmul.f32 %v4248, 1.442695
    %v4279 = vpow.pop %v4278
    %v4280 = vmul.f32 %v4249, 1.442695
    %v4281 = vpow.pop %v4280
    %v4282 = vadd.f32 %v4251, 1.0
    %v4283 = vadd.f32 %v4253, 1.0
    %v4284 = vadd.f32 %v4255, 1.0
    %v4285 = vadd.f32 %v4257, 1.0
    %v4286 = vadd.f32 %v4259, 1.0
    %v4287 = vadd.f32 %v4261, 1.0
    %v4288 = vadd.f32 %v4263, 1.0
    %v4289 = vadd.f32 %v4265, 1.0
    %v4290 = vadd.f32 %v4267, 1.0
    %v4291 = vadd.f32 %v4269, 1.0
    %v4292 = vadd.f32 %v4271, 1.0
    %v4293 = vadd.f32 %v4273, 1.0
    %v4294 = vadd.f32 %v4275, 1.0
    %v4295 = vadd.f32 %v4277, 1.0
    %v4296 = vadd.f32 %v4279, 1.0
    %v4297 = vadd.f32 %v4281, 1.0
    %v4298 = vrcp.pop %v4282
    %v4299 = vmul.f32 1.0, %v4298
    %v4300 = vrcp.pop %v4283
    %v4301 = vmul.f32 1.0, %v4300
    %v4302 = vrcp.pop %v4284
    %v4303 = vmul.f32 1.0, %v4302
    %v4304 = vrcp.pop %v4285
    %v4305 = vmul.f32 1.0, %v4304
    %v4306 = vrcp.pop %v4286
    %v4307 = vmul.f32 1.0, %v4306
    %v4308 = vrcp.pop %v4287
    %v4309 = vmul.f32 1.0, %v4308
    %v4310 = vrcp.pop %v4288
    %v4311 = vmul.f32 1.0, %v4310
    %v4312 = vrcp.pop %v4289
    %v4313 = vmul.f32 1.0, %v4312
    %v4314 = vrcp.pop %v4290
    %v4315 = vmul.f32 1.0, %v4314
    %v4316 = vrcp.pop %v4291
    %v4317 = vmul.f32 1.0, %v4316
    %v4318 = vrcp.pop %v4292
    %v4319 = vmul.f32 1.0, %v4318
    %v4320 = vrcp.pop %v4293
    %v4321 = vmul.f32 1.0, %v4320
    %v4322 = vrcp.pop %v4294
    %v4323 = vmul.f32 1.0, %v4322
    %v4324 = vrcp.pop %v4295
    %v4325 = vmul.f32 1.0, %v4324
    %v4326 = vrcp.pop %v4296
    %v4327 = vmul.f32 1.0, %v4326
    %v4328 = vrcp.pop %v4297
    %v4329 = vmul.f32 1.0, %v4328
    %v4330 = vlaneseq
    %v4331 = vand.u32 %v4330, 127
    %vm4332 = vcmp.lt.s32.totalorder %v4331, 3
    %vm4333 = vcmp.eq.s32.totalorder %v4331, 3
    %v4334 = vsel %vm4333, %v4299, 0.0
    %v4335 = vsel %vm4333, %v4301, 0.0
    %v4336 = vsel %vm4333, %v4303, 0.0
    %v4337 = vsel %vm4333, %v4305, 0.0
    %v4338 = vsel %vm4333, %v4307, 0.0
    %v4339 = vsel %vm4333, %v4309, 0.0
    %v4340 = vsel %vm4333, %v4311, 0.0
    %v4341 = vsel %vm4333, %v4313, 0.0
    %v4342 = vsel %vm4333, %v4315, 0.0
    %v4343 = vsel %vm4333, %v4317, 0.0
    %v4344 = vsel %vm4333, %v4319, 0.0
    %v4345 = vsel %vm4333, %v4321, 0.0
    %v4346 = vsel %vm4333, %v4323, 0.0
    %v4347 = vsel %vm4333, %v4325, 0.0
    %v4348 = vsel %vm4333, %v4327, 0.0
    %v4349 = vsel %vm4333, %v4329, 0.0
    %v4350 = vsel %vm4332, %v3788, %v4334
    %v4351 = vsel %vm4332, %v3791, %v4335
    %v4352 = vsel %vm4332, %v3796, %v4336
    %v4353 = vsel %vm4332, %v3799, %v4337
    %v4354 = vsel %vm4332, %v3804, %v4338
    %v4355 = vsel %vm4332, %v3807, %v4339
    %v4356 = vsel %vm4332, %v3812, %v4340
    %v4357 = vsel %vm4332, %v3815, %v4341
    %v4358 = vsel %vm4332, %v3820, %v4342
    %v4359 = vsel %vm4332, %v3823, %v4343
    %v4360 = vsel %vm4332, %v3828, %v4344
    %v4361 = vsel %vm4332, %v3831, %v4345
    %v4362 = vsel %vm4332, %v3836, %v4346
    %v4363 = vsel %vm4332, %v3839, %v4347
    %v4364 = vsel %vm4332, %v3844, %v4348
    %v4365 = vsel %vm4332, %v3847, %v4349
    %4366 = vst [vmem:[#allocation16] sm:$0xff] %v4350
    %4367 = vst [vmem:[#allocation16 + $0x8] sm:$0xff] %v4351
    %4368 = vst [vmem:[#allocation16 + $0x10] sm:$0xff] %v4352
    %4369 = vst [vmem:[#allocation16 + $0x18] sm:$0xff] %v4353
    %4370 = vst [vmem:[#allocation16 + $0x20] sm:$0xff] %v4354
    %4371 = vst [vmem:[#allocation16 + $0x28] sm:$0xff] %v4355
    %4372 = vst [vmem:[#allocation16 + $0x30] sm:$0xff] %v4356
    %4373 = vst [vmem:[#allocation16 + $0x38] sm:$0xff] %v4357
    %4374 = vst [vmem:[#allocation16 + $0x40] sm:$0xff] %v4358
    %4375 = vst [vmem:[#allocation16 + $0x48] sm:$0xff] %v4359
    %4376 = vst [vmem:[#allocation16 + $0x50] sm:$0xff] %v4360
    %4377 = vst [vmem:[#allocation16 + $0x58] sm:$0xff] %v4361
    %4378 = vst [vmem:[#allocation16 + $0x60] sm:$0xff] %v4362
    %4379 = vst [vmem:[#allocation16 + $0x68] sm:$0xff] %v4363
    %4380 = vst [vmem:[#allocation16 + $0x70] sm:$0xff] %v4364
    %4381 = vst [vmem:[#allocation16 + $0x78] sm:$0xff] %v4365
    // Predicated region
    $region98: #{tpu_custom_call.1} parent=1 // pred_check
      _
    $region99: #{tpu_custom_call.1} parent=1 // pred_check_branch
      %4383 = sbr.rel (0) target = $region101
    $region100: #{tpu_custom_call.1} parent=1 // pred_region
      %s4385 = ssub.s32 2048, 2048
      %4386 = vsyncadd [#allocation4], %s4385
      %s4387 = sshll.u32 [#allocation16], 4
      %s4388 = int_to_ptr.vmem [resolvable:$true] %s4387
      %4393 = dma.vmem_to_hbm [thread:$0]  %s4388, 2048, %s16, [#allocation4], 128, 128, 8
    $region101: #{tpu_custom_call.1} parent=1 // pred_fallthru
      _
    // Predicated region
    $region102: #{tpu_custom_call.1} parent=1 // pred_check
      _
    $region103: #{tpu_custom_call.1} parent=1 // pred_check_branch
      %4395 = sbr.rel (0) target = $region105
    $region104: #{tpu_custom_call.1} parent=1 // pred_region
      %4396 = dma.done [#allocation4], 2048
    $region105: #{tpu_custom_call.1} parent=1 // pred_fallthru
      _
    %4397 = vsyncpa [#allocation3], 1
    %4398 = vsyncpa [#allocation6], 1
    %4399 = vsyncpa [#allocation9], 1
    %4400 = vsyncpa [#allocation12], 1
    %4401 = vsyncpa [#allocation15], 1
    %4402 = vsyncpa [#allocation4], 1

</llo_original>
